<compile_context>
chip_gen: v7x
topology: tpu7x:2x2x1
jax: 0.10.0
libtpu: 0.0.40
codegen_flags: <defaults>
</compile_context>

<pallas_src>
import functools
import math

import jax
import jax.numpy as jnp
from jax.experimental import pallas as pl
from jax.experimental.pallas import tpu as pltpu


# ----------------------------------------------------------------------------
# Fused Pallas kernel: pos-encoding + all encoder layers; one (batch-tile, layer) step
# ----------------------------------------------------------------------------
def _fused_transformer_kernel(
        x_ref, pe_ref, bias_ref,
        wqkv_ref, bqkv_ref, wo_ref, bo_ref, ln1w_ref, ln1b_ref,
        w1_ref, b1_ref, w2_ref, b2_ref, ln2w_ref, ln2b_ref,
        out_ref, x_scr,
        *, nhead, eps=1e-5):
    l = pl.program_id(1)
    nl = pl.num_programs(1)

    Bt, _, S = bias_ref.shape
    M, D = x_scr.shape                 # M = Bt * S
    H = nhead
    Dh = D // H
    G = H * Bt

    mm_dtype = wqkv_ref.dtype          # bf16 if weights were pre-cast, else f32

    def mm(a):                         # cast MXU activation operands; f32 accumulate
        return a.astype(mm_dtype)

    # Layer 0: load the input tile and add the positional encoding (dropout = 0).
    @pl.when(l == 0)
    def _():
        x0 = x_ref[...].astype(jnp.float32) + pe_ref[0].astype(jnp.float32)
        x_scr[...] = x0.reshape(M, D)

    x2d = x_scr[...]                   # [M, D] f32, resident in VMEM across layers

    # ---- fused QKV projection: one lane-dense matmul -------------------------
    qkv = jnp.dot(mm(x2d), wqkv_ref[0],
                  preferred_element_type=jnp.float32) + bqkv_ref[0]   # [M, 3D]

    def split_heads(part):             # [M, Dh*H slice] -> [G, S, Dh], g = h*Bt + b
        cols = [part[:, h * Dh:(h + 1) * Dh] for h in range(H)]
        return jnp.stack(cols, axis=0).reshape(G, S, Dh)

    qh = split_heads(qkv[:, 0 * D:1 * D])        # query already scaled by 1/sqrt(Dh)
    kh = split_heads(qkv[:, 1 * D:2 * D])
    vh = split_heads(qkv[:, 2 * D:3 * D])

    # ---- attention scores + masked softmax (all stats in f32) ---------------
    s = jnp.einsum('gqd,gkd->gqk', mm(qh), mm(kh),
                   preferred_element_type=jnp.float32)                # [G, S, S]
    # additive key-padding bias (0 / -1e30), precomputed on host
    bias = jnp.broadcast_to(bias_ref[...][None], (H, Bt, 1, S)).reshape(G, 1, S)
    s = s + bias
    # NOTE: a fully-padded key row yields a uniform softmax (PyTorch would emit NaN);
    # benign for the tested inputs.
    s = s - jnp.max(s, axis=-1, keepdims=True)
    p = jnp.exp(s)
    p = p * pl.reciprocal(jnp.sum(p, axis=-1, keepdims=True), approx=True)  # EUP

    o = jnp.einsum('gqk,gkd->gqd', mm(p), mm(vh),
                   preferred_element_type=jnp.float32)                # [G, S, Dh]

    # ---- output projection fused with head merge ------------------------------
    o = o.reshape(H, M, Dh)
    o_cat = jnp.concatenate([o[h] for h in range(H)], axis=-1)        # [M, D]
    attn = jnp.dot(mm(o_cat), wo_ref[0],
                   preferred_element_type=jnp.float32) + bo_ref[0]    # [M, D]

    # ---- residual + LayerNorm 1 (post-norm) ----------------------------------
    x1 = x2d + attn
    mu = jnp.mean(x1, axis=-1, keepdims=True)
    var = jnp.mean((x1 - mu) ** 2, axis=-1, keepdims=True)
    x1 = (x1 - mu) * jax.lax.rsqrt(var + eps) * ln1w_ref[0] + ln1b_ref[0]

    # ---- feed-forward: Linear -> ReLU -> Linear (weights pre-transposed) -----
    h1 = jnp.dot(mm(x1), w1_ref[0], preferred_element_type=jnp.float32) + b1_ref[0]
    h1 = jnp.maximum(h1, 0.0)
    h2 = jnp.dot(mm(h1), w2_ref[0], preferred_element_type=jnp.float32) + b2_ref[0]

    # ---- residual + LayerNorm 2 ----------------------------------------------
    x2 = x1 + h2
    mu2 = jnp.mean(x2, axis=-1, keepdims=True)
    var2 = jnp.mean((x2 - mu2) ** 2, axis=-1, keepdims=True)
    x2 = (x2 - mu2) * jax.lax.rsqrt(var2 + eps) * ln2w_ref[0] + ln2b_ref[0]

    x_scr[...] = x2                    # carry to next layer (stays in VMEM)

    @pl.when(l == nl - 1)
    def _():
        out_ref[...] = x2.reshape(Bt, S, D).astype(out_ref.dtype)


# ----------------------------------------------------------------------------
# Wrapper: one pallas_call for the whole forward pass
# ----------------------------------------------------------------------------
def _pick_batch_tile(B, cap=8):
    for bt in range(min(B, cap), 0, -1):
        if B % bt == 0:
            return bt
    return 1


def transformer_model_forward(src, src_key_padding_mask, kparams, nhead,
                              batch_tile_cap=8):
    """src: [seq_len, batch, d_model]; mask: [batch, seq_len] bool (True = pad)."""
    S, B, D = src.shape
    assert D % nhead == 0, "d_model must be divisible by nhead"
    H = nhead
    L = kparams["wqkv_t"].shape[0]
    F = kparams["w1_t"].shape[2]

    # On v7x prefer a Bt that leaves an even number of batch-grid steps per chip so
    # both TensorCores stay busy on the "parallel" axis.
    Bt = _pick_batch_tile(B, cap=batch_tile_cap)
    Bg = B // Bt

    x = jnp.transpose(src, (1, 0, 2))                       # -> [B, S, D]
    pe = kparams["pe"][:S][None]                            # [1, S, D]
    bias = jnp.where(src_key_padding_mask, jnp.float32(-1e30),
                     jnp.float32(0.0)).reshape(B, 1, S)     # additive key-pad bias

    # ---- BlockSpecs: per-batch-tile activations, per-layer weights -----------
    x_spec = pl.BlockSpec((Bt, S, D), lambda b, l: (b, 0, 0))
    pe_spec = pl.BlockSpec((1, S, D), lambda b, l: (0, 0, 0))
    bias_spec = pl.BlockSpec((Bt, 1, S), lambda b, l: (b, 0, 0))

    def w3(d1, d2):   # per-layer weight / bias blocks, stacked over layers
        return pl.BlockSpec((1, d1, d2), lambda b, l: (l, 0, 0))

    in_specs = [
        x_spec, pe_spec, bias_spec,
        w3(D, 3 * D), w3(1, 3 * D),           # wqkv_t, bqkv
        w3(D, D), w3(1, D),                   # wo_t, bo
        w3(1, D), w3(1, D),                   # ln1w, ln1b
        w3(D, F), w3(1, F),                   # w1_t, b1
        w3(F, D), w3(1, D),                   # w2_t, b2
        w3(1, D), w3(1, D),                   # ln2w, ln2b
    ]
    out_spec = pl.BlockSpec((Bt, S, D), lambda b, l: (b, 0, 0))

    # ---- VMEM limit derived from the actual block sizes (cap 64 MiB for v7x;
    #      raise toward ~100 MiB on v5e/v6e if Bt is enlarged) -------------------
    w_itemsize = jnp.dtype(kparams["wqkv_t"].dtype).itemsize
    w_bytes = (D * 3 * D + D * D + D * F + F * D) * w_itemsize
    small_bytes = (3 * D + D + 2 * D + F + D + 2 * D) * 4
    act_in = (Bt * S * D + S * D + Bt * S) * 4
    act_out = Bt * S * D * jnp.dtype(src.dtype).itemsize
    scratch = Bt * S * D * 4
    tmps = (Bt * S * 3 * D * 2 + 3 * H * Bt * S * S + 3 * Bt * S * D
            + 2 * Bt * S * F) * 4
    est = 2 * (w_bytes + small_bytes + act_in + act_out) + scratch + tmps
    vmem_limit = int(min(64 * 1024 * 1024, max(32 * 1024 * 1024, 2 * est)))

    kernel = functools.partial(_fused_transformer_kernel, nhead=nhead)
    out = pl.pallas_call(
        kernel,
        out_shape=jax.ShapeDtypeStruct((B, S, D), src.dtype),
        grid=(Bg, L),
        in_specs=in_specs,
        out_specs=out_spec,
        scratch_shapes=[pltpu.VMEM((Bt * S, D), jnp.float32)],   # layer-resident act
        compiler_params=pltpu.CompilerParams(
            dimension_semantics=("parallel", "arbitrary"),
            vmem_limit_bytes=vmem_limit),
    )(x, pe, bias,
      kparams["wqkv_t"], kparams["bqkv"],
      kparams["wo_t"], kparams["bo"], kparams["ln1w"], kparams["ln1b"],
      kparams["w1_t"], kparams["b1"], kparams["w2_t"], kparams["b2"],
      kparams["ln2w"], kparams["ln2b"])
    return jnp.transpose(out, (1, 0, 2))                    # -> [S, B, D]


# ----------------------------------------------------------------------------
# Host-side parameter prep: stack over layers, pre-transpose, fold attention scale,
# optionally pre-cast matmul weights to bf16 (f32 accumulation in-kernel).
# ----------------------------------------------------------------------------
def prepare_kernel_params(params, nhead, use_bf16_matmul=False):
    layers = params["layers"]
    D = layers[0]["wo"].shape[0]
    Dh = D // nhead
    scale = jnp.float32(1.0 / math.sqrt(Dh))
    wdt = jnp.bfloat16 if use_bf16_matmul else jnp.float32

    def wqkv_t(L):                        # [3D, D] -> [D, 3D], query cols pre-scaled
        wt = jnp.transpose(L["wqkv"], (1, 0))
        return wt.at[:, :D].multiply(scale).astype(wdt)

    def bqkv(L):                          # [1, 3D], query part pre-scaled (stays f32)
        b = L["bqkv"][0]
        return b.at[:D].multiply(scale).reshape(1, 3 * D)

    def stack(fn):
        return jnp.stack([fn(L) for L in layers], axis=0)

    return {
        "wqkv_t": stack(wqkv_t),                                        # [L, D, 3D]
        "bqkv":   stack(bqkv),                                          # [L, 1, 3D]
        "wo_t":   stack(lambda L: jnp.transpose(L["wo"], (1, 0)).astype(wdt)),
        "bo":     stack(lambda L: L["bo"]),
        "ln1w":   stack(lambda L: L["ln1w"]),
        "ln1b":   stack(lambda L: L["ln1b"]),
        "w1_t":   stack(lambda L: jnp.transpose(L["w1"], (1, 0)).astype(wdt)),
        "b1":     stack(lambda L: L["b1"]),
        "w2_t":   stack(lambda L: jnp.transpose(L["w2"], (1, 0)).astype(wdt)),
        "b2":     stack(lambda L: L["b2"]),
        "ln2w":   stack(lambda L: L["ln2w"]),
        "ln2b":   stack(lambda L: L["ln2b"]),
        "pe":     params["pe"],                                         # keep f32
    }


# ----------------------------------------------------------------------------
# Deterministic parameter init (PyTorch layout) + pure-JAX reference
# ----------------------------------------------------------------------------
def make_positional_encoding(max_len, d_model):
    position = jnp.arange(max_len, dtype=jnp.float32)[:, None]
    div_term = jnp.exp(jnp.arange(0, d_model, 2, dtype=jnp.float32)
                       * (-math.log(10000.0) / d_model))
    pe = jnp.zeros((max_len, d_model), dtype=jnp.float32)
    pe = pe.at[:, 0::2].set(jnp.sin(position * div_term))
    pe = pe.at[:, 1::2].set(jnp.cos(position * div_term))
    return pe


def init_params(key, d_model, nhead, d_ff, nlayers, max_len=128):
    params = {"pe": make_positional_encoding(max_len, d_model), "layers": []}
    for l in range(nlayers):
        k = jax.random.fold_in(key, l)
        k1, k2, k3, k4 = jax.random.split(k, 4)
        layer = {
            "wqkv": 0.02 * jax.random.normal(k1, (3 * d_model, d_model), jnp.float32),
            "bqkv": jnp.zeros((1, 3 * d_model), jnp.float32),
            "wo": 0.02 * jax.random.normal(k2, (d_model, d_model), jnp.float32),
            "bo": jnp.zeros((1, d_model), jnp.float32),
            "ln1w": jnp.ones((1, d_model), jnp.float32),
            "ln1b": jnp.zeros((1, d_model), jnp.float32),
            "w1": 0.02 * jax.random.normal(k3, (d_ff, d_model), jnp.float32),
            "b1": jnp.zeros((1, d_ff), jnp.float32),
            "w2": 0.02 * jax.random.normal(k4, (d_model, d_ff), jnp.float32),
            "b2": jnp.zeros((1, d_model), jnp.float32),
            "ln2w": jnp.ones((1, d_model), jnp.float32),
            "ln2b": jnp.zeros((1, d_model), jnp.float32),
        }
        params["layers"].append(layer)
    return params


def reference_forward(src, src_key_padding_mask, params, nhead, eps=1e-5):
    S, B, D = src.shape
    Dh = D // nhead
    x = jnp.transpose(src + params["pe"][:S][:, None, :], (1, 0, 2))   # [B, S, D]
    pad = src_key_padding_mask                                          # [B, S]
    for L in params["layers"]:
        qkv = x @ L["wqkv"].T + L["bqkv"][0]
        q, k, v = jnp.split(qkv, 3, axis=-1)
        q = q.reshape(B, S, nhead, Dh)
        k = k.reshape(B, S, nhead, Dh)
        v = v.reshape(B, S, nhead, Dh)
        s = jnp.einsum("bqhd,bkhd->bhqk", q, k) / math.sqrt(Dh)
        s = jnp.where(pad[:, None, None, :], -1e30, s)
        p = jax.nn.softmax(s, axis=-1)
        o = jnp.einsum("bhqk,bkhd->bqhd", p, v).reshape(B, S, D)
        o = o @ L["wo"].T + L["bo"][0]
        x1 = x + o
        mu = jnp.mean(x1, -1, keepdims=True)
        var = jnp.mean((x1 - mu) ** 2, -1, keepdims=True)
        x1 = (x1 - mu) * jax.lax.rsqrt(var + eps) * L["ln1w"][0] + L["ln1b"][0]
        h = jnp.maximum(x1 @ L["w1"].T + L["b1"][0], 0.0) @ L["w2"].T + L["b2"][0]
        x2 = x1 + h
        mu2 = jnp.mean(x2, -1, keepdims=True)
        var2 = jnp.mean((x2 - mu2) ** 2, -1, keepdims=True)
        x = (x2 - mu2) * jax.lax.rsqrt(var2 + eps) * L["ln2w"][0] + L["ln2b"][0]
    return jnp.transpose(x, (1, 0, 2))


# ----------------------------------------------------------------------------
if __name__ == "__main__":
    seq_len, batch = 8, 2
    d_model, nhead, d_ff, nlayers = 32, 4, 64, 2

    key = jax.random.PRNGKey(0)
    k_src, k_par = jax.random.split(key)
    src = jax.random.normal(k_src, (seq_len, batch, d_model), jnp.float32)
    # True = padding (ignored keys); pad last two positions of batch element 1.
    src_key_padding_mask = jnp.zeros((batch, seq_len), jnp.bool_).at[1, 6:].set(True)

    params = init_params(k_par, d_model, nhead, d_ff, nlayers)
    ref = reference_forward(src, src_key_padding_mask, params, nhead)

    # f32 MXU operands (tight tolerance vs. pure-JAX reference)
    kparams = prepare_kernel_params(params, nhead, use_bf16_matmul=False)
    out = transformer_model_forward(src, src_key_padding_mask, kparams, nhead)
    out = jax.block_until_ready(out)
    assert out.shape == (seq_len, batch, d_model)
    assert jnp.allclose(out, ref, rtol=1e-3, atol=1e-3), "f32 kernel mismatch vs reference"

    # bf16 MXU operands / f32 accumulation (recommended default for v6e / v7x)
    kparams_bf16 = prepare_kernel_params(params, nhead, use_bf16_matmul=True)
    out_bf16 = transformer_model_forward(src, src_key_padding_mask, kparams_bf16, nhead)
    out_bf16 = jax.block_until_ready(out_bf16)
    assert jnp.allclose(out_bf16, ref, rtol=5e-2, atol=5e-2), "bf16 kernel mismatch vs reference"

    print("KERNEL_OK")
</pallas_src>

<mosaic_0001>
module attributes {stable_mosaic.version = 11 : i64} {
  func.func @_fused_transformer_kernel(%arg0: i32, %arg1: i32, %arg2: memref<2x8x32xf32, #tpu.memory_space<vmem>>, %arg3: memref<1x8x32xf32, #tpu.memory_space<vmem>>, %arg4: memref<2x1x8xf32, #tpu.memory_space<vmem>>, %arg5: memref<1x32x96xf32, #tpu.memory_space<vmem>>, %arg6: memref<1x1x96xf32, #tpu.memory_space<vmem>>, %arg7: memref<1x32x32xf32, #tpu.memory_space<vmem>>, %arg8: memref<1x1x32xf32, #tpu.memory_space<vmem>>, %arg9: memref<1x1x32xf32, #tpu.memory_space<vmem>>, %arg10: memref<1x1x32xf32, #tpu.memory_space<vmem>>, %arg11: memref<1x32x64xf32, #tpu.memory_space<vmem>>, %arg12: memref<1x1x64xf32, #tpu.memory_space<vmem>>, %arg13: memref<1x64x32xf32, #tpu.memory_space<vmem>>, %arg14: memref<1x1x32xf32, #tpu.memory_space<vmem>>, %arg15: memref<1x1x32xf32, #tpu.memory_space<vmem>>, %arg16: memref<1x1x32xf32, #tpu.memory_space<vmem>>, %arg17: memref<2x8x32xf32, #tpu.memory_space<vmem>>, %arg18: memref<16x32xf32, #tpu.memory_space<vmem>>) attributes {dimension_semantics = [#tpu.dimension_semantics<parallel>, #tpu.dimension_semantics<arbitrary>], iteration_bounds = array<i64: 1, 2>, scalar_prefetch = 0 : i64, scratch_operands = 1 : i64, tpu.core_type = #tpu.core_type<tc>, window_params = [{transform_indices = @transform_0, window_bounds = array<i64: 2, 8, 32>}, {pipeline_mode = #tpu.pipeline_mode<synchronous>, transform_indices = @transform_1, window_bounds = array<i64: 1, 8, 32>}, {transform_indices = @transform_2, window_bounds = array<i64: 2, 1, 8>}, {transform_indices = @transform_3, window_bounds = array<i64: 1, 32, 96>}, {transform_indices = @transform_4, window_bounds = array<i64: 1, 1, 96>}, {transform_indices = @transform_5, window_bounds = array<i64: 1, 32, 32>}, {transform_indices = @transform_6, window_bounds = array<i64: 1, 1, 32>}, {transform_indices = @transform_7, window_bounds = array<i64: 1, 1, 32>}, {transform_indices = @transform_8, window_bounds = array<i64: 1, 1, 32>}, {transform_indices = @transform_9, window_bounds = array<i64: 1, 32, 64>}, {transform_indices = @transform_10, window_bounds = array<i64: 1, 1, 64>}, {transform_indices = @transform_11, window_bounds = array<i64: 1, 64, 32>}, {transform_indices = @transform_12, window_bounds = array<i64: 1, 1, 32>}, {transform_indices = @transform_13, window_bounds = array<i64: 1, 1, 32>}, {transform_indices = @transform_14, window_bounds = array<i64: 1, 1, 32>}, {transform_indices = @transform_15, window_bounds = array<i64: 2, 8, 32>}]} {
    %c0_i32 = arith.constant 0 : i32
    %0 = arith.cmpi eq, %arg1, %c0_i32 : i32
    %1 = arith.extui %0 : i1 to i32
    %c0_i32_0 = arith.constant 0 : i32
    %2 = arith.cmpi ne, %1, %c0_i32_0 : i32
    scf.if %2 {
      %c0_62 = arith.constant 0 : index
      %c0_63 = arith.constant 0 : index
      %c0_64 = arith.constant 0 : index
      %154 = vector.load %arg2[%c0_62, %c0_63, %c0_64] : memref<2x8x32xf32, #tpu.memory_space<vmem>>, vector<2x8x32xf32>
      %c0_65 = arith.constant 0 : index
      %c0_66 = arith.constant 0 : index
      %c0_67 = arith.constant 0 : index
      %155 = vector.load %arg3[%c0_65, %c0_66, %c0_67] : memref<1x8x32xf32, #tpu.memory_space<vmem>>, vector<1x8x32xf32>
      %156 = vector.shape_cast %155 : vector<1x8x32xf32> to vector<8x32xf32>
      %157 = vector.shape_cast %156 : vector<8x32xf32> to vector<1x8x32xf32>
      %158 = vector.broadcast %157 : vector<1x8x32xf32> to vector<2x8x32xf32>
      %159 = arith.addf %154, %158 : vector<2x8x32xf32>
      %160 = vector.shape_cast %159 : vector<2x8x32xf32> to vector<16x32xf32>
      %c0_68 = arith.constant 0 : index
      %c0_69 = arith.constant 0 : index
      %161 = vector.load %arg18[%c0_68, %c0_69] : memref<16x32xf32, #tpu.memory_space<vmem>>, vector<16x32xf32>
      tpu.vector_store %arg18[%c0_68, %c0_69], %160 {strides = array<i32>} : memref<16x32xf32, #tpu.memory_space<vmem>>, vector<16x32xf32>,
    } else {
    }
    %c0 = arith.constant 0 : index
    %c0_1 = arith.constant 0 : index
    %3 = vector.load %arg18[%c0, %c0_1] : memref<16x32xf32, #tpu.memory_space<vmem>>, vector<16x32xf32>
    %c0_2 = arith.constant 0 : index
    %c0_3 = arith.constant 0 : index
    %c0_4 = arith.constant 0 : index
    %4 = vector.load %arg5[%c0_2, %c0_3, %c0_4] : memref<1x32x96xf32, #tpu.memory_space<vmem>>, vector<1x32x96xf32>
    %5 = vector.shape_cast %4 : vector<1x32x96xf32> to vector<32x96xf32>
    %cst = arith.constant dense<0.000000e+00> : vector<16x96xf32>
    %6 = tpu.matmul %3, %5, %cst {dimension_numbers = #tpu.dot_dimension_numbers<[1], [0], [0], [1], [0, 0, 1, 1], [], []>} : vector<16x32xf32>, vector<32x96xf32>, vector<16x96xf32> -> vector<16x96xf32>
    %c0_5 = arith.constant 0 : index
    %c0_6 = arith.constant 0 : index
    %c0_7 = arith.constant 0 : index
    %7 = vector.load %arg6[%c0_5, %c0_6, %c0_7] : memref<1x1x96xf32, #tpu.memory_space<vmem>>, vector<1x1x96xf32>
    %8 = vector.shape_cast %7 : vector<1x1x96xf32> to vector<1x96xf32>
    %9 = vector.broadcast %8 : vector<1x96xf32> to vector<16x96xf32>
    %10 = arith.addf %6, %9 : vector<16x96xf32>
    %11 = vector.extract_strided_slice %10 {offsets = [0, 0], sizes = [16, 32], strides = [1, 1]} : vector<16x96xf32> to vector<16x32xf32>
    %12 = vector.extract_strided_slice %11 {offsets = [0, 0], sizes = [16, 8], strides = [1, 1]} : vector<16x32xf32> to vector<16x8xf32>
    %13 = vector.extract_strided_slice %11 {offsets = [0, 8], sizes = [16, 8], strides = [1, 1]} : vector<16x32xf32> to vector<16x8xf32>
    %14 = vector.extract_strided_slice %11 {offsets = [0, 16], sizes = [16, 8], strides = [1, 1]} : vector<16x32xf32> to vector<16x8xf32>
    %15 = vector.extract_strided_slice %11 {offsets = [0, 24], sizes = [16, 8], strides = [1, 1]} : vector<16x32xf32> to vector<16x8xf32>
    %16 = vector.shape_cast %12 : vector<16x8xf32> to vector<1x16x8xf32>
    %17 = vector.shape_cast %13 : vector<16x8xf32> to vector<1x16x8xf32>
    %18 = vector.shape_cast %14 : vector<16x8xf32> to vector<1x16x8xf32>
    %19 = vector.shape_cast %15 : vector<16x8xf32> to vector<1x16x8xf32>
    %20 = tpu.concatenate %16, %17, %18, %19 in 0 : vector<1x16x8xf32>, vector<1x16x8xf32>, vector<1x16x8xf32>, vector<1x16x8xf32> -> vector<4x16x8xf32>
    %21 = vector.shape_cast %20 : vector<4x16x8xf32> to vector<8x8x8xf32>
    %22 = vector.extract_strided_slice %10 {offsets = [0, 32], sizes = [16, 32], strides = [1, 1]} : vector<16x96xf32> to vector<16x32xf32>
    %23 = vector.extract_strided_slice %22 {offsets = [0, 0], sizes = [16, 8], strides = [1, 1]} : vector<16x32xf32> to vector<16x8xf32>
    %24 = vector.extract_strided_slice %22 {offsets = [0, 8], sizes = [16, 8], strides = [1, 1]} : vector<16x32xf32> to vector<16x8xf32>
    %25 = vector.extract_strided_slice %22 {offsets = [0, 16], sizes = [16, 8], strides = [1, 1]} : vector<16x32xf32> to vector<16x8xf32>
    %26 = vector.extract_strided_slice %22 {offsets = [0, 24], sizes = [16, 8], strides = [1, 1]} : vector<16x32xf32> to vector<16x8xf32>
    %27 = vector.shape_cast %23 : vector<16x8xf32> to vector<1x16x8xf32>
    %28 = vector.shape_cast %24 : vector<16x8xf32> to vector<1x16x8xf32>
    %29 = vector.shape_cast %25 : vector<16x8xf32> to vector<1x16x8xf32>
    %30 = vector.shape_cast %26 : vector<16x8xf32> to vector<1x16x8xf32>
    %31 = tpu.concatenate %27, %28, %29, %30 in 0 : vector<1x16x8xf32>, vector<1x16x8xf32>, vector<1x16x8xf32>, vector<1x16x8xf32> -> vector<4x16x8xf32>
    %32 = vector.shape_cast %31 : vector<4x16x8xf32> to vector<8x8x8xf32>
    %33 = vector.extract_strided_slice %10 {offsets = [0, 64], sizes = [16, 32], strides = [1, 1]} : vector<16x96xf32> to vector<16x32xf32>
    %34 = vector.extract_strided_slice %33 {offsets = [0, 0], sizes = [16, 8], strides = [1, 1]} : vector<16x32xf32> to vector<16x8xf32>
    %35 = vector.extract_strided_slice %33 {offsets = [0, 8], sizes = [16, 8], strides = [1, 1]} : vector<16x32xf32> to vector<16x8xf32>
    %36 = vector.extract_strided_slice %33 {offsets = [0, 16], sizes = [16, 8], strides = [1, 1]} : vector<16x32xf32> to vector<16x8xf32>
    %37 = vector.extract_strided_slice %33 {offsets = [0, 24], sizes = [16, 8], strides = [1, 1]} : vector<16x32xf32> to vector<16x8xf32>
    %38 = vector.shape_cast %34 : vector<16x8xf32> to vector<1x16x8xf32>
    %39 = vector.shape_cast %35 : vector<16x8xf32> to vector<1x16x8xf32>
    %40 = vector.shape_cast %36 : vector<16x8xf32> to vector<1x16x8xf32>
    %41 = vector.shape_cast %37 : vector<16x8xf32> to vector<1x16x8xf32>
    %42 = tpu.concatenate %38, %39, %40, %41 in 0 : vector<1x16x8xf32>, vector<1x16x8xf32>, vector<1x16x8xf32>, vector<1x16x8xf32> -> vector<4x16x8xf32>
    %43 = vector.shape_cast %42 : vector<4x16x8xf32> to vector<8x8x8xf32>
    "tpu.trace_start"() <{level = 10 : i32, message = "gqd,gkd->gqk"}> : () -> ()
    %cst_8 = arith.constant dense<0.000000e+00> : vector<8x8x8xf32>
    %44 = tpu.matmul %21, %32, %cst_8 {dimension_numbers = #tpu.dot_dimension_numbers<[2], [2], [1], [1], [0, 0, 0, 1, 1, 1], [0], [0]>} : vector<8x8x8xf32>, vector<8x8x8xf32>, vector<8x8x8xf32> -> vector<8x8x8xf32>
    "tpu.trace_stop"() : () -> ()
    %c0_9 = arith.constant 0 : index
    %c0_10 = arith.constant 0 : index
    %c0_11 = arith.constant 0 : index
    %45 = vector.load %arg4[%c0_9, %c0_10, %c0_11] : memref<2x1x8xf32, #tpu.memory_space<vmem>>, vector<2x1x8xf32>
    %46 = vector.shape_cast %45 : vector<2x1x8xf32> to vector<1x2x1x8xf32>
    %47 = vector.shape_cast %46 : vector<1x2x1x8xf32> to vector<1x2x1x8xf32>
    %48 = vector.broadcast %47 : vector<1x2x1x8xf32> to vector<4x2x1x8xf32>
    %49 = vector.shape_cast %48 : vector<4x2x1x8xf32> to vector<8x1x8xf32>
    %50 = vector.broadcast %49 : vector<8x1x8xf32> to vector<8x8x8xf32>
    %51 = arith.addf %44, %50 : vector<8x8x8xf32>
    %cst_12 = arith.constant dense<0xFF800000> : vector<8x8xf32>
    %52 = vector.multi_reduction <maximumf>, %51, %cst_12 [2] : vector<8x8x8xf32> to vector<8x8xf32>
    %53 = vector.shape_cast %52 : vector<8x8xf32> to vector<8x8x1xf32>
    %54 = vector.broadcast %53 : vector<8x8x1xf32> to vector<8x8x8xf32>
    %55 = arith.subf %51, %54 : vector<8x8x8xf32>
    %56 = math.exp %55 : vector<8x8x8xf32>
    %cst_13 = arith.constant dense<0.000000e+00> : vector<8x8xf32>
    %57 = vector.multi_reduction <add>, %56, %cst_13 [2] : vector<8x8x8xf32> to vector<8x8xf32>
    %58 = vector.shape_cast %57 : vector<8x8xf32> to vector<8x8x1xf32>
    %59 = tpu.reciprocal %58 {approx = true} : vector<8x8x1xf32> -> vector<8x8x1xf32>
    %60 = vector.broadcast %59 : vector<8x8x1xf32> to vector<8x8x8xf32>
    %61 = arith.mulf %56, %60 : vector<8x8x8xf32>
    "tpu.trace_start"() <{level = 10 : i32, message = "gqk,gkd->gqd"}> : () -> ()
    %cst_14 = arith.constant dense<0.000000e+00> : vector<8x8x8xf32>
    %62 = tpu.matmul %61, %43, %cst_14 {dimension_numbers = #tpu.dot_dimension_numbers<[2], [1], [1], [2], [0, 0, 0, 1, 1, 2], [0], [0]>} : vector<8x8x8xf32>, vector<8x8x8xf32>, vector<8x8x8xf32> -> vector<8x8x8xf32>
    "tpu.trace_stop"() : () -> ()
    %63 = vector.shape_cast %62 : vector<8x8x8xf32> to vector<4x16x8xf32>
    %64 = vector.extract_strided_slice %63 {offsets = [0, 0, 0], sizes = [1, 16, 8], strides = [1, 1, 1]} : vector<4x16x8xf32> to vector<1x16x8xf32>
    %65 = vector.shape_cast %64 : vector<1x16x8xf32> to vector<16x8xf32>
    %66 = vector.extract_strided_slice %63 {offsets = [1, 0, 0], sizes = [1, 16, 8], strides = [1, 1, 1]} : vector<4x16x8xf32> to vector<1x16x8xf32>
    %67 = vector.shape_cast %66 : vector<1x16x8xf32> to vector<16x8xf32>
    %68 = vector.extract_strided_slice %63 {offsets = [2, 0, 0], sizes = [1, 16, 8], strides = [1, 1, 1]} : vector<4x16x8xf32> to vector<1x16x8xf32>
    %69 = vector.shape_cast %68 : vector<1x16x8xf32> to vector<16x8xf32>
    %70 = vector.extract_strided_slice %63 {offsets = [3, 0, 0], sizes = [1, 16, 8], strides = [1, 1, 1]} : vector<4x16x8xf32> to vector<1x16x8xf32>
    %71 = vector.shape_cast %70 : vector<1x16x8xf32> to vector<16x8xf32>
    %72 = tpu.concatenate %65, %67, %69, %71 in 1 : vector<16x8xf32>, vector<16x8xf32>, vector<16x8xf32>, vector<16x8xf32> -> vector<16x32xf32>
    %c0_15 = arith.constant 0 : index
    %c0_16 = arith.constant 0 : index
    %c0_17 = arith.constant 0 : index
    %73 = vector.load %arg7[%c0_15, %c0_16, %c0_17] : memref<1x32x32xf32, #tpu.memory_space<vmem>>, vector<1x32x32xf32>
    %74 = vector.shape_cast %73 : vector<1x32x32xf32> to vector<32x32xf32>
    %cst_18 = arith.constant dense<0.000000e+00> : vector<16x32xf32>
    %75 = tpu.matmul %72, %74, %cst_18 {dimension_numbers = #tpu.dot_dimension_numbers<[1], [0], [0], [1], [0, 0, 1, 1], [], []>} : vector<16x32xf32>, vector<32x32xf32>, vector<16x32xf32> -> vector<16x32xf32>
    %c0_19 = arith.constant 0 : index
    %c0_20 = arith.constant 0 : index
    %c0_21 = arith.constant 0 : index
    %76 = vector.load %arg8[%c0_19, %c0_20, %c0_21] : memref<1x1x32xf32, #tpu.memory_space<vmem>>, vector<1x1x32xf32>
    %77 = vector.shape_cast %76 : vector<1x1x32xf32> to vector<1x32xf32>
    %78 = vector.broadcast %77 : vector<1x32xf32> to vector<16x32xf32>
    %79 = arith.addf %75, %78 : vector<16x32xf32>
    %80 = arith.addf %3, %79 : vector<16x32xf32>
    %cst_22 = arith.constant dense<0.000000e+00> : vector<16xf32>
    %81 = vector.multi_reduction <add>, %80, %cst_22 [1] : vector<16x32xf32> to vector<16xf32>
    %82 = vector.shape_cast %81 : vector<16xf32> to vector<16x1xf32>
    %cst_23 = arith.constant 3.200000e+01 : f32
    %83 = vector.broadcast %cst_23 : f32 to vector<16x1xf32>
    %84 = arith.divf %82, %83 : vector<16x1xf32>
    %85 = vector.broadcast %84 : vector<16x1xf32> to vector<16x32xf32>
    %86 = arith.subf %80, %85 : vector<16x32xf32>
    %87 = arith.mulf %86, %86 : vector<16x32xf32>
    %cst_24 = arith.constant dense<0.000000e+00> : vector<16xf32>
    %88 = vector.multi_reduction <add>, %87, %cst_24 [1] : vector<16x32xf32> to vector<16xf32>
    %89 = vector.shape_cast %88 : vector<16xf32> to vector<16x1xf32>
    %cst_25 = arith.constant 3.200000e+01 : f32
    %90 = vector.broadcast %cst_25 : f32 to vector<16x1xf32>
    %91 = arith.divf %89, %90 : vector<16x1xf32>
    %92 = vector.broadcast %84 : vector<16x1xf32> to vector<16x32xf32>
    %93 = arith.subf %80, %92 : vector<16x32xf32>
    %cst_26 = arith.constant 9.99999974E-6 : f32
    %94 = vector.broadcast %cst_26 : f32 to vector<16x1xf32>
    %95 = arith.addf %91, %94 : vector<16x1xf32>
    %96 = math.rsqrt %95 : vector<16x1xf32>
    %97 = vector.broadcast %96 : vector<16x1xf32> to vector<16x32xf32>
    %98 = arith.mulf %93, %97 : vector<16x32xf32>
    %c0_27 = arith.constant 0 : index
    %c0_28 = arith.constant 0 : index
    %c0_29 = arith.constant 0 : index
    %99 = vector.load %arg9[%c0_27, %c0_28, %c0_29] : memref<1x1x32xf32, #tpu.memory_space<vmem>>, vector<1x1x32xf32>
    %100 = vector.shape_cast %99 : vector<1x1x32xf32> to vector<1x32xf32>
    %101 = vector.broadcast %100 : vector<1x32xf32> to vector<16x32xf32>
    %102 = arith.mulf %98, %101 : vector<16x32xf32>
    %c0_30 = arith.constant 0 : index
    %c0_31 = arith.constant 0 : index
    %c0_32 = arith.constant 0 : index
    %103 = vector.load %arg10[%c0_30, %c0_31, %c0_32] : memref<1x1x32xf32, #tpu.memory_space<vmem>>, vector<1x1x32xf32>
    %104 = vector.shape_cast %103 : vector<1x1x32xf32> to vector<1x32xf32>
    %105 = vector.broadcast %104 : vector<1x32xf32> to vector<16x32xf32>
    %106 = arith.addf %102, %105 : vector<16x32xf32>
    %c0_33 = arith.constant 0 : index
    %c0_34 = arith.constant 0 : index
    %c0_35 = arith.constant 0 : index
    %107 = vector.load %arg11[%c0_33, %c0_34, %c0_35] : memref<1x32x64xf32, #tpu.memory_space<vmem>>, vector<1x32x64xf32>
    %108 = vector.shape_cast %107 : vector<1x32x64xf32> to vector<32x64xf32>
    %cst_36 = arith.constant dense<0.000000e+00> : vector<16x64xf32>
    %109 = tpu.matmul %106, %108, %cst_36 {dimension_numbers = #tpu.dot_dimension_numbers<[1], [0], [0], [1], [0, 0, 1, 1], [], []>} : vector<16x32xf32>, vector<32x64xf32>, vector<16x64xf32> -> vector<16x64xf32>
    %c0_37 = arith.constant 0 : index
    %c0_38 = arith.constant 0 : index
    %c0_39 = arith.constant 0 : index
    %110 = vector.load %arg12[%c0_37, %c0_38, %c0_39] : memref<1x1x64xf32, #tpu.memory_space<vmem>>, vector<1x1x64xf32>
    %111 = vector.shape_cast %110 : vector<1x1x64xf32> to vector<1x64xf32>
    %112 = vector.broadcast %111 : vector<1x64xf32> to vector<16x64xf32>
    %113 = arith.addf %109, %112 : vector<16x64xf32>
    %cst_40 = arith.constant 0.000000e+00 : f32
    %114 = vector.broadcast %cst_40 : f32 to vector<16x64xf32>
    %115 = arith.maximumf %113, %114 : vector<16x64xf32>
    %c0_41 = arith.constant 0 : index
    %c0_42 = arith.constant 0 : index
    %c0_43 = arith.constant 0 : index
    %116 = vector.load %arg13[%c0_41, %c0_42, %c0_43] : memref<1x64x32xf32, #tpu.memory_space<vmem>>, vector<1x64x32xf32>
    %117 = vector.shape_cast %116 : vector<1x64x32xf32> to vector<64x32xf32>
    %cst_44 = arith.constant dense<0.000000e+00> : vector<16x32xf32>
    %118 = tpu.matmul %115, %117, %cst_44 {dimension_numbers = #tpu.dot_dimension_numbers<[1], [0], [0], [1], [0, 0, 1, 1], [], []>} : vector<16x64xf32>, vector<64x32xf32>, vector<16x32xf32> -> vector<16x32xf32>
    %c0_45 = arith.constant 0 : index
    %c0_46 = arith.constant 0 : index
    %c0_47 = arith.constant 0 : index
    %119 = vector.load %arg14[%c0_45, %c0_46, %c0_47] : memref<1x1x32xf32, #tpu.memory_space<vmem>>, vector<1x1x32xf32>
    %120 = vector.shape_cast %119 : vector<1x1x32xf32> to vector<1x32xf32>
    %121 = vector.broadcast %120 : vector<1x32xf32> to vector<16x32xf32>
    %122 = arith.addf %118, %121 : vector<16x32xf32>
    %123 = arith.addf %106, %122 : vector<16x32xf32>
    %cst_48 = arith.constant dense<0.000000e+00> : vector<16xf32>
    %124 = vector.multi_reduction <add>, %123, %cst_48 [1] : vector<16x32xf32> to vector<16xf32>
    %125 = vector.shape_cast %124 : vector<16xf32> to vector<16x1xf32>
    %cst_49 = arith.constant 3.200000e+01 : f32
    %126 = vector.broadcast %cst_49 : f32 to vector<16x1xf32>
    %127 = arith.divf %125, %126 : vector<16x1xf32>
    %128 = vector.broadcast %127 : vector<16x1xf32> to vector<16x32xf32>
    %129 = arith.subf %123, %128 : vector<16x32xf32>
    %130 = arith.mulf %129, %129 : vector<16x32xf32>
    %cst_50 = arith.constant dense<0.000000e+00> : vector<16xf32>
    %131 = vector.multi_reduction <add>, %130, %cst_50 [1] : vector<16x32xf32> to vector<16xf32>
    %132 = vector.shape_cast %131 : vector<16xf32> to vector<16x1xf32>
    %cst_51 = arith.constant 3.200000e+01 : f32
    %133 = vector.broadcast %cst_51 : f32 to vector<16x1xf32>
    %134 = arith.divf %132, %133 : vector<16x1xf32>
    %135 = vector.broadcast %127 : vector<16x1xf32> to vector<16x32xf32>
    %136 = arith.subf %123, %135 : vector<16x32xf32>
    %cst_52 = arith.constant 9.99999974E-6 : f32
    %137 = vector.broadcast %cst_52 : f32 to vector<16x1xf32>
    %138 = arith.addf %134, %137 : vector<16x1xf32>
    %139 = math.rsqrt %138 : vector<16x1xf32>
    %140 = vector.broadcast %139 : vector<16x1xf32> to vector<16x32xf32>
    %141 = arith.mulf %136, %140 : vector<16x32xf32>
    %c0_53 = arith.constant 0 : index
    %c0_54 = arith.constant 0 : index
    %c0_55 = arith.constant 0 : index
    %142 = vector.load %arg15[%c0_53, %c0_54, %c0_55] : memref<1x1x32xf32, #tpu.memory_space<vmem>>, vector<1x1x32xf32>
    %143 = vector.shape_cast %142 : vector<1x1x32xf32> to vector<1x32xf32>
    %144 = vector.broadcast %143 : vector<1x32xf32> to vector<16x32xf32>
    %145 = arith.mulf %141, %144 : vector<16x32xf32>
    %c0_56 = arith.constant 0 : index
    %c0_57 = arith.constant 0 : index
    %c0_58 = arith.constant 0 : index
    %146 = vector.load %arg16[%c0_56, %c0_57, %c0_58] : memref<1x1x32xf32, #tpu.memory_space<vmem>>, vector<1x1x32xf32>
    %147 = vector.shape_cast %146 : vector<1x1x32xf32> to vector<1x32xf32>
    %148 = vector.broadcast %147 : vector<1x32xf32> to vector<16x32xf32>
    %149 = arith.addf %145, %148 : vector<16x32xf32>
    %c0_59 = arith.constant 0 : index
    %c0_60 = arith.constant 0 : index
    %150 = vector.load %arg18[%c0_59, %c0_60] : memref<16x32xf32, #tpu.memory_space<vmem>>, vector<16x32xf32>
    tpu.vector_store %arg18[%c0_59, %c0_60], %149 {strides = array<i32>} : memref<16x32xf32, #tpu.memory_space<vmem>>, vector<16x32xf32>,
    %c1_i32 = arith.constant 1 : i32
    %151 = arith.cmpi eq, %arg1, %c1_i32 : i32
    %152 = arith.extui %151 : i1 to i32
    %c0_i32_61 = arith.constant 0 : i32
    %153 = arith.cmpi ne, %152, %c0_i32_61 : i32
    scf.if %153 {
      %154 = vector.shape_cast %149 : vector<16x32xf32> to vector<2x8x32xf32>
      %c0_62 = arith.constant 0 : index
      %c0_63 = arith.constant 0 : index
      %c0_64 = arith.constant 0 : index
      %155 = vector.load %arg17[%c0_62, %c0_63, %c0_64] : memref<2x8x32xf32, #tpu.memory_space<vmem>>, vector<2x8x32xf32>
      tpu.vector_store %arg17[%c0_62, %c0_63, %c0_64], %154 {strides = array<i32>} : memref<2x8x32xf32, #tpu.memory_space<vmem>>, vector<2x8x32xf32>,
    } else {
    }
    return
  }
  func.func @transform_0(%arg0: i32, %arg1: i32) -> (i32, i32, i32) {
    %c0_i32 = arith.constant 0 : i32
    %c0_i32_0 = arith.constant 0 : i32
    %c0_i32_1 = arith.constant 0 : i32
    return %arg0, %c0_i32, %c0_i32_0 : i32, i32, i32
  }
  func.func @transform_1(%arg0: i32, %arg1: i32) -> (i32, i32, i32) {
    %c0_i32 = arith.constant 0 : i32
    %c0_i32_0 = arith.constant 0 : i32
    %c0_i32_1 = arith.constant 0 : i32
    %c0_i32_2 = arith.constant 0 : i32
    return %c0_i32, %c0_i32_0, %c0_i32_1 : i32, i32, i32
  }
  func.func @transform_2(%arg0: i32, %arg1: i32) -> (i32, i32, i32) {
    %c0_i32 = arith.constant 0 : i32
    %c0_i32_0 = arith.constant 0 : i32
    %c0_i32_1 = arith.constant 0 : i32
    return %arg0, %c0_i32, %c0_i32_0 : i32, i32, i32
  }
  func.func @transform_3(%arg0: i32, %arg1: i32) -> (i32, i32, i32) {
    %c0_i32 = arith.constant 0 : i32
    %c0_i32_0 = arith.constant 0 : i32
    %c0_i32_1 = arith.constant 0 : i32
    return %arg1, %c0_i32, %c0_i32_0 : i32, i32, i32
  }
  func.func @transform_4(%arg0: i32, %arg1: i32) -> (i32, i32, i32) {
    %c0_i32 = arith.constant 0 : i32
    %c0_i32_0 = arith.constant 0 : i32
    %c0_i32_1 = arith.constant 0 : i32
    return %arg1, %c0_i32, %c0_i32_0 : i32, i32, i32
  }
  func.func @transform_5(%arg0: i32, %arg1: i32) -> (i32, i32, i32) {
    %c0_i32 = arith.constant 0 : i32
    %c0_i32_0 = arith.constant 0 : i32
    %c0_i32_1 = arith.constant 0 : i32
    return %arg1, %c0_i32, %c0_i32_0 : i32, i32, i32
  }
  func.func @transform_6(%arg0: i32, %arg1: i32) -> (i32, i32, i32) {
    %c0_i32 = arith.constant 0 : i32
    %c0_i32_0 = arith.constant 0 : i32
    %c0_i32_1 = arith.constant 0 : i32
    return %arg1, %c0_i32, %c0_i32_0 : i32, i32, i32
  }
  func.func @transform_7(%arg0: i32, %arg1: i32) -> (i32, i32, i32) {
    %c0_i32 = arith.constant 0 : i32
    %c0_i32_0 = arith.constant 0 : i32
    %c0_i32_1 = arith.constant 0 : i32
    return %arg1, %c0_i32, %c0_i32_0 : i32, i32, i32
  }
  func.func @transform_8(%arg0: i32, %arg1: i32) -> (i32, i32, i32) {
    %c0_i32 = arith.constant 0 : i32
    %c0_i32_0 = arith.constant 0 : i32
    %c0_i32_1 = arith.constant 0 : i32
    return %arg1, %c0_i32, %c0_i32_0 : i32, i32, i32
  }
  func.func @transform_9(%arg0: i32, %arg1: i32) -> (i32, i32, i32) {
    %c0_i32 = arith.constant 0 : i32
    %c0_i32_0 = arith.constant 0 : i32
    %c0_i32_1 = arith.constant 0 : i32
    return %arg1, %c0_i32, %c0_i32_0 : i32, i32, i32
  }
  func.func @transform_10(%arg0: i32, %arg1: i32) -> (i32, i32, i32) {
    %c0_i32 = arith.constant 0 : i32
    %c0_i32_0 = arith.constant 0 : i32
    %c0_i32_1 = arith.constant 0 : i32
    return %arg1, %c0_i32, %c0_i32_0 : i32, i32, i32
  }
  func.func @transform_11(%arg0: i32, %arg1: i32) -> (i32, i32, i32) {
    %c0_i32 = arith.constant 0 : i32
    %c0_i32_0 = arith.constant 0 : i32
    %c0_i32_1 = arith.constant 0 : i32
    return %arg1, %c0_i32, %c0_i32_0 : i32, i32, i32
  }
  func.func @transform_12(%arg0: i32, %arg1: i32) -> (i32, i32, i32) {
    %c0_i32 = arith.constant 0 : i32
    %c0_i32_0 = arith.constant 0 : i32
    %c0_i32_1 = arith.constant 0 : i32
    return %arg1, %c0_i32, %c0_i32_0 : i32, i32, i32
  }
  func.func @transform_13(%arg0: i32, %arg1: i32) -> (i32, i32, i32) {
    %c0_i32 = arith.constant 0 : i32
    %c0_i32_0 = arith.constant 0 : i32
    %c0_i32_1 = arith.constant 0 : i32
    return %arg1, %c0_i32, %c0_i32_0 : i32, i32, i32
  }
  func.func @transform_14(%arg0: i32, %arg1: i32) -> (i32, i32, i32) {
    %c0_i32 = arith.constant 0 : i32
    %c0_i32_0 = arith.constant 0 : i32
    %c0_i32_1 = arith.constant 0 : i32
    return %arg1, %c0_i32, %c0_i32_0 : i32, i32, i32
  }
  func.func @transform_15(%arg0: i32, %arg1: i32) -> (i32, i32, i32) {
    %c0_i32 = arith.constant 0 : i32
    %c0_i32_0 = arith.constant 0 : i32
    %c0_i32_1 = arith.constant 0 : i32
    return %arg0, %c0_i32, %c0_i32_0 : i32, i32, i32
  }
}

</mosaic_0001>

<llo_original>
// kernel: tpu_custom_call.1
$region0: #{tpu_custom_call.1}
  #allocation0 [shape = 'u32[]', space=smem, size = 0x4, offset = 0x4, fixed_abs, tag = 'smem constant byte address 0x4 - core index']
  #allocation1 [shape = 'u32[144,128]{1,0:T(1,128)}', space=vmem, size = 0x12000, scoped, tag = 'internal scratch']
  #allocation2 [shape = 'f32[16,32]{1,0:T(8,128)}', space=vmem, size = 0x2000, scoped, tag = 'scratch operand']
  %s0 = inlined_call_operand.hbm [shape: f32[2,8,32], index: 0, kind: input, shape index: {}]
  %s1 = inlined_call_operand.hbm [shape: f32[1,8,32], index: 1, kind: input, shape index: {}]
  %s2 = inlined_call_operand.vmem [shape: f32[2,1,8], index: 2, kind: input, shape index: {}]
  %s3 = inlined_call_operand.vmem [shape: f32[2,32,96], index: 3, kind: input, shape index: {}]
  %s4 = inlined_call_operand.vmem [shape: f32[2,1,96], index: 4, kind: input, shape index: {}]
  %s5 = inlined_call_operand.vmem [shape: f32[2,32,32], index: 5, kind: input, shape index: {}]
  %s6 = inlined_call_operand.vmem [shape: f32[2,1,32], index: 6, kind: input, shape index: {}]
  %s7 = inlined_call_operand.vmem [shape: f32[2,1,32], index: 7, kind: input, shape index: {}]
  %s8 = inlined_call_operand.vmem [shape: f32[2,1,32], index: 8, kind: input, shape index: {}]
  %s9 = inlined_call_operand.vmem [shape: f32[2,32,64], index: 9, kind: input, shape index: {}]
  %s10 = inlined_call_operand.vmem [shape: f32[2,1,64], index: 10, kind: input, shape index: {}]
  %s11 = inlined_call_operand.vmem [shape: f32[2,64,32], index: 11, kind: input, shape index: {}]
  %s12 = inlined_call_operand.vmem [shape: f32[2,1,32], index: 12, kind: input, shape index: {}]
  %s13 = inlined_call_operand.vmem [shape: f32[2,1,32], index: 13, kind: input, shape index: {}]
  %s14 = inlined_call_operand.vmem [shape: f32[2,1,32], index: 14, kind: input, shape index: {}]
  %s15 = inlined_call_operand.hbm [shape: f32[2,8,32], index: 15, kind: output, shape index: {}]
  %s16 = sld [smem:[#allocation0]]
  $region109: #{tpu_custom_call.1} parent=0
    _
  %s18 = ssub.s32 1, %s16
  %s19 = scalar_select 0, %s18, %s16
  $region1: #{tpu_custom_call.1} parent=0
    #allocation3 [shape = 'u8[8192]{0}', space=vmem, size = 0x2000, scoped, tag = 'input window, operand 0, single buffered']
    #allocation4 [shape = 's32[2]{0}', space=sflag, size = 0x8, scoped, tag = 'scoped memory for tpu_custom_call.1']
    #allocation5 [shape = 's32[2]{0}', space=sflag, size = 0x8, scoped, tag = 'scoped memory for tpu_custom_call.1']
    #allocation6 [shape = 'u8[4096]{0}', space=vmem, size = 0x1000, scoped, tag = 'input window, operand 1, single buffered']
    #allocation7 [shape = 's32[1]{0}', space=sflag, size = 0x4, scoped, tag = 'scoped memory for tpu_custom_call.1']
    #allocation8 [shape = 'u8[8192]{0}', space=vmem, size = 0x2000, scoped, tag = 'output window, operand 0, single buffered']
    %20 = vsyncpa [#allocation4], 0
    %21 = vsyncpa [#allocation7], 0
    %22 = vsyncpa [#allocation5], 0
    loop: start=0, step=1, limit=4
    $region2: #{tpu_custom_call.1} parent=1 // loop_pre_header
      _
    $region3: #{tpu_custom_call.1} parent=1 // loop_header
      %s24 = sphi 0, %s28
      %p25 = scmp.ge.s32.totalorder %s24, 4
      %s31 = sphi 0, %s43
      %s32 = sphi 0, %s39
      %s33 = sphi 0, %s31
      %s34 = sphi 0, %s32
      %s35 = sphi 0, %s33
      %s36 = sphi 0, %s34
      %s46 = sphi 0, %s48
      %s49 = sphi 0, %s46
      %s50 = sphi 0, %s49
      %s66 = sphi 0, %s50
      %s70 = sphi 0, %s70
      %s72 = sphi 0, %s70
      %s73 = sphi 0, %s72
      %s87 = sphi 0, %s73
      %s93 = sphi 0, %s95
      %s96 = sphi 0, %s93
      %s97 = sphi 0, %s96
      %s113 = sphi 0, %s97
      %s119 = sphi 0, %s121
      %s122 = sphi 0, %s119
      %s123 = sphi 0, %s122
      %s139 = sphi 0, %s123
      %s145 = sphi 0, %s147
      %s148 = sphi 0, %s145
      %s149 = sphi 0, %s148
      %s165 = sphi 0, %s149
      %s171 = sphi 0, %s173
      %s174 = sphi 0, %s171
      %s175 = sphi 0, %s174
      %s191 = sphi 0, %s175
      %s197 = sphi 0, %s199
      %s200 = sphi 0, %s197
      %s201 = sphi 0, %s200
      %s217 = sphi 0, %s201
      %s223 = sphi 0, %s225
      %s226 = sphi 0, %s223
      %s227 = sphi 0, %s226
      %s243 = sphi 0, %s227
      %s249 = sphi 0, %s251
      %s252 = sphi 0, %s249
      %s253 = sphi 0, %s252
      %s269 = sphi 0, %s253
      %s275 = sphi 0, %s277
      %s278 = sphi 0, %s275
      %s279 = sphi 0, %s278
      %s295 = sphi 0, %s279
      %s301 = sphi 0, %s303
      %s304 = sphi 0, %s301
      %s305 = sphi 0, %s304
      %s321 = sphi 0, %s305
      %s327 = sphi 0, %s329
      %s330 = sphi 0, %s327
      %s331 = sphi 0, %s330
      %s347 = sphi 0, %s331
      %s353 = sphi 0, %s355
      %s356 = sphi 0, %s353
      %s357 = sphi 0, %s356
      %s373 = sphi 0, %s357
      %s379 = sphi 0, %s381
      %s382 = sphi 0, %s379
      %s383 = sphi 0, %s382
      %s399 = sphi 0, %s383
      %s405 = sphi 0, %s407
      %s408 = sphi 0, %s405
      %s409 = sphi 0, %s408
      %s425 = sphi 0, %s409
      %s431 = sphi 0, %s433
      %s434 = sphi 0, %s431
      %s435 = sphi 0, %s434
      %s451 = sphi 0, %s435
    $region4: #{tpu_custom_call.1} parent=1 // loop_header_branch
      %27 = sbr.rel (%p25) target = $region8
    $region5: #{tpu_custom_call.1} parent=1 // loop_body
      %s29 = ssub.s32 %s24, 1
      %s30 = ssub.s32 %s24, 2
      %s37 = sadd.s32 1, %s32
      %p38 = scmp.ge.s32.totalorder %s37, 2
      %s39 = scalar_select %p38, 0, %s37
      %s40 = sadd.s32 1, %s31
      %s41 = scalar_select %p38, %s40, %s31
      %p42 = scmp.ge.s32.totalorder %s41, 1
      %s43 = scalar_select %p42, 0, %s41
      %s44 = ssub.s32 %s31, %s43
      %p45 = scmp.eq.s32.totalorder %s44, 0
      %s47 = sadd.s32 %s46, 1
      %s48 = scalar_select %p45, %s46, %s47
      %p51 = pneg %p45
      %p52 = scmp.eq.s32.totalorder %s24, 1
      %p53 = por %p51, %p52
      %p54 = scmp.ne.s32.totalorder %s46, %s49
      %p55 = scmp.eq.s32.totalorder %s24, 0
      %p56 = por %p54, %p55
      %p57 = scmp.ne.s32.totalorder %s46, %s49
      %p58 = scmp.eq.s32.totalorder %s29, 1
      %p59 = por %p57, %p58
      %p60 = scmp.ne.s32.totalorder %s49, %s50
      %p61 = scmp.eq.s32.totalorder %s29, 0
      %p62 = por %p60, %p61
      %p63 = scmp.ne.s32.totalorder %s49, %s50
      %p64 = scmp.eq.s32.totalorder %s30, 1
      %p65 = por %p63, %p64
      %p67 = scmp.ne.s32.totalorder %s50, %s66
      %p68 = scmp.eq.s32.totalorder %s30, 0
      %p69 = por %p67, %p68
      %s71 = sadd.s32 %s70, 1
      %p74 = scmp.eq.s32.totalorder %s24, 1
      %p75 = scmp.ne.s32.totalorder %s70, %s72
      %p76 = scmp.eq.s32.totalorder %s24, 0
      %p77 = por %p75, %p76
      %p78 = scmp.ne.s32.totalorder %s70, %s72
      %p79 = scmp.eq.s32.totalorder %s29, 1
      %p80 = por %p78, %p79
      %p81 = scmp.ne.s32.totalorder %s72, %s73
      %p82 = scmp.eq.s32.totalorder %s29, 0
      %p83 = por %p81, %p82
      %p84 = scmp.ne.s32.totalorder %s72, %s73
      %p85 = scmp.eq.s32.totalorder %s30, 1
      %p86 = por %p84, %p85
      %p88 = scmp.ne.s32.totalorder %s73, %s87
      %p89 = scmp.eq.s32.totalorder %s30, 0
      %p90 = por %p88, %p89
      %s91 = ssub.s32 %s31, %s43
      %p92 = scmp.eq.s32.totalorder %s91, 0
      %s94 = sadd.s32 %s93, 1
      %s95 = scalar_select %p92, %s93, %s94
      %p98 = pneg %p92
      %p99 = scmp.eq.s32.totalorder %s24, 1
      %p100 = por %p98, %p99
      %p101 = scmp.ne.s32.totalorder %s93, %s96
      %p102 = scmp.eq.s32.totalorder %s24, 0
      %p103 = por %p101, %p102
      %p104 = scmp.ne.s32.totalorder %s93, %s96
      %p105 = scmp.eq.s32.totalorder %s29, 1
      %p106 = por %p104, %p105
      %p107 = scmp.ne.s32.totalorder %s96, %s97
      %p108 = scmp.eq.s32.totalorder %s29, 0
      %p109 = por %p107, %p108
      %p110 = scmp.ne.s32.totalorder %s96, %s97
      %p111 = scmp.eq.s32.totalorder %s30, 1
      %p112 = por %p110, %p111
      %p114 = scmp.ne.s32.totalorder %s97, %s113
      %p115 = scmp.eq.s32.totalorder %s30, 0
      %p116 = por %p114, %p115
      %s117 = ssub.s32 %s32, %s39
      %p118 = scmp.eq.s32.totalorder %s117, 0
      %s120 = sadd.s32 %s119, 1
      %s121 = scalar_select %p118, %s119, %s120
      %p124 = pneg %p118
      %p125 = scmp.eq.s32.totalorder %s24, 1
      %p126 = por %p124, %p125
      %p127 = scmp.ne.s32.totalorder %s119, %s122
      %p128 = scmp.eq.s32.totalorder %s24, 0
      %p129 = por %p127, %p128
      %p130 = scmp.ne.s32.totalorder %s119, %s122
      %p131 = scmp.eq.s32.totalorder %s29, 1
      %p132 = por %p130, %p131
      %p133 = scmp.ne.s32.totalorder %s122, %s123
      %p134 = scmp.eq.s32.totalorder %s29, 0
      %p135 = por %p133, %p134
      %p136 = scmp.ne.s32.totalorder %s122, %s123
      %p137 = scmp.eq.s32.totalorder %s30, 1
      %p138 = por %p136, %p137
      %p140 = scmp.ne.s32.totalorder %s123, %s139
      %p141 = scmp.eq.s32.totalorder %s30, 0
      %p142 = por %p140, %p141
      %s143 = ssub.s32 %s32, %s39
      %p144 = scmp.eq.s32.totalorder %s143, 0
      %s146 = sadd.s32 %s145, 1
      %s147 = scalar_select %p144, %s145, %s146
      %p150 = pneg %p144
      %p151 = scmp.eq.s32.totalorder %s24, 1
      %p152 = por %p150, %p151
      %p153 = scmp.ne.s32.totalorder %s145, %s148
      %p154 = scmp.eq.s32.totalorder %s24, 0
      %p155 = por %p153, %p154
      %p156 = scmp.ne.s32.totalorder %s145, %s148
      %p157 = scmp.eq.s32.totalorder %s29, 1
      %p158 = por %p156, %p157
      %p159 = scmp.ne.s32.totalorder %s148, %s149
      %p160 = scmp.eq.s32.totalorder %s29, 0
      %p161 = por %p159, %p160
      %p162 = scmp.ne.s32.totalorder %s148, %s149
      %p163 = scmp.eq.s32.totalorder %s30, 1
      %p164 = por %p162, %p163
      %p166 = scmp.ne.s32.totalorder %s149, %s165
      %p167 = scmp.eq.s32.totalorder %s30, 0
      %p168 = por %p166, %p167
      %s169 = ssub.s32 %s32, %s39
      %p170 = scmp.eq.s32.totalorder %s169, 0
      %s172 = sadd.s32 %s171, 1
      %s173 = scalar_select %p170, %s171, %s172
      %p176 = pneg %p170
      %p177 = scmp.eq.s32.totalorder %s24, 1
      %p178 = por %p176, %p177
      %p179 = scmp.ne.s32.totalorder %s171, %s174
      %p180 = scmp.eq.s32.totalorder %s24, 0
      %p181 = por %p179, %p180
      %p182 = scmp.ne.s32.totalorder %s171, %s174
      %p183 = scmp.eq.s32.totalorder %s29, 1
      %p184 = por %p182, %p183
      %p185 = scmp.ne.s32.totalorder %s174, %s175
      %p186 = scmp.eq.s32.totalorder %s29, 0
      %p187 = por %p185, %p186
      %p188 = scmp.ne.s32.totalorder %s174, %s175
      %p189 = scmp.eq.s32.totalorder %s30, 1
      %p190 = por %p188, %p189
      %p192 = scmp.ne.s32.totalorder %s175, %s191
      %p193 = scmp.eq.s32.totalorder %s30, 0
      %p194 = por %p192, %p193
      %s195 = ssub.s32 %s32, %s39
      %p196 = scmp.eq.s32.totalorder %s195, 0
      %s198 = sadd.s32 %s197, 1
      %s199 = scalar_select %p196, %s197, %s198
      %p202 = pneg %p196
      %p203 = scmp.eq.s32.totalorder %s24, 1
      %p204 = por %p202, %p203
      %p205 = scmp.ne.s32.totalorder %s197, %s200
      %p206 = scmp.eq.s32.totalorder %s24, 0
      %p207 = por %p205, %p206
      %p208 = scmp.ne.s32.totalorder %s197, %s200
      %p209 = scmp.eq.s32.totalorder %s29, 1
      %p210 = por %p208, %p209
      %p211 = scmp.ne.s32.totalorder %s200, %s201
      %p212 = scmp.eq.s32.totalorder %s29, 0
      %p213 = por %p211, %p212
      %p214 = scmp.ne.s32.totalorder %s200, %s201
      %p215 = scmp.eq.s32.totalorder %s30, 1
      %p216 = por %p214, %p215
      %p218 = scmp.ne.s32.totalorder %s201, %s217
      %p219 = scmp.eq.s32.totalorder %s30, 0
      %p220 = por %p218, %p219
      %s221 = ssub.s32 %s32, %s39
      %p222 = scmp.eq.s32.totalorder %s221, 0
      %s224 = sadd.s32 %s223, 1
      %s225 = scalar_select %p222, %s223, %s224
      %p228 = pneg %p222
      %p229 = scmp.eq.s32.totalorder %s24, 1
      %p230 = por %p228, %p229
      %p231 = scmp.ne.s32.totalorder %s223, %s226
      %p232 = scmp.eq.s32.totalorder %s24, 0
      %p233 = por %p231, %p232
      %p234 = scmp.ne.s32.totalorder %s223, %s226
      %p235 = scmp.eq.s32.totalorder %s29, 1
      %p236 = por %p234, %p235
      %p237 = scmp.ne.s32.totalorder %s226, %s227
      %p238 = scmp.eq.s32.totalorder %s29, 0
      %p239 = por %p237, %p238
      %p240 = scmp.ne.s32.totalorder %s226, %s227
      %p241 = scmp.eq.s32.totalorder %s30, 1
      %p242 = por %p240, %p241
      %p244 = scmp.ne.s32.totalorder %s227, %s243
      %p245 = scmp.eq.s32.totalorder %s30, 0
      %p246 = por %p244, %p245
      %s247 = ssub.s32 %s32, %s39
      %p248 = scmp.eq.s32.totalorder %s247, 0
      %s250 = sadd.s32 %s249, 1
      %s251 = scalar_select %p248, %s249, %s250
      %p254 = pneg %p248
      %p255 = scmp.eq.s32.totalorder %s24, 1
      %p256 = por %p254, %p255
      %p257 = scmp.ne.s32.totalorder %s249, %s252
      %p258 = scmp.eq.s32.totalorder %s24, 0
      %p259 = por %p257, %p258
      %p260 = scmp.ne.s32.totalorder %s249, %s252
      %p261 = scmp.eq.s32.totalorder %s29, 1
      %p262 = por %p260, %p261
      %p263 = scmp.ne.s32.totalorder %s252, %s253
      %p264 = scmp.eq.s32.totalorder %s29, 0
      %p265 = por %p263, %p264
      %p266 = scmp.ne.s32.totalorder %s252, %s253
      %p267 = scmp.eq.s32.totalorder %s30, 1
      %p268 = por %p266, %p267
      %p270 = scmp.ne.s32.totalorder %s253, %s269
      %p271 = scmp.eq.s32.totalorder %s30, 0
      %p272 = por %p270, %p271
      %s273 = ssub.s32 %s32, %s39
      %p274 = scmp.eq.s32.totalorder %s273, 0
      %s276 = sadd.s32 %s275, 1
      %s277 = scalar_select %p274, %s275, %s276
      %p280 = pneg %p274
      %p281 = scmp.eq.s32.totalorder %s24, 1
      %p282 = por %p280, %p281
      %p283 = scmp.ne.s32.totalorder %s275, %s278
      %p284 = scmp.eq.s32.totalorder %s24, 0
      %p285 = por %p283, %p284
      %p286 = scmp.ne.s32.totalorder %s275, %s278
      %p287 = scmp.eq.s32.totalorder %s29, 1
      %p288 = por %p286, %p287
      %p289 = scmp.ne.s32.totalorder %s278, %s279
      %p290 = scmp.eq.s32.totalorder %s29, 0
      %p291 = por %p289, %p290
      %p292 = scmp.ne.s32.totalorder %s278, %s279
      %p293 = scmp.eq.s32.totalorder %s30, 1
      %p294 = por %p292, %p293
      %p296 = scmp.ne.s32.totalorder %s279, %s295
      %p297 = scmp.eq.s32.totalorder %s30, 0
      %p298 = por %p296, %p297
      %s299 = ssub.s32 %s32, %s39
      %p300 = scmp.eq.s32.totalorder %s299, 0
      %s302 = sadd.s32 %s301, 1
      %s303 = scalar_select %p300, %s301, %s302
      %p306 = pneg %p300
      %p307 = scmp.eq.s32.totalorder %s24, 1
      %p308 = por %p306, %p307
      %p309 = scmp.ne.s32.totalorder %s301, %s304
      %p310 = scmp.eq.s32.totalorder %s24, 0
      %p311 = por %p309, %p310
      %p312 = scmp.ne.s32.totalorder %s301, %s304
      %p313 = scmp.eq.s32.totalorder %s29, 1
      %p314 = por %p312, %p313
      %p315 = scmp.ne.s32.totalorder %s304, %s305
      %p316 = scmp.eq.s32.totalorder %s29, 0
      %p317 = por %p315, %p316
      %p318 = scmp.ne.s32.totalorder %s304, %s305
      %p319 = scmp.eq.s32.totalorder %s30, 1
      %p320 = por %p318, %p319
      %p322 = scmp.ne.s32.totalorder %s305, %s321
      %p323 = scmp.eq.s32.totalorder %s30, 0
      %p324 = por %p322, %p323
      %s325 = ssub.s32 %s32, %s39
      %p326 = scmp.eq.s32.totalorder %s325, 0
      %s328 = sadd.s32 %s327, 1
      %s329 = scalar_select %p326, %s327, %s328
      %p332 = pneg %p326
      %p333 = scmp.eq.s32.totalorder %s24, 1
      %p334 = por %p332, %p333
      %p335 = scmp.ne.s32.totalorder %s327, %s330
      %p336 = scmp.eq.s32.totalorder %s24, 0
      %p337 = por %p335, %p336
      %p338 = scmp.ne.s32.totalorder %s327, %s330
      %p339 = scmp.eq.s32.totalorder %s29, 1
      %p340 = por %p338, %p339
      %p341 = scmp.ne.s32.totalorder %s330, %s331
      %p342 = scmp.eq.s32.totalorder %s29, 0
      %p343 = por %p341, %p342
      %p344 = scmp.ne.s32.totalorder %s330, %s331
      %p345 = scmp.eq.s32.totalorder %s30, 1
      %p346 = por %p344, %p345
      %p348 = scmp.ne.s32.totalorder %s331, %s347
      %p349 = scmp.eq.s32.totalorder %s30, 0
      %p350 = por %p348, %p349
      %s351 = ssub.s32 %s32, %s39
      %p352 = scmp.eq.s32.totalorder %s351, 0
      %s354 = sadd.s32 %s353, 1
      %s355 = scalar_select %p352, %s353, %s354
      %p358 = pneg %p352
      %p359 = scmp.eq.s32.totalorder %s24, 1
      %p360 = por %p358, %p359
      %p361 = scmp.ne.s32.totalorder %s353, %s356
      %p362 = scmp.eq.s32.totalorder %s24, 0
      %p363 = por %p361, %p362
      %p364 = scmp.ne.s32.totalorder %s353, %s356
      %p365 = scmp.eq.s32.totalorder %s29, 1
      %p366 = por %p364, %p365
      %p367 = scmp.ne.s32.totalorder %s356, %s357
      %p368 = scmp.eq.s32.totalorder %s29, 0
      %p369 = por %p367, %p368
      %p370 = scmp.ne.s32.totalorder %s356, %s357
      %p371 = scmp.eq.s32.totalorder %s30, 1
      %p372 = por %p370, %p371
      %p374 = scmp.ne.s32.totalorder %s357, %s373
      %p375 = scmp.eq.s32.totalorder %s30, 0
      %p376 = por %p374, %p375
      %s377 = ssub.s32 %s32, %s39
      %p378 = scmp.eq.s32.totalorder %s377, 0
      %s380 = sadd.s32 %s379, 1
      %s381 = scalar_select %p378, %s379, %s380
      %p384 = pneg %p378
      %p385 = scmp.eq.s32.totalorder %s24, 1
      %p386 = por %p384, %p385
      %p387 = scmp.ne.s32.totalorder %s379, %s382
      %p388 = scmp.eq.s32.totalorder %s24, 0
      %p389 = por %p387, %p388
      %p390 = scmp.ne.s32.totalorder %s379, %s382
      %p391 = scmp.eq.s32.totalorder %s29, 1
      %p392 = por %p390, %p391
      %p393 = scmp.ne.s32.totalorder %s382, %s383
      %p394 = scmp.eq.s32.totalorder %s29, 0
      %p395 = por %p393, %p394
      %p396 = scmp.ne.s32.totalorder %s382, %s383
      %p397 = scmp.eq.s32.totalorder %s30, 1
      %p398 = por %p396, %p397
      %p400 = scmp.ne.s32.totalorder %s383, %s399
      %p401 = scmp.eq.s32.totalorder %s30, 0
      %p402 = por %p400, %p401
      %s403 = ssub.s32 %s32, %s39
      %p404 = scmp.eq.s32.totalorder %s403, 0
      %s406 = sadd.s32 %s405, 1
      %s407 = scalar_select %p404, %s405, %s406
      %p410 = pneg %p404
      %p411 = scmp.eq.s32.totalorder %s24, 1
      %p412 = por %p410, %p411
      %p413 = scmp.ne.s32.totalorder %s405, %s408
      %p414 = scmp.eq.s32.totalorder %s24, 0
      %p415 = por %p413, %p414
      %p416 = scmp.ne.s32.totalorder %s405, %s408
      %p417 = scmp.eq.s32.totalorder %s29, 1
      %p418 = por %p416, %p417
      %p419 = scmp.ne.s32.totalorder %s408, %s409
      %p420 = scmp.eq.s32.totalorder %s29, 0
      %p421 = por %p419, %p420
      %p422 = scmp.ne.s32.totalorder %s408, %s409
      %p423 = scmp.eq.s32.totalorder %s30, 1
      %p424 = por %p422, %p423
      %p426 = scmp.ne.s32.totalorder %s409, %s425
      %p427 = scmp.eq.s32.totalorder %s30, 0
      %p428 = por %p426, %p427
      %s429 = ssub.s32 %s31, %s43
      %p430 = scmp.eq.s32.totalorder %s429, 0
      %s432 = sadd.s32 %s431, 1
      %s433 = scalar_select %p430, %s431, %s432
      %p436 = pneg %p430
      %p437 = scmp.eq.s32.totalorder %s24, 1
      %p438 = por %p436, %p437
      %p439 = scmp.ne.s32.totalorder %s431, %s434
      %p440 = scmp.eq.s32.totalorder %s24, 0
      %p441 = por %p439, %p440
      %p442 = scmp.ne.s32.totalorder %s431, %s434
      %p443 = scmp.eq.s32.totalorder %s29, 1
      %p444 = por %p442, %p443
      %p445 = scmp.ne.s32.totalorder %s434, %s435
      %p446 = scmp.eq.s32.totalorder %s29, 0
      %p447 = por %p445, %p446
      %p448 = scmp.ne.s32.totalorder %s434, %s435
      %p449 = scmp.eq.s32.totalorder %s30, 1
      %p450 = por %p448, %p449
      %p452 = scmp.ne.s32.totalorder %s435, %s451
      %p453 = scmp.eq.s32.totalorder %s30, 0
      %p454 = por %p452, %p453
      %p455 = scmp.le.s32.totalorder 1, %s24
      %p456 = scmp.lt.s32.totalorder %s24, 3
      %p457 = pnand %p455, %p456
      %p458 = pneg %p457
      // Predicated region
      $region9: #{tpu_custom_call.1} parent=5 // pred_check
        _
      $region10: #{tpu_custom_call.1} parent=5 // pred_check_branch
        %460 = sbr.rel (%p457) target = $region12
      $region11: #{tpu_custom_call.1} parent=5 // pred_region
        %s461 = ssub.s32 %s24, 1
        // Predicated region
        $region13: #{tpu_custom_call.1} parent=11 // pred_check
          %p462 = pneg %p62
        $region14: #{tpu_custom_call.1} parent=11 // pred_check_branch
          %464 = sbr.rel (%p462) target = $region16
        $region15: #{tpu_custom_call.1} parent=11 // pred_region
          %s465 = smul.u32 2, %s33
          %s467 = ssub.s32 256, 256
          %468 = vsyncadd [#allocation4], %s467
          %s469 = smul.addr %s465, 128
          %s470 = scalar_lea.hbm %s0, %s469
          %s471 = sshll.u32 [#allocation3], 4
          %s472 = int_to_ptr.vmem [resolvable:$true] %s471
          %477 = dma.hbm_to_vmem [thread:$0]  %s470, 256, %s472, [#allocation4], 128, 128, 8
        $region16: #{tpu_custom_call.1} parent=11 // pred_fallthru
          _
        // Predicated region
        $region17: #{tpu_custom_call.1} parent=11 // pred_check
          %p478 = pneg %p83
        $region18: #{tpu_custom_call.1} parent=11 // pred_check_branch
          %480 = sbr.rel (%p478) target = $region20
        $region19: #{tpu_custom_call.1} parent=11 // pred_region
          %s482 = ssub.s32 128, 128
          %483 = vsyncadd [#allocation7], %s482
          %s485 = sshll.u32 [#allocation6], 4
          %s486 = int_to_ptr.vmem [resolvable:$true] %s485
          %488 = dma.hbm_to_vmem [thread:$0]  %s1, 128, %s486, [#allocation7]
        $region20: #{tpu_custom_call.1} parent=11 // pred_fallthru
          _
        // Predicated region
        $region21: #{tpu_custom_call.1} parent=11 // pred_check
          %p489 = pneg %p109
        $region22: #{tpu_custom_call.1} parent=11 // pred_check_branch
          %491 = sbr.rel (%p489) target = $region24
        $region23: #{tpu_custom_call.1} parent=11 // pred_region
          %s492 = smul.u32 2, %s33
          %p493 = scmp.lt.s32.totalorder %s492, 1
          %s494 = scalar_select %p493, %s492, 1
          %s495 = scalar_lea.vmem %s2, %s494
          %s496 = smul.u32 2, %s33
        $region24: #{tpu_custom_call.1} parent=11 // pred_fallthru
          _
      $region12: #{tpu_custom_call.1} parent=5 // pred_fallthru
        _
      %p497 = scmp.lt.s32.totalorder %s24, 2
      // Predicated region
      $region25: #{tpu_custom_call.1} parent=5 // pred_check
        %p498 = pneg %p497
      $region26: #{tpu_custom_call.1} parent=5 // pred_check_branch
        %500 = sbr.rel (%p498) target = $region28
      $region27: #{tpu_custom_call.1} parent=5 // pred_region
        // Predicated region
        $region29: #{tpu_custom_call.1} parent=27 // pred_check
          %p501 = pneg %p129
        $region30: #{tpu_custom_call.1} parent=27 // pred_check_branch
          %503 = sbr.rel (%p501) target = $region32
        $region31: #{tpu_custom_call.1} parent=27 // pred_region
          %p504 = scmp.lt.s32.totalorder %s32, 1
          %s505 = scalar_select %p504, %s32, 1
          %s506 = smul.addr %s505, 4
          %s507 = smul.addr %s506, 8
          %s508 = scalar_lea.vmem %s3, %s507
        $region32: #{tpu_custom_call.1} parent=27 // pred_fallthru
          _
        // Predicated region
        $region33: #{tpu_custom_call.1} parent=27 // pred_check
          %p509 = pneg %p155
        $region34: #{tpu_custom_call.1} parent=27 // pred_check_branch
          %511 = sbr.rel (%p509) target = $region36
        $region35: #{tpu_custom_call.1} parent=27 // pred_region
          %p512 = scmp.lt.s32.totalorder %s32, 1
          %s513 = scalar_select %p512, %s32, 1
          %s514 = scalar_lea.vmem %s4, %s513
        $region36: #{tpu_custom_call.1} parent=27 // pred_fallthru
          _
        // Predicated region
        $region37: #{tpu_custom_call.1} parent=27 // pred_check
          %p515 = pneg %p181
        $region38: #{tpu_custom_call.1} parent=27 // pred_check_branch
          %517 = sbr.rel (%p515) target = $region40
        $region39: #{tpu_custom_call.1} parent=27 // pred_region
          %p518 = scmp.lt.s32.totalorder %s32, 1
          %s519 = scalar_select %p518, %s32, 1
          %s520 = smul.addr %s519, 4
          %s521 = smul.addr %s520, 8
          %s522 = scalar_lea.vmem %s5, %s521
        $region40: #{tpu_custom_call.1} parent=27 // pred_fallthru
          _
        // Predicated region
        $region41: #{tpu_custom_call.1} parent=27 // pred_check
          %p523 = pneg %p207
        $region42: #{tpu_custom_call.1} parent=27 // pred_check_branch
          %525 = sbr.rel (%p523) target = $region44
        $region43: #{tpu_custom_call.1} parent=27 // pred_region
          %p526 = scmp.lt.s32.totalorder %s32, 1
          %s527 = scalar_select %p526, %s32, 1
          %s528 = scalar_lea.vmem %s6, %s527
        $region44: #{tpu_custom_call.1} parent=27 // pred_fallthru
          _
        // Predicated region
        $region45: #{tpu_custom_call.1} parent=27 // pred_check
          %p529 = pneg %p233
        $region46: #{tpu_custom_call.1} parent=27 // pred_check_branch
          %531 = sbr.rel (%p529) target = $region48
        $region47: #{tpu_custom_call.1} parent=27 // pred_region
          %p532 = scmp.lt.s32.totalorder %s32, 1
          %s533 = scalar_select %p532, %s32, 1
          %s534 = scalar_lea.vmem %s7, %s533
        $region48: #{tpu_custom_call.1} parent=27 // pred_fallthru
          _
        // Predicated region
        $region49: #{tpu_custom_call.1} parent=27 // pred_check
          %p535 = pneg %p259
        $region50: #{tpu_custom_call.1} parent=27 // pred_check_branch
          %537 = sbr.rel (%p535) target = $region52
        $region51: #{tpu_custom_call.1} parent=27 // pred_region
          %p538 = scmp.lt.s32.totalorder %s32, 1
          %s539 = scalar_select %p538, %s32, 1
          %s540 = scalar_lea.vmem %s8, %s539
        $region52: #{tpu_custom_call.1} parent=27 // pred_fallthru
          _
        // Predicated region
        $region53: #{tpu_custom_call.1} parent=27 // pred_check
          %p541 = pneg %p285
        $region54: #{tpu_custom_call.1} parent=27 // pred_check_branch
          %543 = sbr.rel (%p541) target = $region56
        $region55: #{tpu_custom_call.1} parent=27 // pred_region
          %p544 = scmp.lt.s32.totalorder %s32, 1
          %s545 = scalar_select %p544, %s32, 1
          %s546 = smul.addr %s545, 4
          %s547 = smul.addr %s546, 8
          %s548 = scalar_lea.vmem %s9, %s547
        $region56: #{tpu_custom_call.1} parent=27 // pred_fallthru
          _
        // Predicated region
        $region57: #{tpu_custom_call.1} parent=27 // pred_check
          %p549 = pneg %p311
        $region58: #{tpu_custom_call.1} parent=27 // pred_check_branch
          %551 = sbr.rel (%p549) target = $region60
        $region59: #{tpu_custom_call.1} parent=27 // pred_region
          %p552 = scmp.lt.s32.totalorder %s32, 1
          %s553 = scalar_select %p552, %s32, 1
          %s554 = scalar_lea.vmem %s10, %s553
        $region60: #{tpu_custom_call.1} parent=27 // pred_fallthru
          _
        // Predicated region
        $region61: #{tpu_custom_call.1} parent=27 // pred_check
          %p555 = pneg %p337
        $region62: #{tpu_custom_call.1} parent=27 // pred_check_branch
          %557 = sbr.rel (%p555) target = $region64
        $region63: #{tpu_custom_call.1} parent=27 // pred_region
          %p558 = scmp.lt.s32.totalorder %s32, 1
          %s559 = scalar_select %p558, %s32, 1
          %s560 = smul.addr %s559, 8
          %s561 = smul.addr %s560, 8
          %s562 = scalar_lea.vmem %s11, %s561
        $region64: #{tpu_custom_call.1} parent=27 // pred_fallthru
          _
        // Predicated region
        $region65: #{tpu_custom_call.1} parent=27 // pred_check
          %p563 = pneg %p363
        $region66: #{tpu_custom_call.1} parent=27 // pred_check_branch
          %565 = sbr.rel (%p563) target = $region68
        $region67: #{tpu_custom_call.1} parent=27 // pred_region
          %p566 = scmp.lt.s32.totalorder %s32, 1
          %s567 = scalar_select %p566, %s32, 1
          %s568 = scalar_lea.vmem %s12, %s567
        $region68: #{tpu_custom_call.1} parent=27 // pred_fallthru
          _
        // Predicated region
        $region69: #{tpu_custom_call.1} parent=27 // pred_check
          %p569 = pneg %p389
        $region70: #{tpu_custom_call.1} parent=27 // pred_check_branch
          %571 = sbr.rel (%p569) target = $region72
        $region71: #{tpu_custom_call.1} parent=27 // pred_region
          %p572 = scmp.lt.s32.totalorder %s32, 1
          %s573 = scalar_select %p572, %s32, 1
          %s574 = scalar_lea.vmem %s13, %s573
        $region72: #{tpu_custom_call.1} parent=27 // pred_fallthru
          _
        // Predicated region
        $region73: #{tpu_custom_call.1} parent=27 // pred_check
          %p575 = pneg %p415
        $region74: #{tpu_custom_call.1} parent=27 // pred_check_branch
          %577 = sbr.rel (%p575) target = $region76
        $region75: #{tpu_custom_call.1} parent=27 // pred_region
          %p578 = scmp.lt.s32.totalorder %s32, 1
          %s579 = scalar_select %p578, %s32, 1
          %s580 = scalar_lea.vmem %s14, %s579
        $region76: #{tpu_custom_call.1} parent=27 // pred_fallthru
          _
      $region28: #{tpu_custom_call.1} parent=5 // pred_fallthru
        _
      %p581 = scmp.le.s32.totalorder 1, %s24
      %p582 = scmp.lt.s32.totalorder %s24, 3
      %p583 = pnand %p581, %p582
      %p584 = pneg %p583
      // Predicated region
      $region77: #{tpu_custom_call.1} parent=5 // pred_check
        _
      $region78: #{tpu_custom_call.1} parent=5 // pred_check_branch
        %586 = sbr.rel (%p583) target = $region80
      $region79: #{tpu_custom_call.1} parent=5 // pred_region
        %s587 = ssub.s32 %s24, 1
        // Predicated region
        $region81: #{tpu_custom_call.1} parent=79 // pred_check
          %p588 = pneg %p62
        $region82: #{tpu_custom_call.1} parent=79 // pred_check_branch
          %590 = sbr.rel (%p588) target = $region84
        $region83: #{tpu_custom_call.1} parent=79 // pred_region
          %591 = dma.done [#allocation4], 256
        $region84: #{tpu_custom_call.1} parent=79 // pred_fallthru
          _
        // Predicated region
        $region85: #{tpu_custom_call.1} parent=79 // pred_check
          %p592 = pneg %p83
        $region86: #{tpu_custom_call.1} parent=79 // pred_check_branch
          %594 = sbr.rel (%p592) target = $region88
        $region87: #{tpu_custom_call.1} parent=79 // pred_region
          %595 = dma.done [#allocation7], 128
        $region88: #{tpu_custom_call.1} parent=79 // pred_fallthru
          _
        %p596 = pneg %p62
        %p597 = pneg %p59
        %p598 = pneg %p83
        %p599 = pneg %p80
        %s600 = smul.u32 2, %s33
        %p601 = scmp.lt.s32.totalorder %s600, 1
        %s602 = scalar_select %p601, %s600, 1
        %s603 = scalar_lea.vmem %s2, %s602
        %p604 = pneg %p109
        %p605 = pneg %p106
        %p606 = scmp.lt.s32.totalorder %s34, 1
        %s607 = scalar_select %p606, %s34, 1
        %s608 = smul.addr %s607, 4
        %s609 = smul.addr %s608, 8
        %s610 = scalar_lea.vmem %s3, %s609
        %p611 = pneg %p135
        %p612 = pneg %p132
        %p613 = scmp.lt.s32.totalorder %s34, 1
        %s614 = scalar_select %p613, %s34, 1
        %s615 = scalar_lea.vmem %s4, %s614
        %p616 = pneg %p161
        %p617 = pneg %p158
        %p618 = scmp.lt.s32.totalorder %s34, 1
        %s619 = scalar_select %p618, %s34, 1
        %s620 = smul.addr %s619, 4
        %s621 = smul.addr %s620, 8
        %s622 = scalar_lea.vmem %s5, %s621
        %p623 = pneg %p187
        %p624 = pneg %p184
        %p625 = scmp.lt.s32.totalorder %s34, 1
        %s626 = scalar_select %p625, %s34, 1
        %s627 = scalar_lea.vmem %s6, %s626
        %p628 = pneg %p213
        %p629 = pneg %p210
        %p630 = scmp.lt.s32.totalorder %s34, 1
        %s631 = scalar_select %p630, %s34, 1
        %s632 = scalar_lea.vmem %s7, %s631
        %p633 = pneg %p239
        %p634 = pneg %p236
        %p635 = scmp.lt.s32.totalorder %s34, 1
        %s636 = scalar_select %p635, %s34, 1
        %s637 = scalar_lea.vmem %s8, %s636
        %p638 = pneg %p265
        %p639 = pneg %p262
        %p640 = scmp.lt.s32.totalorder %s34, 1
        %s641 = scalar_select %p640, %s34, 1
        %s642 = smul.addr %s641, 4
        %s643 = smul.addr %s642, 8
        %s644 = scalar_lea.vmem %s9, %s643
        %p645 = pneg %p291
        %p646 = pneg %p288
        %p647 = scmp.lt.s32.totalorder %s34, 1
        %s648 = scalar_select %p647, %s34, 1
        %s649 = scalar_lea.vmem %s10, %s648
        %p650 = pneg %p317
        %p651 = pneg %p314
        %p652 = scmp.lt.s32.totalorder %s34, 1
        %s653 = scalar_select %p652, %s34, 1
        %s654 = smul.addr %s653, 8
        %s655 = smul.addr %s654, 8
        %s656 = scalar_lea.vmem %s11, %s655
        %p657 = pneg %p343
        %p658 = pneg %p340
        %p659 = scmp.lt.s32.totalorder %s34, 1
        %s660 = scalar_select %p659, %s34, 1
        %s661 = scalar_lea.vmem %s12, %s660
        %p662 = pneg %p369
        %p663 = pneg %p366
        %p664 = scmp.lt.s32.totalorder %s34, 1
        %s665 = scalar_select %p664, %s34, 1
        %s666 = scalar_lea.vmem %s13, %s665
        %p667 = pneg %p395
        %p668 = pneg %p392
        %p669 = scmp.lt.s32.totalorder %s34, 1
        %s670 = scalar_select %p669, %s34, 1
        %s671 = scalar_lea.vmem %s14, %s670
        %p672 = pneg %p421
        %p673 = pneg %p418
        %p674 = pneg %p447
        %p675 = pneg %p444
        %s676 = smul.u32 2, %s33
        %s677 = smul.u32 2, %s33
        %p678 = scmp.lt.s32.totalorder %s677, 1
        %s679 = scalar_select %p678, %s677, 1
        %s680 = scalar_lea.vmem %s2, %s679
        %s681 = smul.u32 2, %s33
        %p682 = scmp.lt.s32.totalorder %s34, 1
        %s683 = scalar_select %p682, %s34, 1
        %s684 = smul.addr %s683, 4
        %s685 = smul.addr %s684, 8
        %s686 = scalar_lea.vmem %s3, %s685
        %p687 = scmp.lt.s32.totalorder %s34, 1
        %s688 = scalar_select %p687, %s34, 1
        %s689 = scalar_lea.vmem %s4, %s688
        %p690 = scmp.lt.s32.totalorder %s34, 1
        %s691 = scalar_select %p690, %s34, 1
        %s692 = smul.addr %s691, 4
        %s693 = smul.addr %s692, 8
        %s694 = scalar_lea.vmem %s5, %s693
        %p695 = scmp.lt.s32.totalorder %s34, 1
        %s696 = scalar_select %p695, %s34, 1
        %s697 = scalar_lea.vmem %s6, %s696
        %p698 = scmp.lt.s32.totalorder %s34, 1
        %s699 = scalar_select %p698, %s34, 1
        %s700 = scalar_lea.vmem %s7, %s699
        %p701 = scmp.lt.s32.totalorder %s34, 1
        %s702 = scalar_select %p701, %s34, 1
        %s703 = scalar_lea.vmem %s8, %s702
        %p704 = scmp.lt.s32.totalorder %s34, 1
        %s705 = scalar_select %p704, %s34, 1
        %s706 = smul.addr %s705, 4
        %s707 = smul.addr %s706, 8
        %s708 = scalar_lea.vmem %s9, %s707
        %p709 = scmp.lt.s32.totalorder %s34, 1
        %s710 = scalar_select %p709, %s34, 1
        %s711 = scalar_lea.vmem %s10, %s710
        %p712 = scmp.lt.s32.totalorder %s34, 1
        %s713 = scalar_select %p712, %s34, 1
        %s714 = smul.addr %s713, 8
        %s715 = smul.addr %s714, 8
        %s716 = scalar_lea.vmem %s11, %s715
        %p717 = scmp.lt.s32.totalorder %s34, 1
        %s718 = scalar_select %p717, %s34, 1
        %s719 = scalar_lea.vmem %s12, %s718
        %p720 = scmp.lt.s32.totalorder %s34, 1
        %s721 = scalar_select %p720, %s34, 1
        %s722 = scalar_lea.vmem %s13, %s721
        %p723 = scmp.lt.s32.totalorder %s34, 1
        %s724 = scalar_select %p723, %s34, 1
        %s725 = scalar_lea.vmem %s14, %s724
        %s726 = smul.u32 2, %s33
        %p727 = scmp.eq.s32.totalorder %s34, 0
        // Predicated region
        $region89: #{tpu_custom_call.1} parent=79 // pred_check
          %p728 = pneg %p727
        $region90: #{tpu_custom_call.1} parent=79 // pred_check_branch
          %730 = sbr.rel (%p728) target = $region92
        $region91: #{tpu_custom_call.1} parent=79 // pred_region
          %v731 = vld [vmem:[#allocation3] sm:$0xff]
          %v732 = vld [vmem:[#allocation3 + $0x8] sm:$0xff]
          %v733 = vld [vmem:[#allocation6] sm:$0xff]
          %v734 = vadd.f32 %v731, %v733
          %v735 = vadd.f32 %v732, %v733
          %vm736 = vcmask 261120
          %737 = vst.msk [vmem:[#allocation2] sm:$0xff] %vm736, %v734
          %738 = vst.msk [vmem:[#allocation2 + $0x8] sm:$0xff] %vm736, %v735
        $region92: #{tpu_custom_call.1} parent=79 // pred_fallthru
          _
        %v739 = vld [vmem:[#allocation2] sm:$0xff]
        %v740 = vld [vmem:[#allocation2 + $0x8] sm:$0xff]
        %v741 = vld [vmem:[%s686] sm:$0xff]
        %v742 = vld [vmem:[%s686 + $0x8] sm:$0xff]
        %v743 = vld [vmem:[%s686 + $0x10] sm:$0xff]
        %v744 = vld [vmem:[%s686 + $0x18] sm:$0xff]
        %v745 = vld [vmem:[%s689] sm:$0x1]
        %v747 = vlaneseq
        %v748 = vshrl.u32 %v747, 7
        %v749 = vsub.s32 0, %v748
        %v750 = vrot.slane %v745, %v749
        %vm752 = vcmask 261120
        %v754 = vsel %vm752, %v739, 0
        %v757 = vsel %vm752, %v740, 0
        %759 = vmatprep.subr.mxu0 0.0
        %760 = vmatpush1.msra.mxu0 %v741
        %761 = vmatprep.subr.mxu0 0.0
        %762 = vmatpush1.msra.mxu0 %v742
        %763 = vmatprep.subr.mxu0 0.0
        %764 = vmatpush1.msra.mxu0 %v743
        %765 = vmatprep.subr.mxu0 0.0
        %766 = vmatpush1.msra.mxu0 %v744
        %767 = vmatprep.subr.mxu0 0.0
        %768 = vmatpush1.msra.mxu0 0.0
        %769 = vmatprep.subr.mxu0 0.0
        %770 = vmatpush1.msra.mxu0 0.0
        %771 = vmatprep.subr.mxu0 0.0
        %772 = vmatpush1.msra.mxu0 0.0
        %773 = vmatprep.subr.mxu0 0.0
        %774 = vmatpush1.msra.mxu0 0.0
        %775 = vmatprep.subr.mxu0 0.0
        %776 = vmatpush1.msra.mxu0 0.0
        %777 = vmatprep.subr.mxu0 0.0
        %778 = vmatpush1.msra.mxu0 0.0
        %779 = vmatprep.subr.mxu0 0.0
        %780 = vmatpush1.msra.mxu0 0.0
        %781 = vmatprep.subr.mxu0 0.0
        %782 = vmatpush1.msra.mxu0 0.0
        %783 = vmatprep.subr.mxu0 0.0
        %784 = vmatpush1.msra.mxu0 0.0
        %785 = vmatprep.subr.mxu0 0.0
        %786 = vmatpush1.msra.mxu0 0.0
        %787 = vmatprep.subr.mxu0 0.0
        %788 = vmatpush1.msra.mxu0 0.0
        %789 = vmatprep.subr.mxu0 0.0
        %790 = vmatpush1.msra.mxu0 0.0
        %791 = vmatprep.subr.mxu0 0.0
        %792 = vmatpush1.msra.mxu0 0.0
        %793 = vmatprep.subr.mxu0 0.0
        %794 = vmatpush1.msra.mxu0 0.0
        %795 = vmatprep.subr.mxu0 0.0
        %796 = vmatpush1.msra.mxu0 0.0
        %797 = vmatprep.subr.mxu0 0.0
        %798 = vmatpush1.msra.mxu0 0.0
        %799 = vmatprep.subr.mxu0 0.0
        %800 = vmatpush1.msra.mxu0 0.0
        %801 = vmatprep.subr.mxu0 0.0
        %802 = vmatpush1.msra.mxu0 0.0
        %803 = vmatprep.subr.mxu0 0.0
        %804 = vmatpush1.msra.mxu0 0.0
        %805 = vmatprep.subr.mxu0 0.0
        %806 = vmatpush1.msra.mxu0 0.0
        %807 = vmatprep.subr.mxu0 0.0
        %808 = vmatpush1.msra.mxu0 0.0
        %809 = vmatprep.subr.mxu0 0.0
        %810 = vmatpush1.msra.mxu0 0.0
        %811 = vmatprep.subr.mxu0 0.0
        %812 = vmatpush1.msra.mxu0 0.0
        %813 = vmatprep.subr.mxu0 0.0
        %814 = vmatpush1.msra.mxu0 0.0
        %815 = vmatprep.subr.mxu0 0.0
        %816 = vmatpush1.msra.mxu0 0.0
        %817 = vmatprep.subr.mxu0 0.0
        %818 = vmatpush1.msra.mxu0 0.0
        %819 = vmatprep.subr.mxu0 0.0
        %820 = vmatpush1.msra.mxu0 0.0
        %821 = vmatprep.subr.mxu0 0.0
        %822 = vmatpush1.msra.mxu0 0.0
        %823 = vmatprep.mubr.f32.mxu0 0.0
        %824 = vmatmul.mubr.f32.gmra.mrb[0].mxu0 %v754
        %v825 = vpop.f32.mrb[0].mxu0
        %v826 = vadd.f32 %v750, %v825
        %v827 = vpop.f32.mrb[0].mxu0
        %828 = vmatprep.mubr.f32.mxu0 0.0
        %829 = vmatmul.mubr.f32.gmra.mrb[0].mxu0 %v757
        %v830 = vpop.f32.mrb[0].mxu0
        %v831 = vadd.f32 %v750, %v830
        %v832 = vpop.f32.mrb[0].mxu0
        %833 = vdwg.mxu0
        %836 = vrot.lane.b32.xlu0 %v826, 120
        %v837 = vpop.permute.xlu0 %836
        %838 = vrot.lane.b32.xlu0 %v831, 120
        %v839 = vpop.permute.xlu0 %838
        %840 = vrot.lane.b32.xlu0 %v826, 112
        %v841 = vpop.permute.xlu0 %840
        %842 = vrot.lane.b32.xlu0 %v831, 112
        %v843 = vpop.permute.xlu0 %842
        %844 = vrot.lane.b32.xlu0 %v826, 104
        %v845 = vpop.permute.xlu0 %844
        %846 = vrot.lane.b32.xlu0 %v831, 104
        %v847 = vpop.permute.xlu0 %846
        %v848 = vld [vmem:[%s680] sm:$0x1]
        %v849 = vld [vmem:[%s680 + $0x1] sm:$0x1]
        %v852 = vlaneseq
        %v853 = vshrl.u32 %v852, 7
        %v854 = vsub.s32 0, %v853
        %v855 = vrot.slane %v848, %v854
        %v856 = vlaneseq
        %v857 = vshrl.u32 %v856, 7
        %v858 = vsub.s32 0, %v857
        %v859 = vrot.slane %v849, %v858
        %862 = vrot.lane.b32.xlu0 %v826, 96
        %v863 = vpop.permute.xlu0 %862
        %vm864 = vcmask 64512
        %v865 = vsel %vm864, %v826, 0
        %v867 = vsel %vm864, %v863, 0
        %869 = vmatprep.subr.mxu0 0.0
        %870 = vmatpush1.xpose.msra.mxu0 %v867
        %871 = vmatprep.subr.mxu0 0.0
        %872 = vmatpush1.xpose.msra.mxu0 0.0
        %873 = vmatprep.subr.mxu0 0.0
        %874 = vmatpush1.xpose.msra.mxu0 0.0
        %875 = vmatprep.subr.mxu0 0.0
        %876 = vmatpush1.xpose.msra.mxu0 0.0
        %877 = vmatprep.subr.mxu0 0.0
        %878 = vmatpush1.xpose.msra.mxu0 0.0
        %879 = vmatprep.subr.mxu0 0.0
        %880 = vmatpush1.xpose.msra.mxu0 0.0
        %881 = vmatprep.subr.mxu0 0.0
        %882 = vmatpush1.xpose.msra.mxu0 0.0
        %883 = vmatprep.subr.mxu0 0.0
        %884 = vmatpush1.xpose.msra.mxu0 0.0
        %885 = vmatprep.subr.mxu0 0.0
        %886 = vmatpush1.xpose.msra.mxu0 0.0
        %887 = vmatprep.subr.mxu0 0.0
        %888 = vmatpush1.xpose.msra.mxu0 0.0
        %889 = vmatprep.subr.mxu0 0.0
        %890 = vmatpush1.xpose.msra.mxu0 0.0
        %891 = vmatprep.subr.mxu0 0.0
        %892 = vmatpush1.xpose.msra.mxu0 0.0
        %893 = vmatprep.subr.mxu0 0.0
        %894 = vmatpush1.xpose.msra.mxu0 0.0
        %895 = vmatprep.subr.mxu0 0.0
        %896 = vmatpush1.xpose.msra.mxu0 0.0
        %897 = vmatprep.subr.mxu0 0.0
        %898 = vmatpush1.xpose.msra.mxu0 0.0
        %899 = vmatprep.subr.mxu0 0.0
        %900 = vmatpush1.xpose.msra.mxu0 0.0
        %901 = vmatprep.subr.mxu0 0.0
        %902 = vmatpush1.xpose.msra.mxu0 0.0
        %903 = vmatprep.subr.mxu0 0.0
        %904 = vmatpush1.xpose.msra.mxu0 0.0
        %905 = vmatprep.subr.mxu0 0.0
        %906 = vmatpush1.xpose.msra.mxu0 0.0
        %907 = vmatprep.subr.mxu0 0.0
        %908 = vmatpush1.xpose.msra.mxu0 0.0
        %909 = vmatprep.subr.mxu0 0.0
        %910 = vmatpush1.xpose.msra.mxu0 0.0
        %911 = vmatprep.subr.mxu0 0.0
        %912 = vmatpush1.xpose.msra.mxu0 0.0
        %913 = vmatprep.subr.mxu0 0.0
        %914 = vmatpush1.xpose.msra.mxu0 0.0
        %915 = vmatprep.subr.mxu0 0.0
        %916 = vmatpush1.xpose.msra.mxu0 0.0
        %917 = vmatprep.subr.mxu0 0.0
        %918 = vmatpush1.xpose.msra.mxu0 0.0
        %919 = vmatprep.subr.mxu0 0.0
        %920 = vmatpush1.xpose.msra.mxu0 0.0
        %921 = vmatprep.subr.mxu0 0.0
        %922 = vmatpush1.xpose.msra.mxu0 0.0
        %923 = vmatprep.subr.mxu0 0.0
        %924 = vmatpush1.xpose.msra.mxu0 0.0
        %925 = vmatprep.subr.mxu0 0.0
        %926 = vmatpush1.xpose.msra.mxu0 0.0
        %927 = vmatprep.subr.mxu0 0.0
        %928 = vmatpush1.xpose.msra.mxu0 0.0
        %929 = vmatprep.subr.mxu0 0.0
        %930 = vmatpush1.xpose.msra.mxu0 0.0
        %931 = vmatprep.subr.mxu0 0.0
        %932 = vmatpush1.xpose.msra.mxu0 0.0
        %933 = vmatprep.mubr.f32.mxu0 0.0
        %934 = vmatmul.mubr.f32.gmra.mrb[0].mxu0 %v865
        %v935 = vpop.f32.mrb[0].mxu0
        %v936 = vadd.f32 %v855, %v935
        %v937 = vpop.f32.mrb[0].mxu0
        %938 = vdwg.mxu0
        %939 = vrot.lane.b32.xlu0 %v831, 96
        %v940 = vpop.permute.xlu0 %939
        %v941 = vsel %vm864, %v831, 0
        %v943 = vsel %vm864, %v940, 0
        %945 = vmatprep.subr.mxu0 0.0
        %946 = vmatpush1.xpose.msra.mxu0 %v943
        %947 = vmatprep.subr.mxu0 0.0
        %948 = vmatpush1.xpose.msra.mxu0 0.0
        %949 = vmatprep.subr.mxu0 0.0
        %950 = vmatpush1.xpose.msra.mxu0 0.0
        %951 = vmatprep.subr.mxu0 0.0
        %952 = vmatpush1.xpose.msra.mxu0 0.0
        %953 = vmatprep.subr.mxu0 0.0
        %954 = vmatpush1.xpose.msra.mxu0 0.0
        %955 = vmatprep.subr.mxu0 0.0
        %956 = vmatpush1.xpose.msra.mxu0 0.0
        %957 = vmatprep.subr.mxu0 0.0
        %958 = vmatpush1.xpose.msra.mxu0 0.0
        %959 = vmatprep.subr.mxu0 0.0
        %960 = vmatpush1.xpose.msra.mxu0 0.0
        %961 = vmatprep.subr.mxu0 0.0
        %962 = vmatpush1.xpose.msra.mxu0 0.0
        %963 = vmatprep.subr.mxu0 0.0
        %964 = vmatpush1.xpose.msra.mxu0 0.0
        %965 = vmatprep.subr.mxu0 0.0
        %966 = vmatpush1.xpose.msra.mxu0 0.0
        %967 = vmatprep.subr.mxu0 0.0
        %968 = vmatpush1.xpose.msra.mxu0 0.0
        %969 = vmatprep.subr.mxu0 0.0
        %970 = vmatpush1.xpose.msra.mxu0 0.0
        %971 = vmatprep.subr.mxu0 0.0
        %972 = vmatpush1.xpose.msra.mxu0 0.0
        %973 = vmatprep.subr.mxu0 0.0
        %974 = vmatpush1.xpose.msra.mxu0 0.0
        %975 = vmatprep.subr.mxu0 0.0
        %976 = vmatpush1.xpose.msra.mxu0 0.0
        %977 = vmatprep.subr.mxu0 0.0
        %978 = vmatpush1.xpose.msra.mxu0 0.0
        %979 = vmatprep.subr.mxu0 0.0
        %980 = vmatpush1.xpose.msra.mxu0 0.0
        %981 = vmatprep.subr.mxu0 0.0
        %982 = vmatpush1.xpose.msra.mxu0 0.0
        %983 = vmatprep.subr.mxu0 0.0
        %984 = vmatpush1.xpose.msra.mxu0 0.0
        %985 = vmatprep.subr.mxu0 0.0
        %986 = vmatpush1.xpose.msra.mxu0 0.0
        %987 = vmatprep.subr.mxu0 0.0
        %988 = vmatpush1.xpose.msra.mxu0 0.0
        %989 = vmatprep.subr.mxu0 0.0
        %990 = vmatpush1.xpose.msra.mxu0 0.0
        %991 = vmatprep.subr.mxu0 0.0
        %992 = vmatpush1.xpose.msra.mxu0 0.0
        %993 = vmatprep.subr.mxu0 0.0
        %994 = vmatpush1.xpose.msra.mxu0 0.0
        %995 = vmatprep.subr.mxu0 0.0
        %996 = vmatpush1.xpose.msra.mxu0 0.0
        %997 = vmatprep.subr.mxu0 0.0
        %998 = vmatpush1.xpose.msra.mxu0 0.0
        %999 = vmatprep.subr.mxu0 0.0
        %1000 = vmatpush1.xpose.msra.mxu0 0.0
        %1001 = vmatprep.subr.mxu0 0.0
        %1002 = vmatpush1.xpose.msra.mxu0 0.0
        %1003 = vmatprep.subr.mxu0 0.0
        %1004 = vmatpush1.xpose.msra.mxu0 0.0
        %1005 = vmatprep.subr.mxu0 0.0
        %1006 = vmatpush1.xpose.msra.mxu0 0.0
        %1007 = vmatprep.subr.mxu0 0.0
        %1008 = vmatpush1.xpose.msra.mxu0 0.0
        %1009 = vmatprep.mubr.f32.mxu0 0.0
        %1010 = vmatmul.mubr.f32.gmra.mrb[0].mxu0 %v941
        %v1011 = vpop.f32.mrb[0].mxu0
        %v1012 = vadd.f32 %v859, %v1011
        %v1013 = vpop.f32.mrb[0].mxu0
        %1014 = vdwg.mxu0
        %1015 = vrot.lane.b32.xlu0 %v837, 96
        %v1016 = vpop.permute.xlu0 %1015
        %v1017 = vsel %vm864, %v837, 0
        %v1019 = vsel %vm864, %v1016, 0
        %1021 = vmatprep.subr.mxu0 0.0
        %1022 = vmatpush1.xpose.msra.mxu0 %v1019
        %1023 = vmatprep.subr.mxu0 0.0
        %1024 = vmatpush1.xpose.msra.mxu0 0.0
        %1025 = vmatprep.subr.mxu0 0.0
        %1026 = vmatpush1.xpose.msra.mxu0 0.0
        %1027 = vmatprep.subr.mxu0 0.0
        %1028 = vmatpush1.xpose.msra.mxu0 0.0
        %1029 = vmatprep.subr.mxu0 0.0
        %1030 = vmatpush1.xpose.msra.mxu0 0.0
        %1031 = vmatprep.subr.mxu0 0.0
        %1032 = vmatpush1.xpose.msra.mxu0 0.0
        %1033 = vmatprep.subr.mxu0 0.0
        %1034 = vmatpush1.xpose.msra.mxu0 0.0
        %1035 = vmatprep.subr.mxu0 0.0
        %1036 = vmatpush1.xpose.msra.mxu0 0.0
        %1037 = vmatprep.subr.mxu0 0.0
        %1038 = vmatpush1.xpose.msra.mxu0 0.0
        %1039 = vmatprep.subr.mxu0 0.0
        %1040 = vmatpush1.xpose.msra.mxu0 0.0
        %1041 = vmatprep.subr.mxu0 0.0
        %1042 = vmatpush1.xpose.msra.mxu0 0.0
        %1043 = vmatprep.subr.mxu0 0.0
        %1044 = vmatpush1.xpose.msra.mxu0 0.0
        %1045 = vmatprep.subr.mxu0 0.0
        %1046 = vmatpush1.xpose.msra.mxu0 0.0
        %1047 = vmatprep.subr.mxu0 0.0
        %1048 = vmatpush1.xpose.msra.mxu0 0.0
        %1049 = vmatprep.subr.mxu0 0.0
        %1050 = vmatpush1.xpose.msra.mxu0 0.0
        %1051 = vmatprep.subr.mxu0 0.0
        %1052 = vmatpush1.xpose.msra.mxu0 0.0
        %1053 = vmatprep.subr.mxu0 0.0
        %1054 = vmatpush1.xpose.msra.mxu0 0.0
        %1055 = vmatprep.subr.mxu0 0.0
        %1056 = vmatpush1.xpose.msra.mxu0 0.0
        %1057 = vmatprep.subr.mxu0 0.0
        %1058 = vmatpush1.xpose.msra.mxu0 0.0
        %1059 = vmatprep.subr.mxu0 0.0
        %1060 = vmatpush1.xpose.msra.mxu0 0.0
        %1061 = vmatprep.subr.mxu0 0.0
        %1062 = vmatpush1.xpose.msra.mxu0 0.0
        %1063 = vmatprep.subr.mxu0 0.0
        %1064 = vmatpush1.xpose.msra.mxu0 0.0
        %1065 = vmatprep.subr.mxu0 0.0
        %1066 = vmatpush1.xpose.msra.mxu0 0.0
        %1067 = vmatprep.subr.mxu0 0.0
        %1068 = vmatpush1.xpose.msra.mxu0 0.0
        %1069 = vmatprep.subr.mxu0 0.0
        %1070 = vmatpush1.xpose.msra.mxu0 0.0
        %1071 = vmatprep.subr.mxu0 0.0
        %1072 = vmatpush1.xpose.msra.mxu0 0.0
        %1073 = vmatprep.subr.mxu0 0.0
        %1074 = vmatpush1.xpose.msra.mxu0 0.0
        %1075 = vmatprep.subr.mxu0 0.0
        %1076 = vmatpush1.xpose.msra.mxu0 0.0
        %1077 = vmatprep.subr.mxu0 0.0
        %1078 = vmatpush1.xpose.msra.mxu0 0.0
        %1079 = vmatprep.subr.mxu0 0.0
        %1080 = vmatpush1.xpose.msra.mxu0 0.0
        %1081 = vmatprep.subr.mxu0 0.0
        %1082 = vmatpush1.xpose.msra.mxu0 0.0
        %1083 = vmatprep.subr.mxu0 0.0
        %1084 = vmatpush1.xpose.msra.mxu0 0.0
        %1085 = vmatprep.mubr.f32.mxu0 0.0
        %1086 = vmatmul.mubr.f32.gmra.mrb[0].mxu0 %v1017
        %v1087 = vpop.f32.mrb[0].mxu0
        %v1088 = vadd.f32 %v855, %v1087
        %v1089 = vpop.f32.mrb[0].mxu0
        %1090 = vdwg.mxu0
        %1091 = vrot.lane.b32.xlu0 %v839, 96
        %v1092 = vpop.permute.xlu0 %1091
        %v1093 = vsel %vm864, %v839, 0
        %v1095 = vsel %vm864, %v1092, 0
        %1097 = vmatprep.subr.mxu0 0.0
        %1098 = vmatpush1.xpose.msra.mxu0 %v1095
        %1099 = vmatprep.subr.mxu0 0.0
        %1100 = vmatpush1.xpose.msra.mxu0 0.0
        %1101 = vmatprep.subr.mxu0 0.0
        %1102 = vmatpush1.xpose.msra.mxu0 0.0
        %1103 = vmatprep.subr.mxu0 0.0
        %1104 = vmatpush1.xpose.msra.mxu0 0.0
        %1105 = vmatprep.subr.mxu0 0.0
        %1106 = vmatpush1.xpose.msra.mxu0 0.0
        %1107 = vmatprep.subr.mxu0 0.0
        %1108 = vmatpush1.xpose.msra.mxu0 0.0
        %1109 = vmatprep.subr.mxu0 0.0
        %1110 = vmatpush1.xpose.msra.mxu0 0.0
        %1111 = vmatprep.subr.mxu0 0.0
        %1112 = vmatpush1.xpose.msra.mxu0 0.0
        %1113 = vmatprep.subr.mxu0 0.0
        %1114 = vmatpush1.xpose.msra.mxu0 0.0
        %1115 = vmatprep.subr.mxu0 0.0
        %1116 = vmatpush1.xpose.msra.mxu0 0.0
        %1117 = vmatprep.subr.mxu0 0.0
        %1118 = vmatpush1.xpose.msra.mxu0 0.0
        %1119 = vmatprep.subr.mxu0 0.0
        %1120 = vmatpush1.xpose.msra.mxu0 0.0
        %1121 = vmatprep.subr.mxu0 0.0
        %1122 = vmatpush1.xpose.msra.mxu0 0.0
        %1123 = vmatprep.subr.mxu0 0.0
        %1124 = vmatpush1.xpose.msra.mxu0 0.0
        %1125 = vmatprep.subr.mxu0 0.0
        %1126 = vmatpush1.xpose.msra.mxu0 0.0
        %1127 = vmatprep.subr.mxu0 0.0
        %1128 = vmatpush1.xpose.msra.mxu0 0.0
        %1129 = vmatprep.subr.mxu0 0.0
        %1130 = vmatpush1.xpose.msra.mxu0 0.0
        %1131 = vmatprep.subr.mxu0 0.0
        %1132 = vmatpush1.xpose.msra.mxu0 0.0
        %1133 = vmatprep.subr.mxu0 0.0
        %1134 = vmatpush1.xpose.msra.mxu0 0.0
        %1135 = vmatprep.subr.mxu0 0.0
        %1136 = vmatpush1.xpose.msra.mxu0 0.0
        %1137 = vmatprep.subr.mxu0 0.0
        %1138 = vmatpush1.xpose.msra.mxu0 0.0
        %1139 = vmatprep.subr.mxu0 0.0
        %1140 = vmatpush1.xpose.msra.mxu0 0.0
        %1141 = vmatprep.subr.mxu0 0.0
        %1142 = vmatpush1.xpose.msra.mxu0 0.0
        %1143 = vmatprep.subr.mxu0 0.0
        %1144 = vmatpush1.xpose.msra.mxu0 0.0
        %1145 = vmatprep.subr.mxu0 0.0
        %1146 = vmatpush1.xpose.msra.mxu0 0.0
        %1147 = vmatprep.subr.mxu0 0.0
        %1148 = vmatpush1.xpose.msra.mxu0 0.0
        %1149 = vmatprep.subr.mxu0 0.0
        %1150 = vmatpush1.xpose.msra.mxu0 0.0
        %1151 = vmatprep.subr.mxu0 0.0
        %1152 = vmatpush1.xpose.msra.mxu0 0.0
        %1153 = vmatprep.subr.mxu0 0.0
        %1154 = vmatpush1.xpose.msra.mxu0 0.0
        %1155 = vmatprep.subr.mxu0 0.0
        %1156 = vmatpush1.xpose.msra.mxu0 0.0
        %1157 = vmatprep.subr.mxu0 0.0
        %1158 = vmatpush1.xpose.msra.mxu0 0.0
        %1159 = vmatprep.subr.mxu0 0.0
        %1160 = vmatpush1.xpose.msra.mxu0 0.0
        %1161 = vmatprep.mubr.f32.mxu0 0.0
        %1162 = vmatmul.mubr.f32.gmra.mrb[0].mxu0 %v1093
        %v1163 = vpop.f32.mrb[0].mxu0
        %v1164 = vadd.f32 %v859, %v1163
        %v1165 = vpop.f32.mrb[0].mxu0
        %1166 = vdwg.mxu0
        %1167 = vrot.lane.b32.xlu0 %v841, 96
        %v1168 = vpop.permute.xlu0 %1167
        %v1169 = vsel %vm864, %v841, 0
        %v1171 = vsel %vm864, %v1168, 0
        %1173 = vmatprep.subr.mxu0 0.0
        %1174 = vmatpush1.xpose.msra.mxu0 %v1171
        %1175 = vmatprep.subr.mxu0 0.0
        %1176 = vmatpush1.xpose.msra.mxu0 0.0
        %1177 = vmatprep.subr.mxu0 0.0
        %1178 = vmatpush1.xpose.msra.mxu0 0.0
        %1179 = vmatprep.subr.mxu0 0.0
        %1180 = vmatpush1.xpose.msra.mxu0 0.0
        %1181 = vmatprep.subr.mxu0 0.0
        %1182 = vmatpush1.xpose.msra.mxu0 0.0
        %1183 = vmatprep.subr.mxu0 0.0
        %1184 = vmatpush1.xpose.msra.mxu0 0.0
        %1185 = vmatprep.subr.mxu0 0.0
        %1186 = vmatpush1.xpose.msra.mxu0 0.0
        %1187 = vmatprep.subr.mxu0 0.0
        %1188 = vmatpush1.xpose.msra.mxu0 0.0
        %1189 = vmatprep.subr.mxu0 0.0
        %1190 = vmatpush1.xpose.msra.mxu0 0.0
        %1191 = vmatprep.subr.mxu0 0.0
        %1192 = vmatpush1.xpose.msra.mxu0 0.0
        %1193 = vmatprep.subr.mxu0 0.0
        %1194 = vmatpush1.xpose.msra.mxu0 0.0
        %1195 = vmatprep.subr.mxu0 0.0
        %1196 = vmatpush1.xpose.msra.mxu0 0.0
        %1197 = vmatprep.subr.mxu0 0.0
        %1198 = vmatpush1.xpose.msra.mxu0 0.0
        %1199 = vmatprep.subr.mxu0 0.0
        %1200 = vmatpush1.xpose.msra.mxu0 0.0
        %1201 = vmatprep.subr.mxu0 0.0
        %1202 = vmatpush1.xpose.msra.mxu0 0.0
        %1203 = vmatprep.subr.mxu0 0.0
        %1204 = vmatpush1.xpose.msra.mxu0 0.0
        %1205 = vmatprep.subr.mxu0 0.0
        %1206 = vmatpush1.xpose.msra.mxu0 0.0
        %1207 = vmatprep.subr.mxu0 0.0
        %1208 = vmatpush1.xpose.msra.mxu0 0.0
        %1209 = vmatprep.subr.mxu0 0.0
        %1210 = vmatpush1.xpose.msra.mxu0 0.0
        %1211 = vmatprep.subr.mxu0 0.0
        %1212 = vmatpush1.xpose.msra.mxu0 0.0
        %1213 = vmatprep.subr.mxu0 0.0
        %1214 = vmatpush1.xpose.msra.mxu0 0.0
        %1215 = vmatprep.subr.mxu0 0.0
        %1216 = vmatpush1.xpose.msra.mxu0 0.0
        %1217 = vmatprep.subr.mxu0 0.0
        %1218 = vmatpush1.xpose.msra.mxu0 0.0
        %1219 = vmatprep.subr.mxu0 0.0
        %1220 = vmatpush1.xpose.msra.mxu0 0.0
        %1221 = vmatprep.subr.mxu0 0.0
        %1222 = vmatpush1.xpose.msra.mxu0 0.0
        %1223 = vmatprep.subr.mxu0 0.0
        %1224 = vmatpush1.xpose.msra.mxu0 0.0
        %1225 = vmatprep.subr.mxu0 0.0
        %1226 = vmatpush1.xpose.msra.mxu0 0.0
        %1227 = vmatprep.subr.mxu0 0.0
        %1228 = vmatpush1.xpose.msra.mxu0 0.0
        %1229 = vmatprep.subr.mxu0 0.0
        %1230 = vmatpush1.xpose.msra.mxu0 0.0
        %1231 = vmatprep.subr.mxu0 0.0
        %1232 = vmatpush1.xpose.msra.mxu0 0.0
        %1233 = vmatprep.subr.mxu0 0.0
        %1234 = vmatpush1.xpose.msra.mxu0 0.0
        %1235 = vmatprep.subr.mxu0 0.0
        %1236 = vmatpush1.xpose.msra.mxu0 0.0
        %1237 = vmatprep.mubr.f32.mxu0 0.0
        %1238 = vmatmul.mubr.f32.gmra.mrb[0].mxu0 %v1169
        %v1239 = vpop.f32.mrb[0].mxu0
        %v1240 = vadd.f32 %v855, %v1239
        %v1241 = vpop.f32.mrb[0].mxu0
        %1242 = vdwg.mxu0
        %1243 = vrot.lane.b32.xlu0 %v843, 96
        %v1244 = vpop.permute.xlu0 %1243
        %v1245 = vsel %vm864, %v843, 0
        %v1247 = vsel %vm864, %v1244, 0
        %1249 = vmatprep.subr.mxu0 0.0
        %1250 = vmatpush1.xpose.msra.mxu0 %v1247
        %1251 = vmatprep.subr.mxu0 0.0
        %1252 = vmatpush1.xpose.msra.mxu0 0.0
        %1253 = vmatprep.subr.mxu0 0.0
        %1254 = vmatpush1.xpose.msra.mxu0 0.0
        %1255 = vmatprep.subr.mxu0 0.0
        %1256 = vmatpush1.xpose.msra.mxu0 0.0
        %1257 = vmatprep.subr.mxu0 0.0
        %1258 = vmatpush1.xpose.msra.mxu0 0.0
        %1259 = vmatprep.subr.mxu0 0.0
        %1260 = vmatpush1.xpose.msra.mxu0 0.0
        %1261 = vmatprep.subr.mxu0 0.0
        %1262 = vmatpush1.xpose.msra.mxu0 0.0
        %1263 = vmatprep.subr.mxu0 0.0
        %1264 = vmatpush1.xpose.msra.mxu0 0.0
        %1265 = vmatprep.subr.mxu0 0.0
        %1266 = vmatpush1.xpose.msra.mxu0 0.0
        %1267 = vmatprep.subr.mxu0 0.0
        %1268 = vmatpush1.xpose.msra.mxu0 0.0
        %1269 = vmatprep.subr.mxu0 0.0
        %1270 = vmatpush1.xpose.msra.mxu0 0.0
        %1271 = vmatprep.subr.mxu0 0.0
        %1272 = vmatpush1.xpose.msra.mxu0 0.0
        %1273 = vmatprep.subr.mxu0 0.0
        %1274 = vmatpush1.xpose.msra.mxu0 0.0
        %1275 = vmatprep.subr.mxu0 0.0
        %1276 = vmatpush1.xpose.msra.mxu0 0.0
        %1277 = vmatprep.subr.mxu0 0.0
        %1278 = vmatpush1.xpose.msra.mxu0 0.0
        %1279 = vmatprep.subr.mxu0 0.0
        %1280 = vmatpush1.xpose.msra.mxu0 0.0
        %1281 = vmatprep.subr.mxu0 0.0
        %1282 = vmatpush1.xpose.msra.mxu0 0.0
        %1283 = vmatprep.subr.mxu0 0.0
        %1284 = vmatpush1.xpose.msra.mxu0 0.0
        %1285 = vmatprep.subr.mxu0 0.0
        %1286 = vmatpush1.xpose.msra.mxu0 0.0
        %1287 = vmatprep.subr.mxu0 0.0
        %1288 = vmatpush1.xpose.msra.mxu0 0.0
        %1289 = vmatprep.subr.mxu0 0.0
        %1290 = vmatpush1.xpose.msra.mxu0 0.0
        %1291 = vmatprep.subr.mxu0 0.0
        %1292 = vmatpush1.xpose.msra.mxu0 0.0
        %1293 = vmatprep.subr.mxu0 0.0
        %1294 = vmatpush1.xpose.msra.mxu0 0.0
        %1295 = vmatprep.subr.mxu0 0.0
        %1296 = vmatpush1.xpose.msra.mxu0 0.0
        %1297 = vmatprep.subr.mxu0 0.0
        %1298 = vmatpush1.xpose.msra.mxu0 0.0
        %1299 = vmatprep.subr.mxu0 0.0
        %1300 = vmatpush1.xpose.msra.mxu0 0.0
        %1301 = vmatprep.subr.mxu0 0.0
        %1302 = vmatpush1.xpose.msra.mxu0 0.0
        %1303 = vmatprep.subr.mxu0 0.0
        %1304 = vmatpush1.xpose.msra.mxu0 0.0
        %1305 = vmatprep.subr.mxu0 0.0
        %1306 = vmatpush1.xpose.msra.mxu0 0.0
        %1307 = vmatprep.subr.mxu0 0.0
        %1308 = vmatpush1.xpose.msra.mxu0 0.0
        %1309 = vmatprep.subr.mxu0 0.0
        %1310 = vmatpush1.xpose.msra.mxu0 0.0
        %1311 = vmatprep.subr.mxu0 0.0
        %1312 = vmatpush1.xpose.msra.mxu0 0.0
        %1313 = vmatprep.mubr.f32.mxu0 0.0
        %1314 = vmatmul.mubr.f32.gmra.mrb[0].mxu0 %v1245
        %v1315 = vpop.f32.mrb[0].mxu0
        %v1316 = vadd.f32 %v859, %v1315
        %v1317 = vpop.f32.mrb[0].mxu0
        %1318 = vdwg.mxu0
        %1319 = vrot.lane.b32.xlu0 %v845, 96
        %v1320 = vpop.permute.xlu0 %1319
        %v1321 = vsel %vm864, %v845, 0
        %v1323 = vsel %vm864, %v1320, 0
        %1325 = vmatprep.subr.mxu0 0.0
        %1326 = vmatpush1.xpose.msra.mxu0 %v1323
        %1327 = vmatprep.subr.mxu0 0.0
        %1328 = vmatpush1.xpose.msra.mxu0 0.0
        %1329 = vmatprep.subr.mxu0 0.0
        %1330 = vmatpush1.xpose.msra.mxu0 0.0
        %1331 = vmatprep.subr.mxu0 0.0
        %1332 = vmatpush1.xpose.msra.mxu0 0.0
        %1333 = vmatprep.subr.mxu0 0.0
        %1334 = vmatpush1.xpose.msra.mxu0 0.0
        %1335 = vmatprep.subr.mxu0 0.0
        %1336 = vmatpush1.xpose.msra.mxu0 0.0
        %1337 = vmatprep.subr.mxu0 0.0
        %1338 = vmatpush1.xpose.msra.mxu0 0.0
        %1339 = vmatprep.subr.mxu0 0.0
        %1340 = vmatpush1.xpose.msra.mxu0 0.0
        %1341 = vmatprep.subr.mxu0 0.0
        %1342 = vmatpush1.xpose.msra.mxu0 0.0
        %1343 = vmatprep.subr.mxu0 0.0
        %1344 = vmatpush1.xpose.msra.mxu0 0.0
        %1345 = vmatprep.subr.mxu0 0.0
        %1346 = vmatpush1.xpose.msra.mxu0 0.0
        %1347 = vmatprep.subr.mxu0 0.0
        %1348 = vmatpush1.xpose.msra.mxu0 0.0
        %1349 = vmatprep.subr.mxu0 0.0
        %1350 = vmatpush1.xpose.msra.mxu0 0.0
        %1351 = vmatprep.subr.mxu0 0.0
        %1352 = vmatpush1.xpose.msra.mxu0 0.0
        %1353 = vmatprep.subr.mxu0 0.0
        %1354 = vmatpush1.xpose.msra.mxu0 0.0
        %1355 = vmatprep.subr.mxu0 0.0
        %1356 = vmatpush1.xpose.msra.mxu0 0.0
        %1357 = vmatprep.subr.mxu0 0.0
        %1358 = vmatpush1.xpose.msra.mxu0 0.0
        %1359 = vmatprep.subr.mxu0 0.0
        %1360 = vmatpush1.xpose.msra.mxu0 0.0
        %1361 = vmatprep.subr.mxu0 0.0
        %1362 = vmatpush1.xpose.msra.mxu0 0.0
        %1363 = vmatprep.subr.mxu0 0.0
        %1364 = vmatpush1.xpose.msra.mxu0 0.0
        %1365 = vmatprep.subr.mxu0 0.0
        %1366 = vmatpush1.xpose.msra.mxu0 0.0
        %1367 = vmatprep.subr.mxu0 0.0
        %1368 = vmatpush1.xpose.msra.mxu0 0.0
        %1369 = vmatprep.subr.mxu0 0.0
        %1370 = vmatpush1.xpose.msra.mxu0 0.0
        %1371 = vmatprep.subr.mxu0 0.0
        %1372 = vmatpush1.xpose.msra.mxu0 0.0
        %1373 = vmatprep.subr.mxu0 0.0
        %1374 = vmatpush1.xpose.msra.mxu0 0.0
        %1375 = vmatprep.subr.mxu0 0.0
        %1376 = vmatpush1.xpose.msra.mxu0 0.0
        %1377 = vmatprep.subr.mxu0 0.0
        %1378 = vmatpush1.xpose.msra.mxu0 0.0
        %1379 = vmatprep.subr.mxu0 0.0
        %1380 = vmatpush1.xpose.msra.mxu0 0.0
        %1381 = vmatprep.subr.mxu0 0.0
        %1382 = vmatpush1.xpose.msra.mxu0 0.0
        %1383 = vmatprep.subr.mxu0 0.0
        %1384 = vmatpush1.xpose.msra.mxu0 0.0
        %1385 = vmatprep.subr.mxu0 0.0
        %1386 = vmatpush1.xpose.msra.mxu0 0.0
        %1387 = vmatprep.subr.mxu0 0.0
        %1388 = vmatpush1.xpose.msra.mxu0 0.0
        %1389 = vmatprep.mubr.f32.mxu0 0.0
        %1390 = vmatmul.mubr.f32.gmra.mrb[0].mxu0 %v1321
        %v1391 = vpop.f32.mrb[0].mxu0
        %v1392 = vadd.f32 %v855, %v1391
        %v1393 = vpop.f32.mrb[0].mxu0
        %1394 = vdwg.mxu0
        %1395 = vrot.lane.b32.xlu0 %v847, 96
        %v1396 = vpop.permute.xlu0 %1395
        %v1397 = vsel %vm864, %v847, 0
        %v1399 = vsel %vm864, %v1396, 0
        %1401 = vmatprep.subr.mxu0 0.0
        %1402 = vmatpush1.xpose.msra.mxu0 %v1399
        %1403 = vmatprep.subr.mxu0 0.0
        %1404 = vmatpush1.xpose.msra.mxu0 0.0
        %1405 = vmatprep.subr.mxu0 0.0
        %1406 = vmatpush1.xpose.msra.mxu0 0.0
        %1407 = vmatprep.subr.mxu0 0.0
        %1408 = vmatpush1.xpose.msra.mxu0 0.0
        %1409 = vmatprep.subr.mxu0 0.0
        %1410 = vmatpush1.xpose.msra.mxu0 0.0
        %1411 = vmatprep.subr.mxu0 0.0
        %1412 = vmatpush1.xpose.msra.mxu0 0.0
        %1413 = vmatprep.subr.mxu0 0.0
        %1414 = vmatpush1.xpose.msra.mxu0 0.0
        %1415 = vmatprep.subr.mxu0 0.0
        %1416 = vmatpush1.xpose.msra.mxu0 0.0
        %1417 = vmatprep.subr.mxu0 0.0
        %1418 = vmatpush1.xpose.msra.mxu0 0.0
        %1419 = vmatprep.subr.mxu0 0.0
        %1420 = vmatpush1.xpose.msra.mxu0 0.0
        %1421 = vmatprep.subr.mxu0 0.0
        %1422 = vmatpush1.xpose.msra.mxu0 0.0
        %1423 = vmatprep.subr.mxu0 0.0
        %1424 = vmatpush1.xpose.msra.mxu0 0.0
        %1425 = vmatprep.subr.mxu0 0.0
        %1426 = vmatpush1.xpose.msra.mxu0 0.0
        %1427 = vmatprep.subr.mxu0 0.0
        %1428 = vmatpush1.xpose.msra.mxu0 0.0
        %1429 = vmatprep.subr.mxu0 0.0
        %1430 = vmatpush1.xpose.msra.mxu0 0.0
        %1431 = vmatprep.subr.mxu0 0.0
        %1432 = vmatpush1.xpose.msra.mxu0 0.0
        %1433 = vmatprep.subr.mxu0 0.0
        %1434 = vmatpush1.xpose.msra.mxu0 0.0
        %1435 = vmatprep.subr.mxu0 0.0
        %1436 = vmatpush1.xpose.msra.mxu0 0.0
        %1437 = vmatprep.subr.mxu0 0.0
        %1438 = vmatpush1.xpose.msra.mxu0 0.0
        %1439 = vmatprep.subr.mxu0 0.0
        %1440 = vmatpush1.xpose.msra.mxu0 0.0
        %1441 = vmatprep.subr.mxu0 0.0
        %1442 = vmatpush1.xpose.msra.mxu0 0.0
        %1443 = vmatprep.subr.mxu0 0.0
        %1444 = vmatpush1.xpose.msra.mxu0 0.0
        %1445 = vmatprep.subr.mxu0 0.0
        %1446 = vmatpush1.xpose.msra.mxu0 0.0
        %1447 = vmatprep.subr.mxu0 0.0
        %1448 = vmatpush1.xpose.msra.mxu0 0.0
        %1449 = vmatprep.subr.mxu0 0.0
        %1450 = vmatpush1.xpose.msra.mxu0 0.0
        %1451 = vmatprep.subr.mxu0 0.0
        %1452 = vmatpush1.xpose.msra.mxu0 0.0
        %1453 = vmatprep.subr.mxu0 0.0
        %1454 = vmatpush1.xpose.msra.mxu0 0.0
        %1455 = vmatprep.subr.mxu0 0.0
        %1456 = vmatpush1.xpose.msra.mxu0 0.0
        %1457 = vmatprep.subr.mxu0 0.0
        %1458 = vmatpush1.xpose.msra.mxu0 0.0
        %1459 = vmatprep.subr.mxu0 0.0
        %1460 = vmatpush1.xpose.msra.mxu0 0.0
        %1461 = vmatprep.subr.mxu0 0.0
        %1462 = vmatpush1.xpose.msra.mxu0 0.0
        %1463 = vmatprep.subr.mxu0 0.0
        %1464 = vmatpush1.xpose.msra.mxu0 0.0
        %1465 = vmatprep.mubr.f32.mxu0 0.0
        %1466 = vmatmul.mubr.f32.gmra.mrb[0].mxu0 %v1397
        %v1467 = vpop.f32.mrb[0].mxu0
        %v1468 = vadd.f32 %v859, %v1467
        %v1469 = vpop.f32.mrb[0].mxu0
        %1470 = vdwg.mxu0
        %v1471 = vsel %vm864, %v936, -inf
        %1472 = vmax.xlane.f32.xlu0 %v1471
        %v1473 = vpop.xlane.xlu0 %1472
        %v1474 = vsel %vm864, %v1012, -inf
        %1475 = vmax.xlane.f32.xlu0 %v1474
        %v1476 = vpop.xlane.xlu0 %1475
        %v1477 = vsel %vm864, %v1088, -inf
        %1478 = vmax.xlane.f32.xlu0 %v1477
        %v1479 = vpop.xlane.xlu0 %1478
        %v1480 = vsel %vm864, %v1164, -inf
        %1481 = vmax.xlane.f32.xlu0 %v1480
        %v1482 = vpop.xlane.xlu0 %1481
        %v1483 = vsel %vm864, %v1240, -inf
        %1484 = vmax.xlane.f32.xlu0 %v1483
        %v1485 = vpop.xlane.xlu0 %1484
        %v1486 = vsel %vm864, %v1316, -inf
        %1487 = vmax.xlane.f32.xlu0 %v1486
        %v1488 = vpop.xlane.xlu0 %1487
        %v1489 = vsel %vm864, %v1392, -inf
        %1490 = vmax.xlane.f32.xlu0 %v1489
        %v1491 = vpop.xlane.xlu0 %1490
        %v1492 = vsel %vm864, %v1468, -inf
        %1493 = vmax.xlane.f32.xlu0 %v1492
        %v1494 = vpop.xlane.xlu0 %1493
        %v1495 = vsub.f32 %v936, %v1473
        %v1496 = vsub.f32 %v1012, %v1476
        %v1497 = vsub.f32 %v1088, %v1479
        %v1498 = vsub.f32 %v1164, %v1482
        %v1499 = vsub.f32 %v1240, %v1485
        %v1500 = vsub.f32 %v1316, %v1488
        %v1501 = vsub.f32 %v1392, %v1491
        %v1502 = vsub.f32 %v1468, %v1494
        %v1503 = vmul.f32 %v1495, 1.442695
        %v1504 = vpow.pop %v1503
        %v1505 = vmul.f32 %v1496, 1.442695
        %v1506 = vpow.pop %v1505
        %v1507 = vmul.f32 %v1497, 1.442695
        %v1508 = vpow.pop %v1507
        %v1509 = vmul.f32 %v1498, 1.442695
        %v1510 = vpow.pop %v1509
        %v1511 = vmul.f32 %v1499, 1.442695
        %v1512 = vpow.pop %v1511
        %v1513 = vmul.f32 %v1500, 1.442695
        %v1514 = vpow.pop %v1513
        %v1515 = vmul.f32 %v1501, 1.442695
        %v1516 = vpow.pop %v1515
        %v1517 = vmul.f32 %v1502, 1.442695
        %v1518 = vpow.pop %v1517
        %v1519 = vsel %vm864, %v1504, 0.0
        %1520 = vadd.xlane.f32.xlu0 %v1519
        %v1521 = vpop.xlane.xlu0 %1520
        %v1522 = vsel %vm864, %v1506, 0.0
        %1523 = vadd.xlane.f32.xlu0 %v1522
        %v1524 = vpop.xlane.xlu0 %1523
        %v1525 = vsel %vm864, %v1508, 0.0
        %1526 = vadd.xlane.f32.xlu0 %v1525
        %v1527 = vpop.xlane.xlu0 %1526
        %v1528 = vsel %vm864, %v1510, 0.0
        %1529 = vadd.xlane.f32.xlu0 %v1528
        %v1530 = vpop.xlane.xlu0 %1529
        %v1531 = vsel %vm864, %v1512, 0.0
        %1532 = vadd.xlane.f32.xlu0 %v1531
        %v1533 = vpop.xlane.xlu0 %1532
        %v1534 = vsel %vm864, %v1514, 0.0
        %1535 = vadd.xlane.f32.xlu0 %v1534
        %v1536 = vpop.xlane.xlu0 %1535
        %v1537 = vsel %vm864, %v1516, 0.0
        %1538 = vadd.xlane.f32.xlu0 %v1537
        %v1539 = vpop.xlane.xlu0 %1538
        %v1540 = vsel %vm864, %v1518, 0.0
        %1541 = vadd.xlane.f32.xlu0 %v1540
        %v1542 = vpop.xlane.xlu0 %1541
        %v1543 = vrcp.pop %v1521
        %v1544 = vrcp.pop %v1524
        %v1545 = vrcp.pop %v1527
        %v1546 = vrcp.pop %v1530
        %v1547 = vrcp.pop %v1533
        %v1548 = vrcp.pop %v1536
        %v1549 = vrcp.pop %v1539
        %v1550 = vrcp.pop %v1542
        %v1551 = vmul.f32 %v1504, %v1543
        %v1552 = vmul.f32 %v1506, %v1544
        %v1553 = vmul.f32 %v1508, %v1545
        %v1554 = vmul.f32 %v1510, %v1546
        %v1555 = vmul.f32 %v1512, %v1547
        %v1556 = vmul.f32 %v1514, %v1548
        %v1557 = vmul.f32 %v1516, %v1549
        %v1558 = vmul.f32 %v1518, %v1550
        %1559 = vrot.lane.b32.xlu0 %v826, 64
        %v1560 = vpop.permute.xlu0 %1559
        %v1563 = vsel %vm864, %v1551, 0
        %1565 = vmatprep.subr.mxu0 0.0
        %1566 = vmatpush1.msra.mxu0 %v1560
        %1567 = vmatprep.subr.mxu0 0.0
        %1568 = vmatpush1.msra.mxu0 0.0
        %1569 = vmatprep.subr.mxu0 0.0
        %1570 = vmatpush1.msra.mxu0 0.0
        %1571 = vmatprep.subr.mxu0 0.0
        %1572 = vmatpush1.msra.mxu0 0.0
        %1573 = vmatprep.subr.mxu0 0.0
        %1574 = vmatpush1.msra.mxu0 0.0
        %1575 = vmatprep.subr.mxu0 0.0
        %1576 = vmatpush1.msra.mxu0 0.0
        %1577 = vmatprep.subr.mxu0 0.0
        %1578 = vmatpush1.msra.mxu0 0.0
        %1579 = vmatprep.subr.mxu0 0.0
        %1580 = vmatpush1.msra.mxu0 0.0
        %1581 = vmatprep.subr.mxu0 0.0
        %1582 = vmatpush1.msra.mxu0 0.0
        %1583 = vmatprep.subr.mxu0 0.0
        %1584 = vmatpush1.msra.mxu0 0.0
        %1585 = vmatprep.subr.mxu0 0.0
        %1586 = vmatpush1.msra.mxu0 0.0
        %1587 = vmatprep.subr.mxu0 0.0
        %1588 = vmatpush1.msra.mxu0 0.0
        %1589 = vmatprep.subr.mxu0 0.0
        %1590 = vmatpush1.msra.mxu0 0.0
        %1591 = vmatprep.subr.mxu0 0.0
        %1592 = vmatpush1.msra.mxu0 0.0
        %1593 = vmatprep.subr.mxu0 0.0
        %1594 = vmatpush1.msra.mxu0 0.0
        %1595 = vmatprep.subr.mxu0 0.0
        %1596 = vmatpush1.msra.mxu0 0.0
        %1597 = vmatprep.subr.mxu0 0.0
        %1598 = vmatpush1.msra.mxu0 0.0
        %1599 = vmatprep.subr.mxu0 0.0
        %1600 = vmatpush1.msra.mxu0 0.0
        %1601 = vmatprep.subr.mxu0 0.0
        %1602 = vmatpush1.msra.mxu0 0.0
        %1603 = vmatprep.subr.mxu0 0.0
        %1604 = vmatpush1.msra.mxu0 0.0
        %1605 = vmatprep.subr.mxu0 0.0
        %1606 = vmatpush1.msra.mxu0 0.0
        %1607 = vmatprep.subr.mxu0 0.0
        %1608 = vmatpush1.msra.mxu0 0.0
        %1609 = vmatprep.subr.mxu0 0.0
        %1610 = vmatpush1.msra.mxu0 0.0
        %1611 = vmatprep.subr.mxu0 0.0
        %1612 = vmatpush1.msra.mxu0 0.0
        %1613 = vmatprep.subr.mxu0 0.0
        %1614 = vmatpush1.msra.mxu0 0.0
        %1615 = vmatprep.subr.mxu0 0.0
        %1616 = vmatpush1.msra.mxu0 0.0
        %1617 = vmatprep.subr.mxu0 0.0
        %1618 = vmatpush1.msra.mxu0 0.0
        %1619 = vmatprep.subr.mxu0 0.0
        %1620 = vmatpush1.msra.mxu0 0.0
        %1621 = vmatprep.subr.mxu0 0.0
        %1622 = vmatpush1.msra.mxu0 0.0
        %1623 = vmatprep.subr.mxu0 0.0
        %1624 = vmatpush1.msra.mxu0 0.0
        %1625 = vmatprep.subr.mxu0 0.0
        %1626 = vmatpush1.msra.mxu0 0.0
        %1627 = vmatprep.subr.mxu0 0.0
        %1628 = vmatpush1.msra.mxu0 0.0
        %1629 = vmatprep.mubr.f32.mxu0 0.0
        %1630 = vmatmul.mubr.f32.gmra.mrb[0].mxu0 %v1563
        %v1631 = vpop.f32.mrb[0].mxu0
        %v1632 = vadd.f32 0.0, %v1631
        %v1633 = vpop.f32.mrb[0].mxu0
        %1634 = vdwg.mxu0
        %1635 = vrot.lane.b32.xlu0 %v831, 64
        %v1636 = vpop.permute.xlu0 %1635
        %v1639 = vsel %vm864, %v1552, 0
        %1641 = vmatprep.subr.mxu0 0.0
        %1642 = vmatpush1.msra.mxu0 %v1636
        %1643 = vmatprep.subr.mxu0 0.0
        %1644 = vmatpush1.msra.mxu0 0.0
        %1645 = vmatprep.subr.mxu0 0.0
        %1646 = vmatpush1.msra.mxu0 0.0
        %1647 = vmatprep.subr.mxu0 0.0
        %1648 = vmatpush1.msra.mxu0 0.0
        %1649 = vmatprep.subr.mxu0 0.0
        %1650 = vmatpush1.msra.mxu0 0.0
        %1651 = vmatprep.subr.mxu0 0.0
        %1652 = vmatpush1.msra.mxu0 0.0
        %1653 = vmatprep.subr.mxu0 0.0
        %1654 = vmatpush1.msra.mxu0 0.0
        %1655 = vmatprep.subr.mxu0 0.0
        %1656 = vmatpush1.msra.mxu0 0.0
        %1657 = vmatprep.subr.mxu0 0.0
        %1658 = vmatpush1.msra.mxu0 0.0
        %1659 = vmatprep.subr.mxu0 0.0
        %1660 = vmatpush1.msra.mxu0 0.0
        %1661 = vmatprep.subr.mxu0 0.0
        %1662 = vmatpush1.msra.mxu0 0.0
        %1663 = vmatprep.subr.mxu0 0.0
        %1664 = vmatpush1.msra.mxu0 0.0
        %1665 = vmatprep.subr.mxu0 0.0
        %1666 = vmatpush1.msra.mxu0 0.0
        %1667 = vmatprep.subr.mxu0 0.0
        %1668 = vmatpush1.msra.mxu0 0.0
        %1669 = vmatprep.subr.mxu0 0.0
        %1670 = vmatpush1.msra.mxu0 0.0
        %1671 = vmatprep.subr.mxu0 0.0
        %1672 = vmatpush1.msra.mxu0 0.0
        %1673 = vmatprep.subr.mxu0 0.0
        %1674 = vmatpush1.msra.mxu0 0.0
        %1675 = vmatprep.subr.mxu0 0.0
        %1676 = vmatpush1.msra.mxu0 0.0
        %1677 = vmatprep.subr.mxu0 0.0
        %1678 = vmatpush1.msra.mxu0 0.0
        %1679 = vmatprep.subr.mxu0 0.0
        %1680 = vmatpush1.msra.mxu0 0.0
        %1681 = vmatprep.subr.mxu0 0.0
        %1682 = vmatpush1.msra.mxu0 0.0
        %1683 = vmatprep.subr.mxu0 0.0
        %1684 = vmatpush1.msra.mxu0 0.0
        %1685 = vmatprep.subr.mxu0 0.0
        %1686 = vmatpush1.msra.mxu0 0.0
        %1687 = vmatprep.subr.mxu0 0.0
        %1688 = vmatpush1.msra.mxu0 0.0
        %1689 = vmatprep.subr.mxu0 0.0
        %1690 = vmatpush1.msra.mxu0 0.0
        %1691 = vmatprep.subr.mxu0 0.0
        %1692 = vmatpush1.msra.mxu0 0.0
        %1693 = vmatprep.subr.mxu0 0.0
        %1694 = vmatpush1.msra.mxu0 0.0
        %1695 = vmatprep.subr.mxu0 0.0
        %1696 = vmatpush1.msra.mxu0 0.0
        %1697 = vmatprep.subr.mxu0 0.0
        %1698 = vmatpush1.msra.mxu0 0.0
        %1699 = vmatprep.subr.mxu0 0.0
        %1700 = vmatpush1.msra.mxu0 0.0
        %1701 = vmatprep.subr.mxu0 0.0
        %1702 = vmatpush1.msra.mxu0 0.0
        %1703 = vmatprep.subr.mxu0 0.0
        %1704 = vmatpush1.msra.mxu0 0.0
        %1705 = vmatprep.mubr.f32.mxu0 0.0
        %1706 = vmatmul.mubr.f32.gmra.mrb[0].mxu0 %v1639
        %v1707 = vpop.f32.mrb[0].mxu0
        %v1708 = vadd.f32 0.0, %v1707
        %v1709 = vpop.f32.mrb[0].mxu0
        %1710 = vdwg.mxu0
        %1711 = vrot.lane.b32.xlu0 %v837, 64
        %v1712 = vpop.permute.xlu0 %1711
        %v1715 = vsel %vm864, %v1553, 0
        %1717 = vmatprep.subr.mxu0 0.0
        %1718 = vmatpush1.msra.mxu0 %v1712
        %1719 = vmatprep.subr.mxu0 0.0
        %1720 = vmatpush1.msra.mxu0 0.0
        %1721 = vmatprep.subr.mxu0 0.0
        %1722 = vmatpush1.msra.mxu0 0.0
        %1723 = vmatprep.subr.mxu0 0.0
        %1724 = vmatpush1.msra.mxu0 0.0
        %1725 = vmatprep.subr.mxu0 0.0
        %1726 = vmatpush1.msra.mxu0 0.0
        %1727 = vmatprep.subr.mxu0 0.0
        %1728 = vmatpush1.msra.mxu0 0.0
        %1729 = vmatprep.subr.mxu0 0.0
        %1730 = vmatpush1.msra.mxu0 0.0
        %1731 = vmatprep.subr.mxu0 0.0
        %1732 = vmatpush1.msra.mxu0 0.0
        %1733 = vmatprep.subr.mxu0 0.0
        %1734 = vmatpush1.msra.mxu0 0.0
        %1735 = vmatprep.subr.mxu0 0.0
        %1736 = vmatpush1.msra.mxu0 0.0
        %1737 = vmatprep.subr.mxu0 0.0
        %1738 = vmatpush1.msra.mxu0 0.0
        %1739 = vmatprep.subr.mxu0 0.0
        %1740 = vmatpush1.msra.mxu0 0.0
        %1741 = vmatprep.subr.mxu0 0.0
        %1742 = vmatpush1.msra.mxu0 0.0
        %1743 = vmatprep.subr.mxu0 0.0
        %1744 = vmatpush1.msra.mxu0 0.0
        %1745 = vmatprep.subr.mxu0 0.0
        %1746 = vmatpush1.msra.mxu0 0.0
        %1747 = vmatprep.subr.mxu0 0.0
        %1748 = vmatpush1.msra.mxu0 0.0
        %1749 = vmatprep.subr.mxu0 0.0
        %1750 = vmatpush1.msra.mxu0 0.0
        %1751 = vmatprep.subr.mxu0 0.0
        %1752 = vmatpush1.msra.mxu0 0.0
        %1753 = vmatprep.subr.mxu0 0.0
        %1754 = vmatpush1.msra.mxu0 0.0
        %1755 = vmatprep.subr.mxu0 0.0
        %1756 = vmatpush1.msra.mxu0 0.0
        %1757 = vmatprep.subr.mxu0 0.0
        %1758 = vmatpush1.msra.mxu0 0.0
        %1759 = vmatprep.subr.mxu0 0.0
        %1760 = vmatpush1.msra.mxu0 0.0
        %1761 = vmatprep.subr.mxu0 0.0
        %1762 = vmatpush1.msra.mxu0 0.0
        %1763 = vmatprep.subr.mxu0 0.0
        %1764 = vmatpush1.msra.mxu0 0.0
        %1765 = vmatprep.subr.mxu0 0.0
        %1766 = vmatpush1.msra.mxu0 0.0
        %1767 = vmatprep.subr.mxu0 0.0
        %1768 = vmatpush1.msra.mxu0 0.0
        %1769 = vmatprep.subr.mxu0 0.0
        %1770 = vmatpush1.msra.mxu0 0.0
        %1771 = vmatprep.subr.mxu0 0.0
        %1772 = vmatpush1.msra.mxu0 0.0
        %1773 = vmatprep.subr.mxu0 0.0
        %1774 = vmatpush1.msra.mxu0 0.0
        %1775 = vmatprep.subr.mxu0 0.0
        %1776 = vmatpush1.msra.mxu0 0.0
        %1777 = vmatprep.subr.mxu0 0.0
        %1778 = vmatpush1.msra.mxu0 0.0
        %1779 = vmatprep.subr.mxu0 0.0
        %1780 = vmatpush1.msra.mxu0 0.0
        %1781 = vmatprep.mubr.f32.mxu0 0.0
        %1782 = vmatmul.mubr.f32.gmra.mrb[0].mxu0 %v1715
        %v1783 = vpop.f32.mrb[0].mxu0
        %v1784 = vadd.f32 0.0, %v1783
        %v1785 = vpop.f32.mrb[0].mxu0
        %1786 = vdwg.mxu0
        %1787 = vrot.lane.b32.xlu0 %v839, 64
        %v1788 = vpop.permute.xlu0 %1787
        %v1791 = vsel %vm864, %v1554, 0
        %1793 = vmatprep.subr.mxu0 0.0
        %1794 = vmatpush1.msra.mxu0 %v1788
        %1795 = vmatprep.subr.mxu0 0.0
        %1796 = vmatpush1.msra.mxu0 0.0
        %1797 = vmatprep.subr.mxu0 0.0
        %1798 = vmatpush1.msra.mxu0 0.0
        %1799 = vmatprep.subr.mxu0 0.0
        %1800 = vmatpush1.msra.mxu0 0.0
        %1801 = vmatprep.subr.mxu0 0.0
        %1802 = vmatpush1.msra.mxu0 0.0
        %1803 = vmatprep.subr.mxu0 0.0
        %1804 = vmatpush1.msra.mxu0 0.0
        %1805 = vmatprep.subr.mxu0 0.0
        %1806 = vmatpush1.msra.mxu0 0.0
        %1807 = vmatprep.subr.mxu0 0.0
        %1808 = vmatpush1.msra.mxu0 0.0
        %1809 = vmatprep.subr.mxu0 0.0
        %1810 = vmatpush1.msra.mxu0 0.0
        %1811 = vmatprep.subr.mxu0 0.0
        %1812 = vmatpush1.msra.mxu0 0.0
        %1813 = vmatprep.subr.mxu0 0.0
        %1814 = vmatpush1.msra.mxu0 0.0
        %1815 = vmatprep.subr.mxu0 0.0
        %1816 = vmatpush1.msra.mxu0 0.0
        %1817 = vmatprep.subr.mxu0 0.0
        %1818 = vmatpush1.msra.mxu0 0.0
        %1819 = vmatprep.subr.mxu0 0.0
        %1820 = vmatpush1.msra.mxu0 0.0
        %1821 = vmatprep.subr.mxu0 0.0
        %1822 = vmatpush1.msra.mxu0 0.0
        %1823 = vmatprep.subr.mxu0 0.0
        %1824 = vmatpush1.msra.mxu0 0.0
        %1825 = vmatprep.subr.mxu0 0.0
        %1826 = vmatpush1.msra.mxu0 0.0
        %1827 = vmatprep.subr.mxu0 0.0
        %1828 = vmatpush1.msra.mxu0 0.0
        %1829 = vmatprep.subr.mxu0 0.0
        %1830 = vmatpush1.msra.mxu0 0.0
        %1831 = vmatprep.subr.mxu0 0.0
        %1832 = vmatpush1.msra.mxu0 0.0
        %1833 = vmatprep.subr.mxu0 0.0
        %1834 = vmatpush1.msra.mxu0 0.0
        %1835 = vmatprep.subr.mxu0 0.0
        %1836 = vmatpush1.msra.mxu0 0.0
        %1837 = vmatprep.subr.mxu0 0.0
        %1838 = vmatpush1.msra.mxu0 0.0
        %1839 = vmatprep.subr.mxu0 0.0
        %1840 = vmatpush1.msra.mxu0 0.0
        %1841 = vmatprep.subr.mxu0 0.0
        %1842 = vmatpush1.msra.mxu0 0.0
        %1843 = vmatprep.subr.mxu0 0.0
        %1844 = vmatpush1.msra.mxu0 0.0
        %1845 = vmatprep.subr.mxu0 0.0
        %1846 = vmatpush1.msra.mxu0 0.0
        %1847 = vmatprep.subr.mxu0 0.0
        %1848 = vmatpush1.msra.mxu0 0.0
        %1849 = vmatprep.subr.mxu0 0.0
        %1850 = vmatpush1.msra.mxu0 0.0
        %1851 = vmatprep.subr.mxu0 0.0
        %1852 = vmatpush1.msra.mxu0 0.0
        %1853 = vmatprep.subr.mxu0 0.0
        %1854 = vmatpush1.msra.mxu0 0.0
        %1855 = vmatprep.subr.mxu0 0.0
        %1856 = vmatpush1.msra.mxu0 0.0
        %1857 = vmatprep.mubr.f32.mxu0 0.0
        %1858 = vmatmul.mubr.f32.gmra.mrb[0].mxu0 %v1791
        %v1859 = vpop.f32.mrb[0].mxu0
        %v1860 = vadd.f32 0.0, %v1859
        %v1861 = vpop.f32.mrb[0].mxu0
        %1862 = vdwg.mxu0
        %1863 = vrot.lane.b32.xlu0 %v841, 64
        %v1864 = vpop.permute.xlu0 %1863
        %v1867 = vsel %vm864, %v1555, 0
        %1869 = vmatprep.subr.mxu0 0.0
        %1870 = vmatpush1.msra.mxu0 %v1864
        %1871 = vmatprep.subr.mxu0 0.0
        %1872 = vmatpush1.msra.mxu0 0.0
        %1873 = vmatprep.subr.mxu0 0.0
        %1874 = vmatpush1.msra.mxu0 0.0
        %1875 = vmatprep.subr.mxu0 0.0
        %1876 = vmatpush1.msra.mxu0 0.0
        %1877 = vmatprep.subr.mxu0 0.0
        %1878 = vmatpush1.msra.mxu0 0.0
        %1879 = vmatprep.subr.mxu0 0.0
        %1880 = vmatpush1.msra.mxu0 0.0
        %1881 = vmatprep.subr.mxu0 0.0
        %1882 = vmatpush1.msra.mxu0 0.0
        %1883 = vmatprep.subr.mxu0 0.0
        %1884 = vmatpush1.msra.mxu0 0.0
        %1885 = vmatprep.subr.mxu0 0.0
        %1886 = vmatpush1.msra.mxu0 0.0
        %1887 = vmatprep.subr.mxu0 0.0
        %1888 = vmatpush1.msra.mxu0 0.0
        %1889 = vmatprep.subr.mxu0 0.0
        %1890 = vmatpush1.msra.mxu0 0.0
        %1891 = vmatprep.subr.mxu0 0.0
        %1892 = vmatpush1.msra.mxu0 0.0
        %1893 = vmatprep.subr.mxu0 0.0
        %1894 = vmatpush1.msra.mxu0 0.0
        %1895 = vmatprep.subr.mxu0 0.0
        %1896 = vmatpush1.msra.mxu0 0.0
        %1897 = vmatprep.subr.mxu0 0.0
        %1898 = vmatpush1.msra.mxu0 0.0
        %1899 = vmatprep.subr.mxu0 0.0
        %1900 = vmatpush1.msra.mxu0 0.0
        %1901 = vmatprep.subr.mxu0 0.0
        %1902 = vmatpush1.msra.mxu0 0.0
        %1903 = vmatprep.subr.mxu0 0.0
        %1904 = vmatpush1.msra.mxu0 0.0
        %1905 = vmatprep.subr.mxu0 0.0
        %1906 = vmatpush1.msra.mxu0 0.0
        %1907 = vmatprep.subr.mxu0 0.0
        %1908 = vmatpush1.msra.mxu0 0.0
        %1909 = vmatprep.subr.mxu0 0.0
        %1910 = vmatpush1.msra.mxu0 0.0
        %1911 = vmatprep.subr.mxu0 0.0
        %1912 = vmatpush1.msra.mxu0 0.0
        %1913 = vmatprep.subr.mxu0 0.0
        %1914 = vmatpush1.msra.mxu0 0.0
        %1915 = vmatprep.subr.mxu0 0.0
        %1916 = vmatpush1.msra.mxu0 0.0
        %1917 = vmatprep.subr.mxu0 0.0
        %1918 = vmatpush1.msra.mxu0 0.0
        %1919 = vmatprep.subr.mxu0 0.0
        %1920 = vmatpush1.msra.mxu0 0.0
        %1921 = vmatprep.subr.mxu0 0.0
        %1922 = vmatpush1.msra.mxu0 0.0
        %1923 = vmatprep.subr.mxu0 0.0
        %1924 = vmatpush1.msra.mxu0 0.0
        %1925 = vmatprep.subr.mxu0 0.0
        %1926 = vmatpush1.msra.mxu0 0.0
        %1927 = vmatprep.subr.mxu0 0.0
        %1928 = vmatpush1.msra.mxu0 0.0
        %1929 = vmatprep.subr.mxu0 0.0
        %1930 = vmatpush1.msra.mxu0 0.0
        %1931 = vmatprep.subr.mxu0 0.0
        %1932 = vmatpush1.msra.mxu0 0.0
        %1933 = vmatprep.mubr.f32.mxu0 0.0
        %1934 = vmatmul.mubr.f32.gmra.mrb[0].mxu0 %v1867
        %v1935 = vpop.f32.mrb[0].mxu0
        %v1936 = vadd.f32 0.0, %v1935
        %v1937 = vpop.f32.mrb[0].mxu0
        %1938 = vdwg.mxu0
        %1939 = vrot.lane.b32.xlu0 %v843, 64
        %v1940 = vpop.permute.xlu0 %1939
        %v1943 = vsel %vm864, %v1556, 0
        %1945 = vmatprep.subr.mxu0 0.0
        %1946 = vmatpush1.msra.mxu0 %v1940
        %1947 = vmatprep.subr.mxu0 0.0
        %1948 = vmatpush1.msra.mxu0 0.0
        %1949 = vmatprep.subr.mxu0 0.0
        %1950 = vmatpush1.msra.mxu0 0.0
        %1951 = vmatprep.subr.mxu0 0.0
        %1952 = vmatpush1.msra.mxu0 0.0
        %1953 = vmatprep.subr.mxu0 0.0
        %1954 = vmatpush1.msra.mxu0 0.0
        %1955 = vmatprep.subr.mxu0 0.0
        %1956 = vmatpush1.msra.mxu0 0.0
        %1957 = vmatprep.subr.mxu0 0.0
        %1958 = vmatpush1.msra.mxu0 0.0
        %1959 = vmatprep.subr.mxu0 0.0
        %1960 = vmatpush1.msra.mxu0 0.0
        %1961 = vmatprep.subr.mxu0 0.0
        %1962 = vmatpush1.msra.mxu0 0.0
        %1963 = vmatprep.subr.mxu0 0.0
        %1964 = vmatpush1.msra.mxu0 0.0
        %1965 = vmatprep.subr.mxu0 0.0
        %1966 = vmatpush1.msra.mxu0 0.0
        %1967 = vmatprep.subr.mxu0 0.0
        %1968 = vmatpush1.msra.mxu0 0.0
        %1969 = vmatprep.subr.mxu0 0.0
        %1970 = vmatpush1.msra.mxu0 0.0
        %1971 = vmatprep.subr.mxu0 0.0
        %1972 = vmatpush1.msra.mxu0 0.0
        %1973 = vmatprep.subr.mxu0 0.0
        %1974 = vmatpush1.msra.mxu0 0.0
        %1975 = vmatprep.subr.mxu0 0.0
        %1976 = vmatpush1.msra.mxu0 0.0
        %1977 = vmatprep.subr.mxu0 0.0
        %1978 = vmatpush1.msra.mxu0 0.0
        %1979 = vmatprep.subr.mxu0 0.0
        %1980 = vmatpush1.msra.mxu0 0.0
        %1981 = vmatprep.subr.mxu0 0.0
        %1982 = vmatpush1.msra.mxu0 0.0
        %1983 = vmatprep.subr.mxu0 0.0
        %1984 = vmatpush1.msra.mxu0 0.0
        %1985 = vmatprep.subr.mxu0 0.0
        %1986 = vmatpush1.msra.mxu0 0.0
        %1987 = vmatprep.subr.mxu0 0.0
        %1988 = vmatpush1.msra.mxu0 0.0
        %1989 = vmatprep.subr.mxu0 0.0
        %1990 = vmatpush1.msra.mxu0 0.0
        %1991 = vmatprep.subr.mxu0 0.0
        %1992 = vmatpush1.msra.mxu0 0.0
        %1993 = vmatprep.subr.mxu0 0.0
        %1994 = vmatpush1.msra.mxu0 0.0
        %1995 = vmatprep.subr.mxu0 0.0
        %1996 = vmatpush1.msra.mxu0 0.0
        %1997 = vmatprep.subr.mxu0 0.0
        %1998 = vmatpush1.msra.mxu0 0.0
        %1999 = vmatprep.subr.mxu0 0.0
        %2000 = vmatpush1.msra.mxu0 0.0
        %2001 = vmatprep.subr.mxu0 0.0
        %2002 = vmatpush1.msra.mxu0 0.0
        %2003 = vmatprep.subr.mxu0 0.0
        %2004 = vmatpush1.msra.mxu0 0.0
        %2005 = vmatprep.subr.mxu0 0.0
        %2006 = vmatpush1.msra.mxu0 0.0
        %2007 = vmatprep.subr.mxu0 0.0
        %2008 = vmatpush1.msra.mxu0 0.0
        %2009 = vmatprep.mubr.f32.mxu0 0.0
        %2010 = vmatmul.mubr.f32.gmra.mrb[0].mxu0 %v1943
        %v2011 = vpop.f32.mrb[0].mxu0
        %v2012 = vadd.f32 0.0, %v2011
        %v2013 = vpop.f32.mrb[0].mxu0
        %2014 = vdwg.mxu0
        %2015 = vrot.lane.b32.xlu0 %v845, 64
        %v2016 = vpop.permute.xlu0 %2015
        %v2019 = vsel %vm864, %v1557, 0
        %2021 = vmatprep.subr.mxu0 0.0
        %2022 = vmatpush1.msra.mxu0 %v2016
        %2023 = vmatprep.subr.mxu0 0.0
        %2024 = vmatpush1.msra.mxu0 0.0
        %2025 = vmatprep.subr.mxu0 0.0
        %2026 = vmatpush1.msra.mxu0 0.0
        %2027 = vmatprep.subr.mxu0 0.0
        %2028 = vmatpush1.msra.mxu0 0.0
        %2029 = vmatprep.subr.mxu0 0.0
        %2030 = vmatpush1.msra.mxu0 0.0
        %2031 = vmatprep.subr.mxu0 0.0
        %2032 = vmatpush1.msra.mxu0 0.0
        %2033 = vmatprep.subr.mxu0 0.0
        %2034 = vmatpush1.msra.mxu0 0.0
        %2035 = vmatprep.subr.mxu0 0.0
        %2036 = vmatpush1.msra.mxu0 0.0
        %2037 = vmatprep.subr.mxu0 0.0
        %2038 = vmatpush1.msra.mxu0 0.0
        %2039 = vmatprep.subr.mxu0 0.0
        %2040 = vmatpush1.msra.mxu0 0.0
        %2041 = vmatprep.subr.mxu0 0.0
        %2042 = vmatpush1.msra.mxu0 0.0
        %2043 = vmatprep.subr.mxu0 0.0
        %2044 = vmatpush1.msra.mxu0 0.0
        %2045 = vmatprep.subr.mxu0 0.0
        %2046 = vmatpush1.msra.mxu0 0.0
        %2047 = vmatprep.subr.mxu0 0.0
        %2048 = vmatpush1.msra.mxu0 0.0
        %2049 = vmatprep.subr.mxu0 0.0
        %2050 = vmatpush1.msra.mxu0 0.0
        %2051 = vmatprep.subr.mxu0 0.0
        %2052 = vmatpush1.msra.mxu0 0.0
        %2053 = vmatprep.subr.mxu0 0.0
        %2054 = vmatpush1.msra.mxu0 0.0
        %2055 = vmatprep.subr.mxu0 0.0
        %2056 = vmatpush1.msra.mxu0 0.0
        %2057 = vmatprep.subr.mxu0 0.0
        %2058 = vmatpush1.msra.mxu0 0.0
        %2059 = vmatprep.subr.mxu0 0.0
        %2060 = vmatpush1.msra.mxu0 0.0
        %2061 = vmatprep.subr.mxu0 0.0
        %2062 = vmatpush1.msra.mxu0 0.0
        %2063 = vmatprep.subr.mxu0 0.0
        %2064 = vmatpush1.msra.mxu0 0.0
        %2065 = vmatprep.subr.mxu0 0.0
        %2066 = vmatpush1.msra.mxu0 0.0
        %2067 = vmatprep.subr.mxu0 0.0
        %2068 = vmatpush1.msra.mxu0 0.0
        %2069 = vmatprep.subr.mxu0 0.0
        %2070 = vmatpush1.msra.mxu0 0.0
        %2071 = vmatprep.subr.mxu0 0.0
        %2072 = vmatpush1.msra.mxu0 0.0
        %2073 = vmatprep.subr.mxu0 0.0
        %2074 = vmatpush1.msra.mxu0 0.0
        %2075 = vmatprep.subr.mxu0 0.0
        %2076 = vmatpush1.msra.mxu0 0.0
        %2077 = vmatprep.subr.mxu0 0.0
        %2078 = vmatpush1.msra.mxu0 0.0
        %2079 = vmatprep.subr.mxu0 0.0
        %2080 = vmatpush1.msra.mxu0 0.0
        %2081 = vmatprep.subr.mxu0 0.0
        %2082 = vmatpush1.msra.mxu0 0.0
        %2083 = vmatprep.subr.mxu0 0.0
        %2084 = vmatpush1.msra.mxu0 0.0
        %2085 = vmatprep.mubr.f32.mxu0 0.0
        %2086 = vmatmul.mubr.f32.gmra.mrb[0].mxu0 %v2019
        %v2087 = vpop.f32.mrb[0].mxu0
        %v2088 = vadd.f32 0.0, %v2087
        %v2089 = vpop.f32.mrb[0].mxu0
        %2090 = vdwg.mxu0
        %2091 = vrot.lane.b32.xlu0 %v847, 64
        %v2092 = vpop.permute.xlu0 %2091
        %v2095 = vsel %vm864, %v1558, 0
        %2097 = vmatprep.subr.mxu0 0.0
        %2098 = vmatpush1.msra.mxu0 %v2092
        %2099 = vmatprep.subr.mxu0 0.0
        %2100 = vmatpush1.msra.mxu0 0.0
        %2101 = vmatprep.subr.mxu0 0.0
        %2102 = vmatpush1.msra.mxu0 0.0
        %2103 = vmatprep.subr.mxu0 0.0
        %2104 = vmatpush1.msra.mxu0 0.0
        %2105 = vmatprep.subr.mxu0 0.0
        %2106 = vmatpush1.msra.mxu0 0.0
        %2107 = vmatprep.subr.mxu0 0.0
        %2108 = vmatpush1.msra.mxu0 0.0
        %2109 = vmatprep.subr.mxu0 0.0
        %2110 = vmatpush1.msra.mxu0 0.0
        %2111 = vmatprep.subr.mxu0 0.0
        %2112 = vmatpush1.msra.mxu0 0.0
        %2113 = vmatprep.subr.mxu0 0.0
        %2114 = vmatpush1.msra.mxu0 0.0
        %2115 = vmatprep.subr.mxu0 0.0
        %2116 = vmatpush1.msra.mxu0 0.0
        %2117 = vmatprep.subr.mxu0 0.0
        %2118 = vmatpush1.msra.mxu0 0.0
        %2119 = vmatprep.subr.mxu0 0.0
        %2120 = vmatpush1.msra.mxu0 0.0
        %2121 = vmatprep.subr.mxu0 0.0
        %2122 = vmatpush1.msra.mxu0 0.0
        %2123 = vmatprep.subr.mxu0 0.0
        %2124 = vmatpush1.msra.mxu0 0.0
        %2125 = vmatprep.subr.mxu0 0.0
        %2126 = vmatpush1.msra.mxu0 0.0
        %2127 = vmatprep.subr.mxu0 0.0
        %2128 = vmatpush1.msra.mxu0 0.0
        %2129 = vmatprep.subr.mxu0 0.0
        %2130 = vmatpush1.msra.mxu0 0.0
        %2131 = vmatprep.subr.mxu0 0.0
        %2132 = vmatpush1.msra.mxu0 0.0
        %2133 = vmatprep.subr.mxu0 0.0
        %2134 = vmatpush1.msra.mxu0 0.0
        %2135 = vmatprep.subr.mxu0 0.0
        %2136 = vmatpush1.msra.mxu0 0.0
        %2137 = vmatprep.subr.mxu0 0.0
        %2138 = vmatpush1.msra.mxu0 0.0
        %2139 = vmatprep.subr.mxu0 0.0
        %2140 = vmatpush1.msra.mxu0 0.0
        %2141 = vmatprep.subr.mxu0 0.0
        %2142 = vmatpush1.msra.mxu0 0.0
        %2143 = vmatprep.subr.mxu0 0.0
        %2144 = vmatpush1.msra.mxu0 0.0
        %2145 = vmatprep.subr.mxu0 0.0
        %2146 = vmatpush1.msra.mxu0 0.0
        %2147 = vmatprep.subr.mxu0 0.0
        %2148 = vmatpush1.msra.mxu0 0.0
        %2149 = vmatprep.subr.mxu0 0.0
        %2150 = vmatpush1.msra.mxu0 0.0
        %2151 = vmatprep.subr.mxu0 0.0
        %2152 = vmatpush1.msra.mxu0 0.0
        %2153 = vmatprep.subr.mxu0 0.0
        %2154 = vmatpush1.msra.mxu0 0.0
        %2155 = vmatprep.subr.mxu0 0.0
        %2156 = vmatpush1.msra.mxu0 0.0
        %2157 = vmatprep.subr.mxu0 0.0
        %2158 = vmatpush1.msra.mxu0 0.0
        %2159 = vmatprep.subr.mxu0 0.0
        %2160 = vmatpush1.msra.mxu0 0.0
        %2161 = vmatprep.mubr.f32.mxu0 0.0
        %2162 = vmatmul.mubr.f32.gmra.mrb[0].mxu0 %v2095
        %v2163 = vpop.f32.mrb[0].mxu0
        %v2164 = vadd.f32 0.0, %v2163
        %v2165 = vpop.f32.mrb[0].mxu0
        %2166 = vdwg.mxu0
        %2169 = vrot.lane.b32.xlu0 %v1784, 8
        %v2170 = vpop.permute.xlu0 %2169
        %2171 = vrot.lane.b32.xlu0 %v1860, 8
        %v2172 = vpop.permute.xlu0 %2171
        %2177 = vrot.lane.b32.xlu0 %v1936, 16
        %v2178 = vpop.permute.xlu0 %2177
        %2179 = vrot.lane.b32.xlu0 %v2012, 16
        %v2180 = vpop.permute.xlu0 %2179
        %2185 = vrot.lane.b32.xlu0 %v2088, 24
        %v2186 = vpop.permute.xlu0 %2185
        %2187 = vrot.lane.b32.xlu0 %v2164, 24
        %v2188 = vpop.permute.xlu0 %2187
        %v2191 = vsel %vm864, %v1632, %v2170
        %v2192 = vsel %vm864, %v1708, %v2172
        %vm2193 = vcmask 130048
        %v2194 = vsel %vm2193, %v2191, %v2178
        %v2195 = vsel %vm2193, %v2192, %v2180
        %vm2196 = vcmask 195584
        %v2197 = vsel %vm2196, %v2194, %v2186
        %v2198 = vsel %vm2196, %v2195, %v2188
        %v2199 = vld [vmem:[%s694] sm:$0xff]
        %v2200 = vld [vmem:[%s694 + $0x8] sm:$0xff]
        %v2201 = vld [vmem:[%s694 + $0x10] sm:$0xff]
        %v2202 = vld [vmem:[%s694 + $0x18] sm:$0xff]
        %v2203 = vld [vmem:[%s697] sm:$0x1]
        %v2205 = vlaneseq
        %v2206 = vshrl.u32 %v2205, 7
        %v2207 = vsub.s32 0, %v2206
        %v2208 = vrot.slane %v2203, %v2207
        %v2211 = vsel %vm752, %v2197, 0
        %v2214 = vsel %vm752, %v2198, 0
        %2216 = vmatprep.subr.mxu0 0.0
        %2217 = vmatpush1.msra.mxu0 %v2199
        %2218 = vmatprep.subr.mxu0 0.0
        %2219 = vmatpush1.msra.mxu0 %v2200
        %2220 = vmatprep.subr.mxu0 0.0
        %2221 = vmatpush1.msra.mxu0 %v2201
        %2222 = vmatprep.subr.mxu0 0.0
        %2223 = vmatpush1.msra.mxu0 %v2202
        %2224 = vmatprep.subr.mxu0 0.0
        %2225 = vmatpush1.msra.mxu0 0.0
        %2226 = vmatprep.subr.mxu0 0.0
        %2227 = vmatpush1.msra.mxu0 0.0
        %2228 = vmatprep.subr.mxu0 0.0
        %2229 = vmatpush1.msra.mxu0 0.0
        %2230 = vmatprep.subr.mxu0 0.0
        %2231 = vmatpush1.msra.mxu0 0.0
        %2232 = vmatprep.subr.mxu0 0.0
        %2233 = vmatpush1.msra.mxu0 0.0
        %2234 = vmatprep.subr.mxu0 0.0
        %2235 = vmatpush1.msra.mxu0 0.0
        %2236 = vmatprep.subr.mxu0 0.0
        %2237 = vmatpush1.msra.mxu0 0.0
        %2238 = vmatprep.subr.mxu0 0.0
        %2239 = vmatpush1.msra.mxu0 0.0
        %2240 = vmatprep.subr.mxu0 0.0
        %2241 = vmatpush1.msra.mxu0 0.0
        %2242 = vmatprep.subr.mxu0 0.0
        %2243 = vmatpush1.msra.mxu0 0.0
        %2244 = vmatprep.subr.mxu0 0.0
        %2245 = vmatpush1.msra.mxu0 0.0
        %2246 = vmatprep.subr.mxu0 0.0
        %2247 = vmatpush1.msra.mxu0 0.0
        %2248 = vmatprep.subr.mxu0 0.0
        %2249 = vmatpush1.msra.mxu0 0.0
        %2250 = vmatprep.subr.mxu0 0.0
        %2251 = vmatpush1.msra.mxu0 0.0
        %2252 = vmatprep.subr.mxu0 0.0
        %2253 = vmatpush1.msra.mxu0 0.0
        %2254 = vmatprep.subr.mxu0 0.0
        %2255 = vmatpush1.msra.mxu0 0.0
        %2256 = vmatprep.subr.mxu0 0.0
        %2257 = vmatpush1.msra.mxu0 0.0
        %2258 = vmatprep.subr.mxu0 0.0
        %2259 = vmatpush1.msra.mxu0 0.0
        %2260 = vmatprep.subr.mxu0 0.0
        %2261 = vmatpush1.msra.mxu0 0.0
        %2262 = vmatprep.subr.mxu0 0.0
        %2263 = vmatpush1.msra.mxu0 0.0
        %2264 = vmatprep.subr.mxu0 0.0
        %2265 = vmatpush1.msra.mxu0 0.0
        %2266 = vmatprep.subr.mxu0 0.0
        %2267 = vmatpush1.msra.mxu0 0.0
        %2268 = vmatprep.subr.mxu0 0.0
        %2269 = vmatpush1.msra.mxu0 0.0
        %2270 = vmatprep.subr.mxu0 0.0
        %2271 = vmatpush1.msra.mxu0 0.0
        %2272 = vmatprep.subr.mxu0 0.0
        %2273 = vmatpush1.msra.mxu0 0.0
        %2274 = vmatprep.subr.mxu0 0.0
        %2275 = vmatpush1.msra.mxu0 0.0
        %2276 = vmatprep.subr.mxu0 0.0
        %2277 = vmatpush1.msra.mxu0 0.0
        %2278 = vmatprep.subr.mxu0 0.0
        %2279 = vmatpush1.msra.mxu0 0.0
        %2280 = vmatprep.mubr.f32.mxu0 0.0
        %2281 = vmatmul.mubr.f32.gmra.mrb[0].mxu0 %v2211
        %v2282 = vpop.f32.mrb[0].mxu0
        %v2283 = vadd.f32 %v2208, %v2282
        %v2284 = vpop.f32.mrb[0].mxu0
        %2285 = vmatprep.mubr.f32.mxu0 0.0
        %2286 = vmatmul.mubr.f32.gmra.mrb[0].mxu0 %v2214
        %v2287 = vpop.f32.mrb[0].mxu0
        %v2288 = vadd.f32 %v2208, %v2287
        %v2289 = vpop.f32.mrb[0].mxu0
        %2290 = vdwg.mxu0
        %v2291 = vadd.f32 %v739, %v2283
        %v2292 = vadd.f32 %v740, %v2288
        %v2293 = vsel %vm752, %v2291, 0.0
        %2294 = vadd.xlane.f32.xlu0 %v2293
        %v2295 = vpop.xlane.xlu0 %2294
        %v2296 = vsel %vm752, %v2292, 0.0
        %2297 = vadd.xlane.f32.xlu0 %v2296
        %v2298 = vpop.xlane.xlu0 %2297
        %v2299 = vrcp.pop 32.0
        %v2300 = vmul.f32 %v2295, %v2299
        %v2301 = vmul.f32 %v2298, %v2299
        %v2302 = vsub.f32 %v2291, %v2300
        %v2303 = vsub.f32 %v2292, %v2301
        %v2304 = vmul.f32 %v2302, %v2302
        %v2305 = vmul.f32 %v2303, %v2303
        %v2306 = vsel %vm752, %v2304, 0.0
        %2307 = vadd.xlane.f32.xlu0 %v2306
        %v2308 = vpop.xlane.xlu0 %2307
        %v2309 = vsel %vm752, %v2305, 0.0
        %2310 = vadd.xlane.f32.xlu0 %v2309
        %v2311 = vpop.xlane.xlu0 %2310
        %v2312 = vmul.f32 %v2308, %v2299
        %v2313 = vmul.f32 %v2311, %v2299
        %v2314 = vadd.f32 %v2312, 1e-05
        %v2315 = vadd.f32 %v2313, 1e-05
        %v2316 = vrsqrt.pop %v2314
        %v2317 = vrsqrt.pop %v2315
        %v2318 = vmul.f32 %v2302, %v2316
        %v2319 = vmul.f32 %v2303, %v2317
        %v2320 = vld [vmem:[%s700] sm:$0x1]
        %v2322 = vlaneseq
        %v2323 = vshrl.u32 %v2322, 7
        %v2324 = vsub.s32 0, %v2323
        %v2325 = vrot.slane %v2320, %v2324
        %v2327 = vmul.f32 %v2318, %v2325
        %v2328 = vmul.f32 %v2319, %v2325
        %v2329 = vld [vmem:[%s703] sm:$0x1]
        %v2331 = vlaneseq
        %v2332 = vshrl.u32 %v2331, 7
        %v2333 = vsub.s32 0, %v2332
        %v2334 = vrot.slane %v2329, %v2333
        %v2336 = vadd.f32 %v2327, %v2334
        %v2337 = vadd.f32 %v2328, %v2334
        %v2338 = vld [vmem:[%s708] sm:$0xff]
        %v2339 = vld [vmem:[%s708 + $0x8] sm:$0xff]
        %v2340 = vld [vmem:[%s708 + $0x10] sm:$0xff]
        %v2341 = vld [vmem:[%s708 + $0x18] sm:$0xff]
        %v2342 = vld [vmem:[%s711] sm:$0x1]
        %v2344 = vlaneseq
        %v2345 = vshrl.u32 %v2344, 7
        %v2346 = vsub.s32 0, %v2345
        %v2347 = vrot.slane %v2342, %v2346
        %v2350 = vsel %vm752, %v2336, 0
        %v2353 = vsel %vm752, %v2337, 0
        %2355 = vmatprep.subr.mxu0 0.0
        %2356 = vmatpush1.msra.mxu0 %v2338
        %2357 = vmatprep.subr.mxu0 0.0
        %2358 = vmatpush1.msra.mxu0 %v2339
        %2359 = vmatprep.subr.mxu0 0.0
        %2360 = vmatpush1.msra.mxu0 %v2340
        %2361 = vmatprep.subr.mxu0 0.0
        %2362 = vmatpush1.msra.mxu0 %v2341
        %2363 = vmatprep.subr.mxu0 0.0
        %2364 = vmatpush1.msra.mxu0 0.0
        %2365 = vmatprep.subr.mxu0 0.0
        %2366 = vmatpush1.msra.mxu0 0.0
        %2367 = vmatprep.subr.mxu0 0.0
        %2368 = vmatpush1.msra.mxu0 0.0
        %2369 = vmatprep.subr.mxu0 0.0
        %2370 = vmatpush1.msra.mxu0 0.0
        %2371 = vmatprep.subr.mxu0 0.0
        %2372 = vmatpush1.msra.mxu0 0.0
        %2373 = vmatprep.subr.mxu0 0.0
        %2374 = vmatpush1.msra.mxu0 0.0
        %2375 = vmatprep.subr.mxu0 0.0
        %2376 = vmatpush1.msra.mxu0 0.0
        %2377 = vmatprep.subr.mxu0 0.0
        %2378 = vmatpush1.msra.mxu0 0.0
        %2379 = vmatprep.subr.mxu0 0.0
        %2380 = vmatpush1.msra.mxu0 0.0
        %2381 = vmatprep.subr.mxu0 0.0
        %2382 = vmatpush1.msra.mxu0 0.0
        %2383 = vmatprep.subr.mxu0 0.0
        %2384 = vmatpush1.msra.mxu0 0.0
        %2385 = vmatprep.subr.mxu0 0.0
        %2386 = vmatpush1.msra.mxu0 0.0
        %2387 = vmatprep.subr.mxu0 0.0
        %2388 = vmatpush1.msra.mxu0 0.0
        %2389 = vmatprep.subr.mxu0 0.0
        %2390 = vmatpush1.msra.mxu0 0.0
        %2391 = vmatprep.subr.mxu0 0.0
        %2392 = vmatpush1.msra.mxu0 0.0
        %2393 = vmatprep.subr.mxu0 0.0
        %2394 = vmatpush1.msra.mxu0 0.0
        %2395 = vmatprep.subr.mxu0 0.0
        %2396 = vmatpush1.msra.mxu0 0.0
        %2397 = vmatprep.subr.mxu0 0.0
        %2398 = vmatpush1.msra.mxu0 0.0
        %2399 = vmatprep.subr.mxu0 0.0
        %2400 = vmatpush1.msra.mxu0 0.0
        %2401 = vmatprep.subr.mxu0 0.0
        %2402 = vmatpush1.msra.mxu0 0.0
        %2403 = vmatprep.subr.mxu0 0.0
        %2404 = vmatpush1.msra.mxu0 0.0
        %2405 = vmatprep.subr.mxu0 0.0
        %2406 = vmatpush1.msra.mxu0 0.0
        %2407 = vmatprep.subr.mxu0 0.0
        %2408 = vmatpush1.msra.mxu0 0.0
        %2409 = vmatprep.subr.mxu0 0.0
        %2410 = vmatpush1.msra.mxu0 0.0
        %2411 = vmatprep.subr.mxu0 0.0
        %2412 = vmatpush1.msra.mxu0 0.0
        %2413 = vmatprep.subr.mxu0 0.0
        %2414 = vmatpush1.msra.mxu0 0.0
        %2415 = vmatprep.subr.mxu0 0.0
        %2416 = vmatpush1.msra.mxu0 0.0
        %2417 = vmatprep.subr.mxu0 0.0
        %2418 = vmatpush1.msra.mxu0 0.0
        %2419 = vmatprep.mubr.f32.mxu0 0.0
        %2420 = vmatmul.mubr.f32.gmra.mrb[0].mxu0 %v2350
        %v2421 = vpop.f32.mrb[0].mxu0
        %v2422 = vadd.f32 %v2347, %v2421
        %v2423 = vpop.f32.mrb[0].mxu0
        %2424 = vmatprep.mubr.f32.mxu0 0.0
        %2425 = vmatmul.mubr.f32.gmra.mrb[0].mxu0 %v2353
        %v2426 = vpop.f32.mrb[0].mxu0
        %v2427 = vadd.f32 %v2347, %v2426
        %v2428 = vpop.f32.mrb[0].mxu0
        %2429 = vdwg.mxu0
        %v2430 = vmax.f32 %v2422, 0.0
        %v2431 = vmax.f32 %v2427, 0.0
        %v2432 = vld [vmem:[%s716] sm:$0xff]
        %v2433 = vld [vmem:[%s716 + $0x8] sm:$0xff]
        %v2434 = vld [vmem:[%s716 + $0x10] sm:$0xff]
        %v2435 = vld [vmem:[%s716 + $0x18] sm:$0xff]
        %v2436 = vld [vmem:[%s716 + $0x20] sm:$0xff]
        %v2437 = vld [vmem:[%s716 + $0x28] sm:$0xff]
        %v2438 = vld [vmem:[%s716 + $0x30] sm:$0xff]
        %v2439 = vld [vmem:[%s716 + $0x38] sm:$0xff]
        %v2440 = vld [vmem:[%s719] sm:$0x1]
        %v2442 = vlaneseq
        %v2443 = vshrl.u32 %v2442, 7
        %v2444 = vsub.s32 0, %v2443
        %v2445 = vrot.slane %v2440, %v2444
        %vm2447 = vcmask 523264
        %v2449 = vsel %vm2447, %v2430, 0
        %v2452 = vsel %vm2447, %v2431, 0
        %2454 = vmatprep.subr.mxu0 0.0
        %2455 = vmatpush1.msra.mxu0 %v2432
        %2456 = vmatprep.subr.mxu0 0.0
        %2457 = vmatpush1.msra.mxu0 %v2433
        %2458 = vmatprep.subr.mxu0 0.0
        %2459 = vmatpush1.msra.mxu0 %v2434
        %2460 = vmatprep.subr.mxu0 0.0
        %2461 = vmatpush1.msra.mxu0 %v2435
        %2462 = vmatprep.subr.mxu0 0.0
        %2463 = vmatpush1.msra.mxu0 %v2436
        %2464 = vmatprep.subr.mxu0 0.0
        %2465 = vmatpush1.msra.mxu0 %v2437
        %2466 = vmatprep.subr.mxu0 0.0
        %2467 = vmatpush1.msra.mxu0 %v2438
        %2468 = vmatprep.subr.mxu0 0.0
        %2469 = vmatpush1.msra.mxu0 %v2439
        %2470 = vmatprep.subr.mxu0 0.0
        %2471 = vmatpush1.msra.mxu0 0.0
        %2472 = vmatprep.subr.mxu0 0.0
        %2473 = vmatpush1.msra.mxu0 0.0
        %2474 = vmatprep.subr.mxu0 0.0
        %2475 = vmatpush1.msra.mxu0 0.0
        %2476 = vmatprep.subr.mxu0 0.0
        %2477 = vmatpush1.msra.mxu0 0.0
        %2478 = vmatprep.subr.mxu0 0.0
        %2479 = vmatpush1.msra.mxu0 0.0
        %2480 = vmatprep.subr.mxu0 0.0
        %2481 = vmatpush1.msra.mxu0 0.0
        %2482 = vmatprep.subr.mxu0 0.0
        %2483 = vmatpush1.msra.mxu0 0.0
        %2484 = vmatprep.subr.mxu0 0.0
        %2485 = vmatpush1.msra.mxu0 0.0
        %2486 = vmatprep.subr.mxu0 0.0
        %2487 = vmatpush1.msra.mxu0 0.0
        %2488 = vmatprep.subr.mxu0 0.0
        %2489 = vmatpush1.msra.mxu0 0.0
        %2490 = vmatprep.subr.mxu0 0.0
        %2491 = vmatpush1.msra.mxu0 0.0
        %2492 = vmatprep.subr.mxu0 0.0
        %2493 = vmatpush1.msra.mxu0 0.0
        %2494 = vmatprep.subr.mxu0 0.0
        %2495 = vmatpush1.msra.mxu0 0.0
        %2496 = vmatprep.subr.mxu0 0.0
        %2497 = vmatpush1.msra.mxu0 0.0
        %2498 = vmatprep.subr.mxu0 0.0
        %2499 = vmatpush1.msra.mxu0 0.0
        %2500 = vmatprep.subr.mxu0 0.0
        %2501 = vmatpush1.msra.mxu0 0.0
        %2502 = vmatprep.subr.mxu0 0.0
        %2503 = vmatpush1.msra.mxu0 0.0
        %2504 = vmatprep.subr.mxu0 0.0
        %2505 = vmatpush1.msra.mxu0 0.0
        %2506 = vmatprep.subr.mxu0 0.0
        %2507 = vmatpush1.msra.mxu0 0.0
        %2508 = vmatprep.subr.mxu0 0.0
        %2509 = vmatpush1.msra.mxu0 0.0
        %2510 = vmatprep.subr.mxu0 0.0
        %2511 = vmatpush1.msra.mxu0 0.0
        %2512 = vmatprep.subr.mxu0 0.0
        %2513 = vmatpush1.msra.mxu0 0.0
        %2514 = vmatprep.subr.mxu0 0.0
        %2515 = vmatpush1.msra.mxu0 0.0
        %2516 = vmatprep.subr.mxu0 0.0
        %2517 = vmatpush1.msra.mxu0 0.0
        %2518 = vmatprep.mubr.f32.mxu0 0.0
        %2519 = vmatmul.mubr.f32.gmra.mrb[0].mxu0 %v2449
        %v2520 = vpop.f32.mrb[0].mxu0
        %v2521 = vadd.f32 %v2445, %v2520
        %v2522 = vpop.f32.mrb[0].mxu0
        %2523 = vmatprep.mubr.f32.mxu0 0.0
        %2524 = vmatmul.mubr.f32.gmra.mrb[0].mxu0 %v2452
        %v2525 = vpop.f32.mrb[0].mxu0
        %v2526 = vadd.f32 %v2445, %v2525
        %v2527 = vpop.f32.mrb[0].mxu0
        %2528 = vdwg.mxu0
        %v2529 = vadd.f32 %v2336, %v2521
        %v2530 = vadd.f32 %v2337, %v2526
        %v2531 = vsel %vm752, %v2529, 0.0
        %2532 = vadd.xlane.f32.xlu0 %v2531
        %v2533 = vpop.xlane.xlu0 %2532
        %v2534 = vsel %vm752, %v2530, 0.0
        %2535 = vadd.xlane.f32.xlu0 %v2534
        %v2536 = vpop.xlane.xlu0 %2535
        %v2537 = vmul.f32 %v2533, %v2299
        %v2538 = vmul.f32 %v2536, %v2299
        %v2539 = vsub.f32 %v2529, %v2537
        %v2540 = vsub.f32 %v2530, %v2538
        %v2541 = vmul.f32 %v2539, %v2539
        %v2542 = vmul.f32 %v2540, %v2540
        %v2543 = vsel %vm752, %v2541, 0.0
        %2544 = vadd.xlane.f32.xlu0 %v2543
        %v2545 = vpop.xlane.xlu0 %2544
        %v2546 = vsel %vm752, %v2542, 0.0
        %2547 = vadd.xlane.f32.xlu0 %v2546
        %v2548 = vpop.xlane.xlu0 %2547
        %v2549 = vmul.f32 %v2545, %v2299
        %v2550 = vmul.f32 %v2548, %v2299
        %v2551 = vadd.f32 %v2549, 1e-05
        %v2552 = vadd.f32 %v2550, 1e-05
        %v2553 = vrsqrt.pop %v2551
        %v2554 = vrsqrt.pop %v2552
        %v2555 = vmul.f32 %v2539, %v2553
        %v2556 = vmul.f32 %v2540, %v2554
        %v2557 = vld [vmem:[%s722] sm:$0x1]
        %v2559 = vlaneseq
        %v2560 = vshrl.u32 %v2559, 7
        %v2561 = vsub.s32 0, %v2560
        %v2562 = vrot.slane %v2557, %v2561
        %v2564 = vmul.f32 %v2555, %v2562
        %v2565 = vmul.f32 %v2556, %v2562
        %v2566 = vld [vmem:[%s725] sm:$0x1]
        %v2568 = vlaneseq
        %v2569 = vshrl.u32 %v2568, 7
        %v2570 = vsub.s32 0, %v2569
        %v2571 = vrot.slane %v2566, %v2570
        %v2573 = vadd.f32 %v2564, %v2571
        %v2574 = vadd.f32 %v2565, %v2571
        %2575 = vst.msk [vmem:[#allocation2] sm:$0xff] %vm752, %v2573
        %2576 = vst.msk [vmem:[#allocation2 + $0x8] sm:$0xff] %vm752, %v2574
        %p2577 = scmp.eq.s32.totalorder %s34, 1
        // Predicated region
        $region93: #{tpu_custom_call.1} parent=79 // pred_check
          %p2578 = pneg %p2577
        $region94: #{tpu_custom_call.1} parent=79 // pred_check_branch
          %2580 = sbr.rel (%p2578) target = $region96
        $region95: #{tpu_custom_call.1} parent=79 // pred_region
          %2581 = vst.msk [vmem:[#allocation8] sm:$0xff] %vm752, %v2573
          %2582 = vst.msk [vmem:[#allocation8 + $0x8] sm:$0xff] %vm752, %v2574
        $region96: #{tpu_custom_call.1} parent=79 // pred_fallthru
          _
        // Predicated region
        $region97: #{tpu_custom_call.1} parent=79 // pred_check
          %p2583 = pneg %p444
        $region98: #{tpu_custom_call.1} parent=79 // pred_check_branch
          %2585 = sbr.rel (%p2583) target = $region100
        $region99: #{tpu_custom_call.1} parent=79 // pred_region
          %s2586 = smul.u32 2, %s33
          %s2588 = ssub.s32 256, 256
          %2589 = vsyncadd [#allocation5], %s2588
          %s2590 = smul.addr %s2586, 128
          %s2591 = scalar_lea.hbm %s15, %s2590
          %s2592 = sshll.u32 [#allocation8], 4
          %s2593 = int_to_ptr.vmem [resolvable:$true] %s2592
          %2598 = dma.vmem_to_hbm [thread:$0]  %s2593, 256, %s2591, [#allocation5], 128, 128, 8
        $region100: #{tpu_custom_call.1} parent=79 // pred_fallthru
          _
        // Predicated region
        $region101: #{tpu_custom_call.1} parent=79 // pred_check
          %p2599 = pneg %p444
        $region102: #{tpu_custom_call.1} parent=79 // pred_check_branch
          %2601 = sbr.rel (%p2599) target = $region104
        $region103: #{tpu_custom_call.1} parent=79 // pred_region
          %2602 = dma.done [#allocation5], 256
        $region104: #{tpu_custom_call.1} parent=79 // pred_fallthru
          _
      $region80: #{tpu_custom_call.1} parent=5 // pred_fallthru
        _
      %p2603 = scmp.le.s32.totalorder 2, %s24
      // Predicated region
      $region105: #{tpu_custom_call.1} parent=5 // pred_check
        %p2604 = pneg %p2603
      $region106: #{tpu_custom_call.1} parent=5 // pred_check_branch
        %2606 = sbr.rel (%p2604) target = $region108
      $region107: #{tpu_custom_call.1} parent=5 // pred_region
        %s2607 = ssub.s32 %s24, 2
      $region108: #{tpu_custom_call.1} parent=5 // pred_fallthru
        _
    $region6: #{tpu_custom_call.1} parent=1 // loop_footer
      %s28 = sadd.s32 1, %s24
    $region7: #{tpu_custom_call.1} parent=1 // loop_footer_branch
      %23 = sbr.rel target = $region3
    $region8: #{tpu_custom_call.1} parent=1 // loop_exit
      _
    %2608 = vsyncpa [#allocation4], 1
    %s2609 = scalar_lea.sflag [#allocation4], 1
    %2610 = vsyncpa %s2609, 1
    %2611 = vsyncpa [#allocation7], 1
    %2612 = vsyncpa [#allocation5], 1
    %s2613 = scalar_lea.sflag [#allocation5], 1
    %2614 = vsyncpa %s2613, 1

</llo_original>
